<compile_context>
chip_gen: v5e
topology: v5e:2x2
jax: 0.10.0
libtpu: 0.0.40
codegen_flags: <defaults>
</compile_context>

<pallas_src>
import functools
import math

import jax
import jax.numpy as jnp
from jax.experimental import pallas as pl
from jax.experimental.pallas import tpu as pltpu


# ------------------------------ Pallas kernel ------------------------------ #

def _layer_norm(x, gamma, beta, eps=1e-12):
    mean = jnp.mean(x, axis=-1, keepdims=True)
    var = jnp.mean(jnp.square(x - mean), axis=-1, keepdims=True)
    return (x - mean) * jax.lax.rsqrt(var + eps) * gamma + beta


def fused_encoder_kernel(hs_ref, mask_ref,
                         wqkv_ref, bqkv_ref,
                         wao_ref, bao_ref, ln1g_ref, ln1b_ref,
                         wi_ref, bi_ref, wff_ref, bff_ref,
                         ln2g_ref, ln2b_ref,
                         out_ref, carry_ref,
                         *, num_heads, head_dim):
    layer = pl.program_id(1)
    num_layers = pl.num_programs(1)

    # Layer 0 of each batch block: load the hidden state into the f32 VMEM
    # carry.  It stays VMEM-resident for the whole layer sweep (no per-layer
    # HBM round trip of the activations).
    @pl.when(layer == 0)
    def _():
        carry_ref[...] = hs_ref[...].astype(jnp.float32)

    bb, s, hidden = carry_ref.shape
    rows = bb * s

    # Fold the batch block into MXU rows for the dense matmuls.
    hs = carry_ref[...].reshape(rows, hidden)                    # [rows, H] f32

    # --- BertSelfAttention: fused QKV projection (one lane-dense matmul). ---
    qkv = jnp.dot(hs.astype(jnp.bfloat16), wqkv_ref[...],
                  preferred_element_type=jnp.float32) + bqkv_ref[...]

    # Hoisted (loop-invariant) work: scale + bf16 cast on the full slabs, and
    # the additive-mask broadcast, done once per layer instead of per head.
    scale = 1.0 / math.sqrt(head_dim)
    q = (qkv[:, :hidden] * scale).astype(jnp.bfloat16)
    k = qkv[:, hidden:2 * hidden].astype(jnp.bfloat16)
    v = qkv[:, 2 * hidden:].astype(jnp.bfloat16)
    maskb = jnp.broadcast_to(mask_ref[...][:, None, :], (bb, s, s))  # [bb,S,S]

    # Per-head attention.  head_dim is a multiple of 128 here, so each slice
    # is a whole lane tile (free view) and the final concat is tile placement.
    # Attention is computed per sequence via a batched 3-D einsum (batch dim =
    # sequences in the block), so folding batch rows above never mixes
    # sequences.
    # TODO(synk): for head_dim < 128 configs, pre-split heads head-major in
    # the wrapper (or relayout once in-kernel) instead of lane slicing.
    ctx_heads = []
    for h in range(num_heads):                       # static, small unroll
        sl = slice(h * head_dim, (h + 1) * head_dim)
        qh = q[:, sl].reshape(bb, s, head_dim)       # leading-dim split: free
        kh = k[:, sl].reshape(bb, s, head_dim)
        vh = v[:, sl].reshape(bb, s, head_dim)
        scores = jnp.einsum('bqd,bkd->bqk', qh, kh,
                            preferred_element_type=jnp.float32) + maskb
        m = jnp.max(scores, axis=-1, keepdims=True)
        e = jnp.exp(scores - m)
        probs = e / jnp.sum(e, axis=-1, keepdims=True)   # exact (torch parity)
        ctx = jnp.einsum('bqk,bkd->bqd', probs.astype(jnp.bfloat16), vh,
                         preferred_element_type=jnp.float32)
        ctx_heads.append(ctx.reshape(rows, head_dim))
    ctx = jnp.concatenate(ctx_heads, axis=-1)            # [rows, H]

    # --- BertSelfOutput: dense + residual + LayerNorm. ---
    attn = jnp.dot(ctx.astype(jnp.bfloat16), wao_ref[...],
                   preferred_element_type=jnp.float32) + bao_ref[...]
    attn = _layer_norm(attn + hs, ln1g_ref[...], ln1b_ref[...])

    # --- BertIntermediate + BertOutput: FFN + residual + LayerNorm. ---
    inter = jnp.dot(attn.astype(jnp.bfloat16), wi_ref[...],
                    preferred_element_type=jnp.float32) + bi_ref[...]
    # TODO(synk): tanh-approx GELU used; BERT's exact erf-GELU differs at the
    # ~1e-3 level (erf lowering in-kernel is not relied upon here).
    inter = jax.nn.gelu(inter)
    ffn = jnp.dot(inter.astype(jnp.bfloat16), wff_ref[...],
                  preferred_element_type=jnp.float32) + bff_ref[...]
    new_hs = _layer_norm(ffn + attn, ln2g_ref[...], ln2b_ref[...])

    carry_ref[...] = new_hs.reshape(bb, s, hidden)

    @pl.when(layer == num_layers - 1)
    def _():
        out_ref[...] = carry_ref[...].astype(out_ref.dtype)


# ------------------------------ Wrapper (JAX) ------------------------------ #

def transformer_encoder_forward(hidden_states, attention_mask, params, *,
                                num_heads, block_b=None):
    b, s, hdim = hidden_states.shape
    num_layers = params["w_qkv"].shape[0]
    inter_dim = params["w_i"].shape[2]
    head_dim = hdim // num_heads

    # Fold the whole batch into one block by default so the dense matmuls see
    # block_b*S MXU rows.  On v7x, pass a smaller block_b (with >= 2 batch
    # blocks) to keep both TensorCores busy on the "parallel" axis.
    if block_b is None:
        block_b = b
    assert b % block_b == 0

    # HF-style additive mask: (1 - mask) * -10000, broadcast over query rows.
    mask_add = (1.0 - attention_mask.astype(jnp.float32)) * -10000.0   # [B, S]

    weight_names = ["w_qkv", "b_qkv", "w_ao", "b_ao", "ln1_g", "ln1_b",
                    "w_i", "b_i", "w_ff", "b_ff", "ln2_g", "ln2_b"]
    weights = [params[n] for n in weight_names]

    kernel = functools.partial(fused_encoder_kernel,
                               num_heads=num_heads, head_dim=head_dim)

    act_spec = pl.BlockSpec((block_b, s, hdim), lambda i, l: (i, 0, 0))
    out_spec = pl.BlockSpec((block_b, s, hdim), lambda i, l: (i, 0, 0))
    mask_spec = pl.BlockSpec((block_b, s), lambda i, l: (i, 0))

    def layer_spec(arr):
        nd = arr.ndim - 1
        # Weight block index follows the layer grid coordinate => BlockSpec
        # pipelining prefetches layer l+1's weights during layer l's compute.
        return pl.BlockSpec((None,) + tuple(arr.shape[1:]),
                            lambda i, l, nd=nd: (l,) + (0,) * nd)

    # Advisory cost estimate for XLA's scheduler (totals over batch & layers).
    flops = num_layers * b * (2 * s * hdim * 3 * hdim      # QKV projection
                              + 4 * s * s * hdim           # scores + context
                              + 2 * s * hdim * hdim        # attention out dense
                              + 4 * s * hdim * inter_dim)  # FFN up + down
    transcendentals = num_layers * b * (num_heads * s * s + s * inter_dim + 4 * s)
    bytes_accessed = (2 * int(hidden_states.size) * 4 + int(mask_add.size) * 4
                      + sum(int(w.size) * w.dtype.itemsize for w in weights))

    # Explicit VMEM budget: double-buffered per-layer weights + activation
    # blocks + f32 intermediates, clamped to fit v7x's 64 MiB/TC with margin.
    per_layer_w_bytes = sum((int(w.size) // num_layers) * w.dtype.itemsize
                            for w in weights)
    act_block_bytes = block_b * s * hdim * 4
    rows = block_b * s
    interm_bytes = (rows * (3 * hdim + inter_dim + 2 * hdim) * 4
                    + block_b * num_heads * s * s * 4)
    need = (2 * per_layer_w_bytes          # double-buffered weights (prefetch)
            + 3 * act_block_bytes          # hs in + out + carry scratch
            + 2 * interm_bytes)            # headroom for in-flight temporaries
    vmem_limit = int(min(48 * 2**20, max(32 * 2**20, need)))

    return pl.pallas_call(
        kernel,
        out_shape=jax.ShapeDtypeStruct((b, s, hdim), jnp.float32),
        grid=(b // block_b, num_layers),
        in_specs=[act_spec, mask_spec] + [layer_spec(w) for w in weights],
        out_specs=out_spec,
        scratch_shapes=[pltpu.VMEM((block_b, s, hdim), jnp.float32)],
        compiler_params=pltpu.CompilerParams(
            dimension_semantics=("parallel", "arbitrary"),
            vmem_limit_bytes=vmem_limit),
        cost_estimate=pl.CostEstimate(flops=flops,
                                      transcendentals=transcendentals,
                                      bytes_accessed=bytes_accessed),
    )(hidden_states, mask_add, *weights)


def init_params(key, num_layers, hidden, intermediate):
    """Per-layer BERT weights stacked along a leading L axis (for the fused call)."""
    def nrm(k, shape):  # BERT init: N(0, 0.02); stored bf16 for the MXU path
        return (0.02 * jax.random.normal(k, shape, jnp.float32)).astype(jnp.bfloat16)

    L = num_layers
    k1, k2, k3, k4 = jax.random.split(key, 4)
    return dict(
        w_qkv=nrm(k1, (L, hidden, 3 * hidden)),
        b_qkv=jnp.zeros((L, 1, 3 * hidden), jnp.float32),
        w_ao=nrm(k2, (L, hidden, hidden)),
        b_ao=jnp.zeros((L, 1, hidden), jnp.float32),
        ln1_g=jnp.ones((L, 1, hidden), jnp.float32),
        ln1_b=jnp.zeros((L, 1, hidden), jnp.float32),
        w_i=nrm(k3, (L, hidden, intermediate)),
        b_i=jnp.zeros((L, 1, intermediate), jnp.float32),
        w_ff=nrm(k4, (L, intermediate, hidden)),
        b_ff=jnp.zeros((L, 1, hidden), jnp.float32),
        ln2_g=jnp.ones((L, 1, hidden), jnp.float32),
        ln2_b=jnp.zeros((L, 1, hidden), jnp.float32),
    )


# ---------------------------------- Main ----------------------------------- #

if __name__ == "__main__":
    BATCH, SEQ = 2, 8
    HIDDEN, NUM_HEADS, INTERMEDIATE = 256, 2, 512   # head_dim = 128 (lane tile)
    NUM_LAYERS = 2

    key = jax.random.PRNGKey(0)
    k_x, k_p = jax.random.split(key)

    hidden_states = jax.random.normal(k_x, (BATCH, SEQ, HIDDEN), jnp.float32)
    # Binary attention mask; batch element 1 has its last two tokens padded out.
    attention_mask = jnp.ones((BATCH, SEQ), jnp.float32).at[1, SEQ - 2:].set(0.0)

    params = init_params(k_p, NUM_LAYERS, HIDDEN, INTERMEDIATE)

    out = transformer_encoder_forward(hidden_states, attention_mask, params,
                                      num_heads=NUM_HEADS)
    out = jax.block_until_ready(out)
    assert out.shape == (BATCH, SEQ, HIDDEN)
    assert bool(jnp.all(jnp.isfinite(out)))
    print("KERNEL_OK")
</pallas_src>

<mosaic_0001>
module attributes {stable_mosaic.version = 11 : i64} {
  func.func @fused_encoder_kernel(%arg0: i32, %arg1: i32, %arg2: memref<2x8x256xf32, #tpu.memory_space<vmem>>, %arg3: memref<2x8xf32, #tpu.memory_space<vmem>>, %arg4: memref<1x256x768xbf16, #tpu.memory_space<vmem>>, %arg5: memref<1x1x768xf32, #tpu.memory_space<vmem>>, %arg6: memref<1x256x256xbf16, #tpu.memory_space<vmem>>, %arg7: memref<1x1x256xf32, #tpu.memory_space<vmem>>, %arg8: memref<1x1x256xf32, #tpu.memory_space<vmem>>, %arg9: memref<1x1x256xf32, #tpu.memory_space<vmem>>, %arg10: memref<1x256x512xbf16, #tpu.memory_space<vmem>>, %arg11: memref<1x1x512xf32, #tpu.memory_space<vmem>>, %arg12: memref<1x512x256xbf16, #tpu.memory_space<vmem>>, %arg13: memref<1x1x256xf32, #tpu.memory_space<vmem>>, %arg14: memref<1x1x256xf32, #tpu.memory_space<vmem>>, %arg15: memref<1x1x256xf32, #tpu.memory_space<vmem>>, %arg16: memref<2x8x256xf32, #tpu.memory_space<vmem>>, %arg17: memref<2x8x256xf32, #tpu.memory_space<vmem>>) attributes {dimension_semantics = [#tpu.dimension_semantics<parallel>, #tpu.dimension_semantics<arbitrary>], iteration_bounds = array<i64: 1, 2>, scalar_prefetch = 0 : i64, scratch_operands = 1 : i64, tpu.core_type = #tpu.core_type<tc>, window_params = [{transform_indices = @transform_0, window_bounds = array<i64: 2, 8, 256>}, {transform_indices = @transform_1, window_bounds = array<i64: 2, 8>}, {transform_indices = @transform_2, window_bounds = array<i64: 1, 256, 768>}, {transform_indices = @transform_3, window_bounds = array<i64: 1, 1, 768>}, {transform_indices = @transform_4, window_bounds = array<i64: 1, 256, 256>}, {transform_indices = @transform_5, window_bounds = array<i64: 1, 1, 256>}, {transform_indices = @transform_6, window_bounds = array<i64: 1, 1, 256>}, {transform_indices = @transform_7, window_bounds = array<i64: 1, 1, 256>}, {transform_indices = @transform_8, window_bounds = array<i64: 1, 256, 512>}, {transform_indices = @transform_9, window_bounds = array<i64: 1, 1, 512>}, {transform_indices = @transform_10, window_bounds = array<i64: 1, 512, 256>}, {transform_indices = @transform_11, window_bounds = array<i64: 1, 1, 256>}, {transform_indices = @transform_12, window_bounds = array<i64: 1, 1, 256>}, {transform_indices = @transform_13, window_bounds = array<i64: 1, 1, 256>}, {transform_indices = @transform_14, window_bounds = array<i64: 2, 8, 256>}]} {
    %c0_i32 = arith.constant 0 : i32
    %0 = arith.cmpi eq, %arg1, %c0_i32 : i32
    %1 = arith.extui %0 : i1 to i32
    %c0_i32_0 = arith.constant 0 : i32
    %2 = arith.cmpi ne, %1, %c0_i32_0 : i32
    scf.if %2 {
      %c0_71 = arith.constant 0 : index
      %c0_72 = arith.constant 0 : index
      %c0_73 = arith.constant 0 : index
      %162 = vector.load %arg2[%c0_71, %c0_72, %c0_73] : memref<2x8x256xf32, #tpu.memory_space<vmem>>, vector<2x8x256xf32>
      %c0_74 = arith.constant 0 : index
      %c0_75 = arith.constant 0 : index
      %c0_76 = arith.constant 0 : index
      %163 = vector.load %arg17[%c0_74, %c0_75, %c0_76] : memref<2x8x256xf32, #tpu.memory_space<vmem>>, vector<2x8x256xf32>
      tpu.vector_store %arg17[%c0_74, %c0_75, %c0_76], %162 {strides = array<i32>} : memref<2x8x256xf32, #tpu.memory_space<vmem>>, vector<2x8x256xf32>,
    } else {
    }
    %c0 = arith.constant 0 : index
    %c0_1 = arith.constant 0 : index
    %c0_2 = arith.constant 0 : index
    %3 = vector.load %arg17[%c0, %c0_1, %c0_2] : memref<2x8x256xf32, #tpu.memory_space<vmem>>, vector<2x8x256xf32>
    %4 = vector.shape_cast %3 : vector<2x8x256xf32> to vector<16x256xf32>
    %5 = arith.truncf %4 : vector<16x256xf32> to vector<16x256xbf16>
    %c0_3 = arith.constant 0 : index
    %c0_4 = arith.constant 0 : index
    %c0_5 = arith.constant 0 : index
    %6 = vector.load %arg4[%c0_3, %c0_4, %c0_5] : memref<1x256x768xbf16, #tpu.memory_space<vmem>>, vector<1x256x768xbf16>
    %7 = vector.shape_cast %6 : vector<1x256x768xbf16> to vector<256x768xbf16>
    %cst = arith.constant dense<0.000000e+00> : vector<16x768xf32>
    %8 = tpu.matmul %5, %7, %cst {dimension_numbers = #tpu.dot_dimension_numbers<[1], [0], [0], [1], [0, 0, 1, 1], [], []>} : vector<16x256xbf16>, vector<256x768xbf16>, vector<16x768xf32> -> vector<16x768xf32>
    %c0_6 = arith.constant 0 : index
    %c0_7 = arith.constant 0 : index
    %c0_8 = arith.constant 0 : index
    %9 = vector.load %arg5[%c0_6, %c0_7, %c0_8] : memref<1x1x768xf32, #tpu.memory_space<vmem>>, vector<1x1x768xf32>
    %10 = vector.shape_cast %9 : vector<1x1x768xf32> to vector<1x768xf32>
    %11 = vector.broadcast %10 : vector<1x768xf32> to vector<16x768xf32>
    %12 = arith.addf %8, %11 : vector<16x768xf32>
    %13 = vector.extract_strided_slice %12 {offsets = [0, 0], sizes = [16, 256], strides = [1, 1]} : vector<16x768xf32> to vector<16x256xf32>
    %cst_9 = arith.constant 0.0883883461 : f32
    %14 = vector.broadcast %cst_9 : f32 to vector<16x256xf32>
    %15 = arith.mulf %13, %14 : vector<16x256xf32>
    %16 = arith.truncf %15 : vector<16x256xf32> to vector<16x256xbf16>
    %17 = vector.extract_strided_slice %12 {offsets = [0, 256], sizes = [16, 256], strides = [1, 1]} : vector<16x768xf32> to vector<16x256xf32>
    %18 = arith.truncf %17 : vector<16x256xf32> to vector<16x256xbf16>
    %19 = vector.extract_strided_slice %12 {offsets = [0, 512], sizes = [16, 256], strides = [1, 1]} : vector<16x768xf32> to vector<16x256xf32>
    %20 = arith.truncf %19 : vector<16x256xf32> to vector<16x256xbf16>
    %c0_10 = arith.constant 0 : index
    %c0_11 = arith.constant 0 : index
    %21 = vector.load %arg3[%c0_10, %c0_11] : memref<2x8xf32, #tpu.memory_space<vmem>>, vector<2x8xf32>
    %22 = vector.shape_cast %21 : vector<2x8xf32> to vector<2x1x8xf32>
    %23 = vector.shape_cast %22 : vector<2x1x8xf32> to vector<2x1x8xf32>
    %24 = vector.broadcast %23 : vector<2x1x8xf32> to vector<2x8x8xf32>
    %25 = vector.extract_strided_slice %16 {offsets = [0, 0], sizes = [16, 128], strides = [1, 1]} : vector<16x256xbf16> to vector<16x128xbf16>
    %26 = vector.shape_cast %25 : vector<16x128xbf16> to vector<2x8x128xbf16>
    %27 = vector.extract_strided_slice %18 {offsets = [0, 0], sizes = [16, 128], strides = [1, 1]} : vector<16x256xbf16> to vector<16x128xbf16>
    %28 = vector.shape_cast %27 : vector<16x128xbf16> to vector<2x8x128xbf16>
    %29 = vector.extract_strided_slice %20 {offsets = [0, 0], sizes = [16, 128], strides = [1, 1]} : vector<16x256xbf16> to vector<16x128xbf16>
    %30 = vector.shape_cast %29 : vector<16x128xbf16> to vector<2x8x128xbf16>
    "tpu.trace_start"() <{level = 10 : i32, message = "bqd,bkd->bqk"}> : () -> ()
    %cst_12 = arith.constant dense<0.000000e+00> : vector<2x8x8xf32>
    %31 = tpu.matmul %26, %28, %cst_12 {dimension_numbers = #tpu.dot_dimension_numbers<[2], [2], [1], [1], [0, 0, 0, 1, 1, 1], [0], [0]>} : vector<2x8x128xbf16>, vector<2x8x128xbf16>, vector<2x8x8xf32> -> vector<2x8x8xf32>
    "tpu.trace_stop"() : () -> ()
    %32 = arith.addf %31, %24 : vector<2x8x8xf32>
    %cst_13 = arith.constant dense<0xFF800000> : vector<2x8xf32>
    %33 = vector.multi_reduction <maximumf>, %32, %cst_13 [2] : vector<2x8x8xf32> to vector<2x8xf32>
    %34 = vector.shape_cast %33 : vector<2x8xf32> to vector<2x8x1xf32>
    %35 = vector.broadcast %34 : vector<2x8x1xf32> to vector<2x8x8xf32>
    %36 = arith.subf %32, %35 : vector<2x8x8xf32>
    %37 = math.exp %36 : vector<2x8x8xf32>
    %cst_14 = arith.constant dense<0.000000e+00> : vector<2x8xf32>
    %38 = vector.multi_reduction <add>, %37, %cst_14 [2] : vector<2x8x8xf32> to vector<2x8xf32>
    %39 = vector.shape_cast %38 : vector<2x8xf32> to vector<2x8x1xf32>
    %40 = vector.broadcast %39 : vector<2x8x1xf32> to vector<2x8x8xf32>
    %41 = arith.divf %37, %40 : vector<2x8x8xf32>
    %42 = arith.truncf %41 : vector<2x8x8xf32> to vector<2x8x8xbf16>
    "tpu.trace_start"() <{level = 10 : i32, message = "bqk,bkd->bqd"}> : () -> ()
    %cst_15 = arith.constant dense<0.000000e+00> : vector<2x8x128xf32>
    %43 = tpu.matmul %42, %30, %cst_15 {dimension_numbers = #tpu.dot_dimension_numbers<[2], [1], [1], [2], [0, 0, 0, 1, 1, 2], [0], [0]>} : vector<2x8x8xbf16>, vector<2x8x128xbf16>, vector<2x8x128xf32> -> vector<2x8x128xf32>
    "tpu.trace_stop"() : () -> ()
    %44 = vector.shape_cast %43 : vector<2x8x128xf32> to vector<16x128xf32>
    %45 = vector.extract_strided_slice %16 {offsets = [0, 128], sizes = [16, 128], strides = [1, 1]} : vector<16x256xbf16> to vector<16x128xbf16>
    %46 = vector.shape_cast %45 : vector<16x128xbf16> to vector<2x8x128xbf16>
    %47 = vector.extract_strided_slice %18 {offsets = [0, 128], sizes = [16, 128], strides = [1, 1]} : vector<16x256xbf16> to vector<16x128xbf16>
    %48 = vector.shape_cast %47 : vector<16x128xbf16> to vector<2x8x128xbf16>
    %49 = vector.extract_strided_slice %20 {offsets = [0, 128], sizes = [16, 128], strides = [1, 1]} : vector<16x256xbf16> to vector<16x128xbf16>
    %50 = vector.shape_cast %49 : vector<16x128xbf16> to vector<2x8x128xbf16>
    "tpu.trace_start"() <{level = 10 : i32, message = "bqd,bkd->bqk"}> : () -> ()
    %cst_16 = arith.constant dense<0.000000e+00> : vector<2x8x8xf32>
    %51 = tpu.matmul %46, %48, %cst_16 {dimension_numbers = #tpu.dot_dimension_numbers<[2], [2], [1], [1], [0, 0, 0, 1, 1, 1], [0], [0]>} : vector<2x8x128xbf16>, vector<2x8x128xbf16>, vector<2x8x8xf32> -> vector<2x8x8xf32>
    "tpu.trace_stop"() : () -> ()
    %52 = arith.addf %51, %24 : vector<2x8x8xf32>
    %cst_17 = arith.constant dense<0xFF800000> : vector<2x8xf32>
    %53 = vector.multi_reduction <maximumf>, %52, %cst_17 [2] : vector<2x8x8xf32> to vector<2x8xf32>
    %54 = vector.shape_cast %53 : vector<2x8xf32> to vector<2x8x1xf32>
    %55 = vector.broadcast %54 : vector<2x8x1xf32> to vector<2x8x8xf32>
    %56 = arith.subf %52, %55 : vector<2x8x8xf32>
    %57 = math.exp %56 : vector<2x8x8xf32>
    %cst_18 = arith.constant dense<0.000000e+00> : vector<2x8xf32>
    %58 = vector.multi_reduction <add>, %57, %cst_18 [2] : vector<2x8x8xf32> to vector<2x8xf32>
    %59 = vector.shape_cast %58 : vector<2x8xf32> to vector<2x8x1xf32>
    %60 = vector.broadcast %59 : vector<2x8x1xf32> to vector<2x8x8xf32>
    %61 = arith.divf %57, %60 : vector<2x8x8xf32>
    %62 = arith.truncf %61 : vector<2x8x8xf32> to vector<2x8x8xbf16>
    "tpu.trace_start"() <{level = 10 : i32, message = "bqk,bkd->bqd"}> : () -> ()
    %cst_19 = arith.constant dense<0.000000e+00> : vector<2x8x128xf32>
    %63 = tpu.matmul %62, %50, %cst_19 {dimension_numbers = #tpu.dot_dimension_numbers<[2], [1], [1], [2], [0, 0, 0, 1, 1, 2], [0], [0]>} : vector<2x8x8xbf16>, vector<2x8x128xbf16>, vector<2x8x128xf32> -> vector<2x8x128xf32>
    "tpu.trace_stop"() : () -> ()
    %64 = vector.shape_cast %63 : vector<2x8x128xf32> to vector<16x128xf32>
    %65 = tpu.concatenate %44, %64 in 1 : vector<16x128xf32>, vector<16x128xf32> -> vector<16x256xf32>
    %66 = arith.truncf %65 : vector<16x256xf32> to vector<16x256xbf16>
    %c0_20 = arith.constant 0 : index
    %c0_21 = arith.constant 0 : index
    %c0_22 = arith.constant 0 : index
    %67 = vector.load %arg6[%c0_20, %c0_21, %c0_22] : memref<1x256x256xbf16, #tpu.memory_space<vmem>>, vector<1x256x256xbf16>
    %68 = vector.shape_cast %67 : vector<1x256x256xbf16> to vector<256x256xbf16>
    %cst_23 = arith.constant dense<0.000000e+00> : vector<16x256xf32>
    %69 = tpu.matmul %66, %68, %cst_23 {dimension_numbers = #tpu.dot_dimension_numbers<[1], [0], [0], [1], [0, 0, 1, 1], [], []>} : vector<16x256xbf16>, vector<256x256xbf16>, vector<16x256xf32> -> vector<16x256xf32>
    %c0_24 = arith.constant 0 : index
    %c0_25 = arith.constant 0 : index
    %c0_26 = arith.constant 0 : index
    %70 = vector.load %arg7[%c0_24, %c0_25, %c0_26] : memref<1x1x256xf32, #tpu.memory_space<vmem>>, vector<1x1x256xf32>
    %71 = vector.shape_cast %70 : vector<1x1x256xf32> to vector<1x256xf32>
    %72 = vector.broadcast %71 : vector<1x256xf32> to vector<16x256xf32>
    %73 = arith.addf %69, %72 : vector<16x256xf32>
    %74 = arith.addf %73, %4 : vector<16x256xf32>
    %c0_27 = arith.constant 0 : index
    %c0_28 = arith.constant 0 : index
    %c0_29 = arith.constant 0 : index
    %75 = vector.load %arg8[%c0_27, %c0_28, %c0_29] : memref<1x1x256xf32, #tpu.memory_space<vmem>>, vector<1x1x256xf32>
    %76 = vector.shape_cast %75 : vector<1x1x256xf32> to vector<1x256xf32>
    %c0_30 = arith.constant 0 : index
    %c0_31 = arith.constant 0 : index
    %c0_32 = arith.constant 0 : index
    %77 = vector.load %arg9[%c0_30, %c0_31, %c0_32] : memref<1x1x256xf32, #tpu.memory_space<vmem>>, vector<1x1x256xf32>
    %78 = vector.shape_cast %77 : vector<1x1x256xf32> to vector<1x256xf32>
    %cst_33 = arith.constant dense<0.000000e+00> : vector<16xf32>
    %79 = vector.multi_reduction <add>, %74, %cst_33 [1] : vector<16x256xf32> to vector<16xf32>
    %80 = vector.shape_cast %79 : vector<16xf32> to vector<16x1xf32>
    %cst_34 = arith.constant 2.560000e+02 : f32
    %81 = vector.broadcast %cst_34 : f32 to vector<16x1xf32>
    %82 = arith.divf %80, %81 : vector<16x1xf32>
    %83 = vector.broadcast %82 : vector<16x1xf32> to vector<16x256xf32>
    %84 = arith.subf %74, %83 : vector<16x256xf32>
    %85 = arith.mulf %84, %84 : vector<16x256xf32>
    %cst_35 = arith.constant dense<0.000000e+00> : vector<16xf32>
    %86 = vector.multi_reduction <add>, %85, %cst_35 [1] : vector<16x256xf32> to vector<16xf32>
    %87 = vector.shape_cast %86 : vector<16xf32> to vector<16x1xf32>
    %cst_36 = arith.constant 2.560000e+02 : f32
    %88 = vector.broadcast %cst_36 : f32 to vector<16x1xf32>
    %89 = arith.divf %87, %88 : vector<16x1xf32>
    %90 = vector.broadcast %82 : vector<16x1xf32> to vector<16x256xf32>
    %91 = arith.subf %74, %90 : vector<16x256xf32>
    %cst_37 = arith.constant 9.99999996E-13 : f32
    %92 = vector.broadcast %cst_37 : f32 to vector<16x1xf32>
    %93 = arith.addf %89, %92 : vector<16x1xf32>
    %94 = math.rsqrt %93 : vector<16x1xf32>
    %95 = vector.broadcast %94 : vector<16x1xf32> to vector<16x256xf32>
    %96 = arith.mulf %91, %95 : vector<16x256xf32>
    %97 = vector.broadcast %76 : vector<1x256xf32> to vector<16x256xf32>
    %98 = arith.mulf %96, %97 : vector<16x256xf32>
    %99 = vector.broadcast %78 : vector<1x256xf32> to vector<16x256xf32>
    %100 = arith.addf %98, %99 : vector<16x256xf32>
    %101 = arith.truncf %100 : vector<16x256xf32> to vector<16x256xbf16>
    %c0_38 = arith.constant 0 : index
    %c0_39 = arith.constant 0 : index
    %c0_40 = arith.constant 0 : index
    %102 = vector.load %arg10[%c0_38, %c0_39, %c0_40] : memref<1x256x512xbf16, #tpu.memory_space<vmem>>, vector<1x256x512xbf16>
    %103 = vector.shape_cast %102 : vector<1x256x512xbf16> to vector<256x512xbf16>
    %cst_41 = arith.constant dense<0.000000e+00> : vector<16x512xf32>
    %104 = tpu.matmul %101, %103, %cst_41 {dimension_numbers = #tpu.dot_dimension_numbers<[1], [0], [0], [1], [0, 0, 1, 1], [], []>} : vector<16x256xbf16>, vector<256x512xbf16>, vector<16x512xf32> -> vector<16x512xf32>
    %c0_42 = arith.constant 0 : index
    %c0_43 = arith.constant 0 : index
    %c0_44 = arith.constant 0 : index
    %105 = vector.load %arg11[%c0_42, %c0_43, %c0_44] : memref<1x1x512xf32, #tpu.memory_space<vmem>>, vector<1x1x512xf32>
    %106 = vector.shape_cast %105 : vector<1x1x512xf32> to vector<1x512xf32>
    %107 = vector.broadcast %106 : vector<1x512xf32> to vector<16x512xf32>
    %108 = arith.addf %104, %107 : vector<16x512xf32>
    %109 = arith.mulf %108, %108 : vector<16x512xf32>
    %110 = arith.mulf %108, %109 : vector<16x512xf32>
    %cst_45 = arith.constant 4.471500e-02 : f32
    %111 = vector.broadcast %cst_45 : f32 to vector<16x512xf32>
    %112 = arith.mulf %111, %110 : vector<16x512xf32>
    %113 = arith.addf %108, %112 : vector<16x512xf32>
    %cst_46 = arith.constant 0.797884583 : f32
    %114 = vector.broadcast %cst_46 : f32 to vector<16x512xf32>
    %115 = arith.mulf %114, %113 : vector<16x512xf32>
    %116 = math.tanh %115 : vector<16x512xf32>
    %cst_47 = arith.constant 1.000000e+00 : f32
    %117 = vector.broadcast %cst_47 : f32 to vector<16x512xf32>
    %118 = arith.addf %117, %116 : vector<16x512xf32>
    %cst_48 = arith.constant 5.000000e-01 : f32
    %119 = vector.broadcast %cst_48 : f32 to vector<16x512xf32>
    %120 = arith.mulf %119, %118 : vector<16x512xf32>
    %121 = arith.mulf %108, %120 : vector<16x512xf32>
    %122 = arith.truncf %121 : vector<16x512xf32> to vector<16x512xbf16>
    %c0_49 = arith.constant 0 : index
    %c0_50 = arith.constant 0 : index
    %c0_51 = arith.constant 0 : index
    %123 = vector.load %arg12[%c0_49, %c0_50, %c0_51] : memref<1x512x256xbf16, #tpu.memory_space<vmem>>, vector<1x512x256xbf16>
    %124 = vector.shape_cast %123 : vector<1x512x256xbf16> to vector<512x256xbf16>
    %cst_52 = arith.constant dense<0.000000e+00> : vector<16x256xf32>
    %125 = tpu.matmul %122, %124, %cst_52 {dimension_numbers = #tpu.dot_dimension_numbers<[1], [0], [0], [1], [0, 0, 1, 1], [], []>} : vector<16x512xbf16>, vector<512x256xbf16>, vector<16x256xf32> -> vector<16x256xf32>
    %c0_53 = arith.constant 0 : index
    %c0_54 = arith.constant 0 : index
    %c0_55 = arith.constant 0 : index
    %126 = vector.load %arg13[%c0_53, %c0_54, %c0_55] : memref<1x1x256xf32, #tpu.memory_space<vmem>>, vector<1x1x256xf32>
    %127 = vector.shape_cast %126 : vector<1x1x256xf32> to vector<1x256xf32>
    %128 = vector.broadcast %127 : vector<1x256xf32> to vector<16x256xf32>
    %129 = arith.addf %125, %128 : vector<16x256xf32>
    %130 = arith.addf %129, %100 : vector<16x256xf32>
    %c0_56 = arith.constant 0 : index
    %c0_57 = arith.constant 0 : index
    %c0_58 = arith.constant 0 : index
    %131 = vector.load %arg14[%c0_56, %c0_57, %c0_58] : memref<1x1x256xf32, #tpu.memory_space<vmem>>, vector<1x1x256xf32>
    %132 = vector.shape_cast %131 : vector<1x1x256xf32> to vector<1x256xf32>
    %c0_59 = arith.constant 0 : index
    %c0_60 = arith.constant 0 : index
    %c0_61 = arith.constant 0 : index
    %133 = vector.load %arg15[%c0_59, %c0_60, %c0_61] : memref<1x1x256xf32, #tpu.memory_space<vmem>>, vector<1x1x256xf32>
    %134 = vector.shape_cast %133 : vector<1x1x256xf32> to vector<1x256xf32>
    %cst_62 = arith.constant dense<0.000000e+00> : vector<16xf32>
    %135 = vector.multi_reduction <add>, %130, %cst_62 [1] : vector<16x256xf32> to vector<16xf32>
    %136 = vector.shape_cast %135 : vector<16xf32> to vector<16x1xf32>
    %cst_63 = arith.constant 2.560000e+02 : f32
    %137 = vector.broadcast %cst_63 : f32 to vector<16x1xf32>
    %138 = arith.divf %136, %137 : vector<16x1xf32>
    %139 = vector.broadcast %138 : vector<16x1xf32> to vector<16x256xf32>
    %140 = arith.subf %130, %139 : vector<16x256xf32>
    %141 = arith.mulf %140, %140 : vector<16x256xf32>
    %cst_64 = arith.constant dense<0.000000e+00> : vector<16xf32>
    %142 = vector.multi_reduction <add>, %141, %cst_64 [1] : vector<16x256xf32> to vector<16xf32>
    %143 = vector.shape_cast %142 : vector<16xf32> to vector<16x1xf32>
    %cst_65 = arith.constant 2.560000e+02 : f32
    %144 = vector.broadcast %cst_65 : f32 to vector<16x1xf32>
    %145 = arith.divf %143, %144 : vector<16x1xf32>
    %146 = vector.broadcast %138 : vector<16x1xf32> to vector<16x256xf32>
    %147 = arith.subf %130, %146 : vector<16x256xf32>
    %cst_66 = arith.constant 9.99999996E-13 : f32
    %148 = vector.broadcast %cst_66 : f32 to vector<16x1xf32>
    %149 = arith.addf %145, %148 : vector<16x1xf32>
    %150 = math.rsqrt %149 : vector<16x1xf32>
    %151 = vector.broadcast %150 : vector<16x1xf32> to vector<16x256xf32>
    %152 = arith.mulf %147, %151 : vector<16x256xf32>
    %153 = vector.broadcast %132 : vector<1x256xf32> to vector<16x256xf32>
    %154 = arith.mulf %152, %153 : vector<16x256xf32>
    %155 = vector.broadcast %134 : vector<1x256xf32> to vector<16x256xf32>
    %156 = arith.addf %154, %155 : vector<16x256xf32>
    %157 = vector.shape_cast %156 : vector<16x256xf32> to vector<2x8x256xf32>
    %c0_67 = arith.constant 0 : index
    %c0_68 = arith.constant 0 : index
    %c0_69 = arith.constant 0 : index
    %158 = vector.load %arg17[%c0_67, %c0_68, %c0_69] : memref<2x8x256xf32, #tpu.memory_space<vmem>>, vector<2x8x256xf32>
    tpu.vector_store %arg17[%c0_67, %c0_68, %c0_69], %157 {strides = array<i32>} : memref<2x8x256xf32, #tpu.memory_space<vmem>>, vector<2x8x256xf32>,
    %c1_i32 = arith.constant 1 : i32
    %159 = arith.cmpi eq, %arg1, %c1_i32 : i32
    %160 = arith.extui %159 : i1 to i32
    %c0_i32_70 = arith.constant 0 : i32
    %161 = arith.cmpi ne, %160, %c0_i32_70 : i32
    scf.if %161 {
      %c0_71 = arith.constant 0 : index
      %c0_72 = arith.constant 0 : index
      %c0_73 = arith.constant 0 : index
      %162 = vector.load %arg17[%c0_71, %c0_72, %c0_73] : memref<2x8x256xf32, #tpu.memory_space<vmem>>, vector<2x8x256xf32>
      %c0_74 = arith.constant 0 : index
      %c0_75 = arith.constant 0 : index
      %c0_76 = arith.constant 0 : index
      %163 = vector.load %arg16[%c0_74, %c0_75, %c0_76] : memref<2x8x256xf32, #tpu.memory_space<vmem>>, vector<2x8x256xf32>
      tpu.vector_store %arg16[%c0_74, %c0_75, %c0_76], %162 {strides = array<i32>} : memref<2x8x256xf32, #tpu.memory_space<vmem>>, vector<2x8x256xf32>,
    } else {
    }
    return
  }
  func.func @transform_0(%arg0: i32, %arg1: i32) -> (i32, i32, i32) {
    %c0_i32 = arith.constant 0 : i32
    %c0_i32_0 = arith.constant 0 : i32
    %c0_i32_1 = arith.constant 0 : i32
    return %arg0, %c0_i32, %c0_i32_0 : i32, i32, i32
  }
  func.func @transform_1(%arg0: i32, %arg1: i32) -> (i32, i32) {
    %c0_i32 = arith.constant 0 : i32
    %c0_i32_0 = arith.constant 0 : i32
    return %arg0, %c0_i32 : i32, i32
  }
  func.func @transform_2(%arg0: i32, %arg1: i32) -> (i32, i32, i32) {
    %c0_i32 = arith.constant 0 : i32
    %c0_i32_0 = arith.constant 0 : i32
    %c0_i32_1 = arith.constant 0 : i32
    return %arg1, %c0_i32, %c0_i32_0 : i32, i32, i32
  }
  func.func @transform_3(%arg0: i32, %arg1: i32) -> (i32, i32, i32) {
    %c0_i32 = arith.constant 0 : i32
    %c0_i32_0 = arith.constant 0 : i32
    %c0_i32_1 = arith.constant 0 : i32
    return %arg1, %c0_i32, %c0_i32_0 : i32, i32, i32
  }
  func.func @transform_4(%arg0: i32, %arg1: i32) -> (i32, i32, i32) {
    %c0_i32 = arith.constant 0 : i32
    %c0_i32_0 = arith.constant 0 : i32
    %c0_i32_1 = arith.constant 0 : i32
    return %arg1, %c0_i32, %c0_i32_0 : i32, i32, i32
  }
  func.func @transform_5(%arg0: i32, %arg1: i32) -> (i32, i32, i32) {
    %c0_i32 = arith.constant 0 : i32
    %c0_i32_0 = arith.constant 0 : i32
    %c0_i32_1 = arith.constant 0 : i32
    return %arg1, %c0_i32, %c0_i32_0 : i32, i32, i32
  }
  func.func @transform_6(%arg0: i32, %arg1: i32) -> (i32, i32, i32) {
    %c0_i32 = arith.constant 0 : i32
    %c0_i32_0 = arith.constant 0 : i32
    %c0_i32_1 = arith.constant 0 : i32
    return %arg1, %c0_i32, %c0_i32_0 : i32, i32, i32
  }
  func.func @transform_7(%arg0: i32, %arg1: i32) -> (i32, i32, i32) {
    %c0_i32 = arith.constant 0 : i32
    %c0_i32_0 = arith.constant 0 : i32
    %c0_i32_1 = arith.constant 0 : i32
    return %arg1, %c0_i32, %c0_i32_0 : i32, i32, i32
  }
  func.func @transform_8(%arg0: i32, %arg1: i32) -> (i32, i32, i32) {
    %c0_i32 = arith.constant 0 : i32
    %c0_i32_0 = arith.constant 0 : i32
    %c0_i32_1 = arith.constant 0 : i32
    return %arg1, %c0_i32, %c0_i32_0 : i32, i32, i32
  }
  func.func @transform_9(%arg0: i32, %arg1: i32) -> (i32, i32, i32) {
    %c0_i32 = arith.constant 0 : i32
    %c0_i32_0 = arith.constant 0 : i32
    %c0_i32_1 = arith.constant 0 : i32
    return %arg1, %c0_i32, %c0_i32_0 : i32, i32, i32
  }
  func.func @transform_10(%arg0: i32, %arg1: i32) -> (i32, i32, i32) {
    %c0_i32 = arith.constant 0 : i32
    %c0_i32_0 = arith.constant 0 : i32
    %c0_i32_1 = arith.constant 0 : i32
    return %arg1, %c0_i32, %c0_i32_0 : i32, i32, i32
  }
  func.func @transform_11(%arg0: i32, %arg1: i32) -> (i32, i32, i32) {
    %c0_i32 = arith.constant 0 : i32
    %c0_i32_0 = arith.constant 0 : i32
    %c0_i32_1 = arith.constant 0 : i32
    return %arg1, %c0_i32, %c0_i32_0 : i32, i32, i32
  }
  func.func @transform_12(%arg0: i32, %arg1: i32) -> (i32, i32, i32) {
    %c0_i32 = arith.constant 0 : i32
    %c0_i32_0 = arith.constant 0 : i32
    %c0_i32_1 = arith.constant 0 : i32
    return %arg1, %c0_i32, %c0_i32_0 : i32, i32, i32
  }
  func.func @transform_13(%arg0: i32, %arg1: i32) -> (i32, i32, i32) {
    %c0_i32 = arith.constant 0 : i32
    %c0_i32_0 = arith.constant 0 : i32
    %c0_i32_1 = arith.constant 0 : i32
    return %arg1, %c0_i32, %c0_i32_0 : i32, i32, i32
  }
  func.func @transform_14(%arg0: i32, %arg1: i32) -> (i32, i32, i32) {
    %c0_i32 = arith.constant 0 : i32
    %c0_i32_0 = arith.constant 0 : i32
    %c0_i32_1 = arith.constant 0 : i32
    return %arg0, %c0_i32, %c0_i32_0 : i32, i32, i32
  }
}

</mosaic_0001>

<llo_original>
// kernel: tpu_custom_call.1
$region0: #{tpu_custom_call.1}
  #allocation0 [shape = 'u32[]', space=smem, size = 0x4, offset = 0x4, fixed_abs, tag = 'smem constant byte address 0x4 - core index']
  #allocation1 [shape = 'u32[72,128]{1,0:T(1,128)}', space=vmem, size = 0x9000, scoped, tag = 'internal scratch']
  #allocation2 [shape = 'f32[2,8,256]{2,1,0:T(8,128)}', space=vmem, size = 0x4000, scoped, tag = 'scratch operand']
  %s0 = inlined_call_operand.hbm [shape: f32[2,8,256], index: 0, kind: input, shape index: {}]
  %s1 = inlined_call_operand.hbm [shape: f32[2,8], index: 1, kind: input, shape index: {}]
  %s2 = inlined_call_operand.hbm [shape: bf16[2,256,768], index: 2, kind: input, shape index: {}]
  %s3 = inlined_call_operand.hbm [shape: f32[2,1,768], index: 3, kind: input, shape index: {}]
  %s4 = inlined_call_operand.hbm [shape: bf16[2,256,256], index: 4, kind: input, shape index: {}]
  %s5 = inlined_call_operand.hbm [shape: f32[2,1,256], index: 5, kind: input, shape index: {}]
  %s6 = inlined_call_operand.hbm [shape: f32[2,1,256], index: 6, kind: input, shape index: {}]
  %s7 = inlined_call_operand.hbm [shape: f32[2,1,256], index: 7, kind: input, shape index: {}]
  %s8 = inlined_call_operand.hbm [shape: bf16[2,256,512], index: 8, kind: input, shape index: {}]
  %s9 = inlined_call_operand.vmem [shape: f32[2,1,512], index: 9, kind: input, shape index: {}]
  %s10 = inlined_call_operand.hbm [shape: bf16[2,512,256], index: 10, kind: input, shape index: {}]
  %s11 = inlined_call_operand.hbm [shape: f32[2,1,256], index: 11, kind: input, shape index: {}]
  %s12 = inlined_call_operand.hbm [shape: f32[2,1,256], index: 12, kind: input, shape index: {}]
  %s13 = inlined_call_operand.vmem [shape: f32[2,1,256], index: 13, kind: input, shape index: {}]
  %s14 = inlined_call_operand.hbm [shape: f32[2,8,256], index: 14, kind: output, shape index: {}]
  %s15 = sld [smem:[#allocation0]]
  $region145: #{tpu_custom_call.1} parent=0
    _
  %s17 = ssub.s32 1, %s15
  %s18 = scalar_select 0, %s17, %s15
  $region1: #{tpu_custom_call.1} parent=0
    #allocation3 [shape = 'u8[16384]{0}', space=vmem, size = 0x4000, scoped, tag = 'input window, operand 0, single buffered']
    #allocation4 [shape = 's32[2]{0}', space=sflag, size = 0x8, scoped, tag = 'scoped memory for tpu_custom_call.1']
    #allocation5 [shape = 's32[2]{0}', space=sflag, size = 0x8, scoped, tag = 'scoped memory for tpu_custom_call.1']
    #allocation6 [shape = 'u8[1024]{0}', space=vmem, size = 0x400, scoped, tag = 'input window, operand 1, single buffered']
    #allocation7 [shape = 's32[1]{0}', space=sflag, size = 0x4, scoped, tag = 'scoped memory for tpu_custom_call.1']
    #allocation8 [shape = 'u8[786432]{0}', space=vmem, size = 0xc0000, scoped, tag = 'input window, operand 2']
    #allocation9 [shape = 'u8[6144]{0}', space=vmem, size = 0x1800, scoped, tag = 'input window, operand 3']
    #allocation10 [shape = 'u8[262144]{0}', space=vmem, size = 0x40000, scoped, tag = 'input window, operand 4']
    #allocation11 [shape = 'u8[2048]{0}', space=vmem, size = 0x800, scoped, tag = 'input window, operand 5']
    #allocation12 [shape = 'u8[2048]{0}', space=vmem, size = 0x800, scoped, tag = 'input window, operand 6']
    #allocation13 [shape = 'u8[2048]{0}', space=vmem, size = 0x800, scoped, tag = 'input window, operand 7']
    #allocation14 [shape = 'u8[524288]{0}', space=vmem, size = 0x80000, scoped, tag = 'input window, operand 8']
    #allocation15 [shape = 'u8[524288]{0}', space=vmem, size = 0x80000, scoped, tag = 'input window, operand 10']
    #allocation16 [shape = 'u8[2048]{0}', space=vmem, size = 0x800, scoped, tag = 'input window, operand 11']
    #allocation17 [shape = 'u8[2048]{0}', space=vmem, size = 0x800, scoped, tag = 'input window, operand 12']
    #allocation18 [shape = 'u8[16384]{0}', space=vmem, size = 0x4000, scoped, tag = 'output window, operand 0, single buffered']
    %19 = vsyncpa [#allocation4], 0
    %20 = vsyncpa [#allocation7], 0
    %21 = vsyncpa [#allocation5], 0
    loop: start=0, step=1, limit=4
    $region2: #{tpu_custom_call.1} parent=1 // loop_pre_header
      _
    $region3: #{tpu_custom_call.1} parent=1 // loop_header
      %s23 = sphi 0, %s27
      %p24 = scmp.ge.s32.totalorder %s23, 4
      %s30 = sphi 0, %s42
      %s31 = sphi 0, %s38
      %s32 = sphi 0, %s30
      %s33 = sphi 0, %s31
      %s34 = sphi 0, %s32
      %s35 = sphi 0, %s33
      %s45 = sphi 0, %s47
      %s48 = sphi 0, %s45
      %s49 = sphi 0, %s48
      %s65 = sphi 0, %s49
      %s71 = sphi 0, %s73
      %s74 = sphi 0, %s71
      %s75 = sphi 0, %s74
      %s91 = sphi 0, %s75
      %s97 = sphi 0, %s99
      %s100 = sphi 0, %s97
      %s101 = sphi 0, %s100
      %s117 = sphi 0, %s101
      %s123 = sphi 0, %s125
      %s126 = sphi 0, %s123
      %s127 = sphi 0, %s126
      %s143 = sphi 0, %s127
      %s149 = sphi 0, %s151
      %s152 = sphi 0, %s149
      %s153 = sphi 0, %s152
      %s169 = sphi 0, %s153
      %s175 = sphi 0, %s177
      %s178 = sphi 0, %s175
      %s179 = sphi 0, %s178
      %s195 = sphi 0, %s179
      %s201 = sphi 0, %s203
      %s204 = sphi 0, %s201
      %s205 = sphi 0, %s204
      %s221 = sphi 0, %s205
      %s227 = sphi 0, %s229
      %s230 = sphi 0, %s227
      %s231 = sphi 0, %s230
      %s247 = sphi 0, %s231
      %s253 = sphi 0, %s255
      %s256 = sphi 0, %s253
      %s257 = sphi 0, %s256
      %s273 = sphi 0, %s257
      %s279 = sphi 0, %s281
      %s282 = sphi 0, %s279
      %s283 = sphi 0, %s282
      %s299 = sphi 0, %s283
      %s305 = sphi 0, %s307
      %s308 = sphi 0, %s305
      %s309 = sphi 0, %s308
      %s325 = sphi 0, %s309
      %s331 = sphi 0, %s333
      %s334 = sphi 0, %s331
      %s335 = sphi 0, %s334
      %s351 = sphi 0, %s335
      %s357 = sphi 0, %s359
      %s360 = sphi 0, %s357
      %s361 = sphi 0, %s360
      %s377 = sphi 0, %s361
      %s383 = sphi 0, %s385
      %s386 = sphi 0, %s383
      %s387 = sphi 0, %s386
      %s403 = sphi 0, %s387
      %s409 = sphi 0, %s411
      %s412 = sphi 0, %s409
      %s413 = sphi 0, %s412
      %s429 = sphi 0, %s413
    $region4: #{tpu_custom_call.1} parent=1 // loop_header_branch
      %26 = sbr.rel (%p24) target = $region8
    $region5: #{tpu_custom_call.1} parent=1 // loop_body
      %s28 = ssub.s32 %s23, 1
      %s29 = ssub.s32 %s23, 2
      %s36 = sadd.s32 1, %s31
      %p37 = scmp.ge.s32.totalorder %s36, 2
      %s38 = scalar_select %p37, 0, %s36
      %s39 = sadd.s32 1, %s30
      %s40 = scalar_select %p37, %s39, %s30
      %p41 = scmp.ge.s32.totalorder %s40, 1
      %s42 = scalar_select %p41, 0, %s40
      %s43 = ssub.s32 %s30, %s42
      %p44 = scmp.eq.s32.totalorder %s43, 0
      %s46 = sadd.s32 %s45, 1
      %s47 = scalar_select %p44, %s45, %s46
      %p50 = pneg %p44
      %p51 = scmp.eq.s32.totalorder %s23, 1
      %p52 = por %p50, %p51
      %p53 = scmp.ne.s32.totalorder %s45, %s48
      %p54 = scmp.eq.s32.totalorder %s23, 0
      %p55 = por %p53, %p54
      %p56 = scmp.ne.s32.totalorder %s45, %s48
      %p57 = scmp.eq.s32.totalorder %s28, 1
      %p58 = por %p56, %p57
      %p59 = scmp.ne.s32.totalorder %s48, %s49
      %p60 = scmp.eq.s32.totalorder %s28, 0
      %p61 = por %p59, %p60
      %p62 = scmp.ne.s32.totalorder %s48, %s49
      %p63 = scmp.eq.s32.totalorder %s29, 1
      %p64 = por %p62, %p63
      %p66 = scmp.ne.s32.totalorder %s49, %s65
      %p67 = scmp.eq.s32.totalorder %s29, 0
      %p68 = por %p66, %p67
      %s69 = ssub.s32 %s30, %s42
      %p70 = scmp.eq.s32.totalorder %s69, 0
      %s72 = sadd.s32 %s71, 1
      %s73 = scalar_select %p70, %s71, %s72
      %p76 = pneg %p70
      %p77 = scmp.eq.s32.totalorder %s23, 1
      %p78 = por %p76, %p77
      %p79 = scmp.ne.s32.totalorder %s71, %s74
      %p80 = scmp.eq.s32.totalorder %s23, 0
      %p81 = por %p79, %p80
      %p82 = scmp.ne.s32.totalorder %s71, %s74
      %p83 = scmp.eq.s32.totalorder %s28, 1
      %p84 = por %p82, %p83
      %p85 = scmp.ne.s32.totalorder %s74, %s75
      %p86 = scmp.eq.s32.totalorder %s28, 0
      %p87 = por %p85, %p86
      %p88 = scmp.ne.s32.totalorder %s74, %s75
      %p89 = scmp.eq.s32.totalorder %s29, 1
      %p90 = por %p88, %p89
      %p92 = scmp.ne.s32.totalorder %s75, %s91
      %p93 = scmp.eq.s32.totalorder %s29, 0
      %p94 = por %p92, %p93
      %s95 = ssub.s32 %s31, %s38
      %p96 = scmp.eq.s32.totalorder %s95, 0
      %s98 = sadd.s32 %s97, 1
      %s99 = scalar_select %p96, %s97, %s98
      %p102 = pneg %p96
      %p103 = scmp.eq.s32.totalorder %s23, 1
      %p104 = por %p102, %p103
      %p105 = scmp.ne.s32.totalorder %s97, %s100
      %p106 = scmp.eq.s32.totalorder %s23, 0
      %p107 = por %p105, %p106
      %p108 = scmp.ne.s32.totalorder %s97, %s100
      %p109 = scmp.eq.s32.totalorder %s28, 1
      %p110 = por %p108, %p109
      %p111 = scmp.ne.s32.totalorder %s100, %s101
      %p112 = scmp.eq.s32.totalorder %s28, 0
      %p113 = por %p111, %p112
      %p114 = scmp.ne.s32.totalorder %s100, %s101
      %p115 = scmp.eq.s32.totalorder %s29, 1
      %p116 = por %p114, %p115
      %p118 = scmp.ne.s32.totalorder %s101, %s117
      %p119 = scmp.eq.s32.totalorder %s29, 0
      %p120 = por %p118, %p119
      %s121 = ssub.s32 %s31, %s38
      %p122 = scmp.eq.s32.totalorder %s121, 0
      %s124 = sadd.s32 %s123, 1
      %s125 = scalar_select %p122, %s123, %s124
      %p128 = pneg %p122
      %p129 = scmp.eq.s32.totalorder %s23, 1
      %p130 = por %p128, %p129
      %p131 = scmp.ne.s32.totalorder %s123, %s126
      %p132 = scmp.eq.s32.totalorder %s23, 0
      %p133 = por %p131, %p132
      %p134 = scmp.ne.s32.totalorder %s123, %s126
      %p135 = scmp.eq.s32.totalorder %s28, 1
      %p136 = por %p134, %p135
      %p137 = scmp.ne.s32.totalorder %s126, %s127
      %p138 = scmp.eq.s32.totalorder %s28, 0
      %p139 = por %p137, %p138
      %p140 = scmp.ne.s32.totalorder %s126, %s127
      %p141 = scmp.eq.s32.totalorder %s29, 1
      %p142 = por %p140, %p141
      %p144 = scmp.ne.s32.totalorder %s127, %s143
      %p145 = scmp.eq.s32.totalorder %s29, 0
      %p146 = por %p144, %p145
      %s147 = ssub.s32 %s31, %s38
      %p148 = scmp.eq.s32.totalorder %s147, 0
      %s150 = sadd.s32 %s149, 1
      %s151 = scalar_select %p148, %s149, %s150
      %p154 = pneg %p148
      %p155 = scmp.eq.s32.totalorder %s23, 1
      %p156 = por %p154, %p155
      %p157 = scmp.ne.s32.totalorder %s149, %s152
      %p158 = scmp.eq.s32.totalorder %s23, 0
      %p159 = por %p157, %p158
      %p160 = scmp.ne.s32.totalorder %s149, %s152
      %p161 = scmp.eq.s32.totalorder %s28, 1
      %p162 = por %p160, %p161
      %p163 = scmp.ne.s32.totalorder %s152, %s153
      %p164 = scmp.eq.s32.totalorder %s28, 0
      %p165 = por %p163, %p164
      %p166 = scmp.ne.s32.totalorder %s152, %s153
      %p167 = scmp.eq.s32.totalorder %s29, 1
      %p168 = por %p166, %p167
      %p170 = scmp.ne.s32.totalorder %s153, %s169
      %p171 = scmp.eq.s32.totalorder %s29, 0
      %p172 = por %p170, %p171
      %s173 = ssub.s32 %s31, %s38
      %p174 = scmp.eq.s32.totalorder %s173, 0
      %s176 = sadd.s32 %s175, 1
      %s177 = scalar_select %p174, %s175, %s176
      %p180 = pneg %p174
      %p181 = scmp.eq.s32.totalorder %s23, 1
      %p182 = por %p180, %p181
      %p183 = scmp.ne.s32.totalorder %s175, %s178
      %p184 = scmp.eq.s32.totalorder %s23, 0
      %p185 = por %p183, %p184
      %p186 = scmp.ne.s32.totalorder %s175, %s178
      %p187 = scmp.eq.s32.totalorder %s28, 1
      %p188 = por %p186, %p187
      %p189 = scmp.ne.s32.totalorder %s178, %s179
      %p190 = scmp.eq.s32.totalorder %s28, 0
      %p191 = por %p189, %p190
      %p192 = scmp.ne.s32.totalorder %s178, %s179
      %p193 = scmp.eq.s32.totalorder %s29, 1
      %p194 = por %p192, %p193
      %p196 = scmp.ne.s32.totalorder %s179, %s195
      %p197 = scmp.eq.s32.totalorder %s29, 0
      %p198 = por %p196, %p197
      %s199 = ssub.s32 %s31, %s38
      %p200 = scmp.eq.s32.totalorder %s199, 0
      %s202 = sadd.s32 %s201, 1
      %s203 = scalar_select %p200, %s201, %s202
      %p206 = pneg %p200
      %p207 = scmp.eq.s32.totalorder %s23, 1
      %p208 = por %p206, %p207
      %p209 = scmp.ne.s32.totalorder %s201, %s204
      %p210 = scmp.eq.s32.totalorder %s23, 0
      %p211 = por %p209, %p210
      %p212 = scmp.ne.s32.totalorder %s201, %s204
      %p213 = scmp.eq.s32.totalorder %s28, 1
      %p214 = por %p212, %p213
      %p215 = scmp.ne.s32.totalorder %s204, %s205
      %p216 = scmp.eq.s32.totalorder %s28, 0
      %p217 = por %p215, %p216
      %p218 = scmp.ne.s32.totalorder %s204, %s205
      %p219 = scmp.eq.s32.totalorder %s29, 1
      %p220 = por %p218, %p219
      %p222 = scmp.ne.s32.totalorder %s205, %s221
      %p223 = scmp.eq.s32.totalorder %s29, 0
      %p224 = por %p222, %p223
      %s225 = ssub.s32 %s31, %s38
      %p226 = scmp.eq.s32.totalorder %s225, 0
      %s228 = sadd.s32 %s227, 1
      %s229 = scalar_select %p226, %s227, %s228
      %p232 = pneg %p226
      %p233 = scmp.eq.s32.totalorder %s23, 1
      %p234 = por %p232, %p233
      %p235 = scmp.ne.s32.totalorder %s227, %s230
      %p236 = scmp.eq.s32.totalorder %s23, 0
      %p237 = por %p235, %p236
      %p238 = scmp.ne.s32.totalorder %s227, %s230
      %p239 = scmp.eq.s32.totalorder %s28, 1
      %p240 = por %p238, %p239
      %p241 = scmp.ne.s32.totalorder %s230, %s231
      %p242 = scmp.eq.s32.totalorder %s28, 0
      %p243 = por %p241, %p242
      %p244 = scmp.ne.s32.totalorder %s230, %s231
      %p245 = scmp.eq.s32.totalorder %s29, 1
      %p246 = por %p244, %p245
      %p248 = scmp.ne.s32.totalorder %s231, %s247
      %p249 = scmp.eq.s32.totalorder %s29, 0
      %p250 = por %p248, %p249
      %s251 = ssub.s32 %s31, %s38
      %p252 = scmp.eq.s32.totalorder %s251, 0
      %s254 = sadd.s32 %s253, 1
      %s255 = scalar_select %p252, %s253, %s254
      %p258 = pneg %p252
      %p259 = scmp.eq.s32.totalorder %s23, 1
      %p260 = por %p258, %p259
      %p261 = scmp.ne.s32.totalorder %s253, %s256
      %p262 = scmp.eq.s32.totalorder %s23, 0
      %p263 = por %p261, %p262
      %p264 = scmp.ne.s32.totalorder %s253, %s256
      %p265 = scmp.eq.s32.totalorder %s28, 1
      %p266 = por %p264, %p265
      %p267 = scmp.ne.s32.totalorder %s256, %s257
      %p268 = scmp.eq.s32.totalorder %s28, 0
      %p269 = por %p267, %p268
      %p270 = scmp.ne.s32.totalorder %s256, %s257
      %p271 = scmp.eq.s32.totalorder %s29, 1
      %p272 = por %p270, %p271
      %p274 = scmp.ne.s32.totalorder %s257, %s273
      %p275 = scmp.eq.s32.totalorder %s29, 0
      %p276 = por %p274, %p275
      %s277 = ssub.s32 %s31, %s38
      %p278 = scmp.eq.s32.totalorder %s277, 0
      %s280 = sadd.s32 %s279, 1
      %s281 = scalar_select %p278, %s279, %s280
      %p284 = pneg %p278
      %p285 = scmp.eq.s32.totalorder %s23, 1
      %p286 = por %p284, %p285
      %p287 = scmp.ne.s32.totalorder %s279, %s282
      %p288 = scmp.eq.s32.totalorder %s23, 0
      %p289 = por %p287, %p288
      %p290 = scmp.ne.s32.totalorder %s279, %s282
      %p291 = scmp.eq.s32.totalorder %s28, 1
      %p292 = por %p290, %p291
      %p293 = scmp.ne.s32.totalorder %s282, %s283
      %p294 = scmp.eq.s32.totalorder %s28, 0
      %p295 = por %p293, %p294
      %p296 = scmp.ne.s32.totalorder %s282, %s283
      %p297 = scmp.eq.s32.totalorder %s29, 1
      %p298 = por %p296, %p297
      %p300 = scmp.ne.s32.totalorder %s283, %s299
      %p301 = scmp.eq.s32.totalorder %s29, 0
      %p302 = por %p300, %p301
      %s303 = ssub.s32 %s31, %s38
      %p304 = scmp.eq.s32.totalorder %s303, 0
      %s306 = sadd.s32 %s305, 1
      %s307 = scalar_select %p304, %s305, %s306
      %p310 = pneg %p304
      %p311 = scmp.eq.s32.totalorder %s23, 1
      %p312 = por %p310, %p311
      %p313 = scmp.ne.s32.totalorder %s305, %s308
      %p314 = scmp.eq.s32.totalorder %s23, 0
      %p315 = por %p313, %p314
      %p316 = scmp.ne.s32.totalorder %s305, %s308
      %p317 = scmp.eq.s32.totalorder %s28, 1
      %p318 = por %p316, %p317
      %p319 = scmp.ne.s32.totalorder %s308, %s309
      %p320 = scmp.eq.s32.totalorder %s28, 0
      %p321 = por %p319, %p320
      %p322 = scmp.ne.s32.totalorder %s308, %s309
      %p323 = scmp.eq.s32.totalorder %s29, 1
      %p324 = por %p322, %p323
      %p326 = scmp.ne.s32.totalorder %s309, %s325
      %p327 = scmp.eq.s32.totalorder %s29, 0
      %p328 = por %p326, %p327
      %s329 = ssub.s32 %s31, %s38
      %p330 = scmp.eq.s32.totalorder %s329, 0
      %s332 = sadd.s32 %s331, 1
      %s333 = scalar_select %p330, %s331, %s332
      %p336 = pneg %p330
      %p337 = scmp.eq.s32.totalorder %s23, 1
      %p338 = por %p336, %p337
      %p339 = scmp.ne.s32.totalorder %s331, %s334
      %p340 = scmp.eq.s32.totalorder %s23, 0
      %p341 = por %p339, %p340
      %p342 = scmp.ne.s32.totalorder %s331, %s334
      %p343 = scmp.eq.s32.totalorder %s28, 1
      %p344 = por %p342, %p343
      %p345 = scmp.ne.s32.totalorder %s334, %s335
      %p346 = scmp.eq.s32.totalorder %s28, 0
      %p347 = por %p345, %p346
      %p348 = scmp.ne.s32.totalorder %s334, %s335
      %p349 = scmp.eq.s32.totalorder %s29, 1
      %p350 = por %p348, %p349
      %p352 = scmp.ne.s32.totalorder %s335, %s351
      %p353 = scmp.eq.s32.totalorder %s29, 0
      %p354 = por %p352, %p353
      %s355 = ssub.s32 %s31, %s38
      %p356 = scmp.eq.s32.totalorder %s355, 0
      %s358 = sadd.s32 %s357, 1
      %s359 = scalar_select %p356, %s357, %s358
      %p362 = pneg %p356
      %p363 = scmp.eq.s32.totalorder %s23, 1
      %p364 = por %p362, %p363
      %p365 = scmp.ne.s32.totalorder %s357, %s360
      %p366 = scmp.eq.s32.totalorder %s23, 0
      %p367 = por %p365, %p366
      %p368 = scmp.ne.s32.totalorder %s357, %s360
      %p369 = scmp.eq.s32.totalorder %s28, 1
      %p370 = por %p368, %p369
      %p371 = scmp.ne.s32.totalorder %s360, %s361
      %p372 = scmp.eq.s32.totalorder %s28, 0
      %p373 = por %p371, %p372
      %p374 = scmp.ne.s32.totalorder %s360, %s361
      %p375 = scmp.eq.s32.totalorder %s29, 1
      %p376 = por %p374, %p375
      %p378 = scmp.ne.s32.totalorder %s361, %s377
      %p379 = scmp.eq.s32.totalorder %s29, 0
      %p380 = por %p378, %p379
      %s381 = ssub.s32 %s31, %s38
      %p382 = scmp.eq.s32.totalorder %s381, 0
      %s384 = sadd.s32 %s383, 1
      %s385 = scalar_select %p382, %s383, %s384
      %p388 = pneg %p382
      %p389 = scmp.eq.s32.totalorder %s23, 1
      %p390 = por %p388, %p389
      %p391 = scmp.ne.s32.totalorder %s383, %s386
      %p392 = scmp.eq.s32.totalorder %s23, 0
      %p393 = por %p391, %p392
      %p394 = scmp.ne.s32.totalorder %s383, %s386
      %p395 = scmp.eq.s32.totalorder %s28, 1
      %p396 = por %p394, %p395
      %p397 = scmp.ne.s32.totalorder %s386, %s387
      %p398 = scmp.eq.s32.totalorder %s28, 0
      %p399 = por %p397, %p398
      %p400 = scmp.ne.s32.totalorder %s386, %s387
      %p401 = scmp.eq.s32.totalorder %s29, 1
      %p402 = por %p400, %p401
      %p404 = scmp.ne.s32.totalorder %s387, %s403
      %p405 = scmp.eq.s32.totalorder %s29, 0
      %p406 = por %p404, %p405
      %s407 = ssub.s32 %s30, %s42
      %p408 = scmp.eq.s32.totalorder %s407, 0
      %s410 = sadd.s32 %s409, 1
      %s411 = scalar_select %p408, %s409, %s410
      %p414 = pneg %p408
      %p415 = scmp.eq.s32.totalorder %s23, 1
      %p416 = por %p414, %p415
      %p417 = scmp.ne.s32.totalorder %s409, %s412
      %p418 = scmp.eq.s32.totalorder %s23, 0
      %p419 = por %p417, %p418
      %p420 = scmp.ne.s32.totalorder %s409, %s412
      %p421 = scmp.eq.s32.totalorder %s28, 1
      %p422 = por %p420, %p421
      %p423 = scmp.ne.s32.totalorder %s412, %s413
      %p424 = scmp.eq.s32.totalorder %s28, 0
      %p425 = por %p423, %p424
      %p426 = scmp.ne.s32.totalorder %s412, %s413
      %p427 = scmp.eq.s32.totalorder %s29, 1
      %p428 = por %p426, %p427
      %p430 = scmp.ne.s32.totalorder %s413, %s429
      %p431 = scmp.eq.s32.totalorder %s29, 0
      %p432 = por %p430, %p431
      %p433 = scmp.le.s32.totalorder 1, %s23
      %p434 = scmp.lt.s32.totalorder %s23, 3
      %p435 = pnand %p433, %p434
      %p436 = pneg %p435
      // Predicated region
      $region9: #{tpu_custom_call.1} parent=5 // pred_check
        _
      $region10: #{tpu_custom_call.1} parent=5 // pred_check_branch
        %438 = sbr.rel (%p435) target = $region12
      $region11: #{tpu_custom_call.1} parent=5 // pred_region
        %s439 = ssub.s32 %s23, 1
        // Predicated region
        $region13: #{tpu_custom_call.1} parent=11 // pred_check
          %p440 = pneg %p61
        $region14: #{tpu_custom_call.1} parent=11 // pred_check_branch
          %442 = sbr.rel (%p440) target = $region16
        $region15: #{tpu_custom_call.1} parent=11 // pred_region
          %s443 = smul.u32 2, %s32
          %445 = vsyncadd [#allocation4], 0
          %s446 = smul.addr %s443, 2
          %s447 = smul.addr %s446, 8
          %s448 = scalar_lea.hbm %s0, %s447
          %s449 = sshll.u32 %s448, 4
          %s450 = int_to_ptr.hbm [resolvable:$true] %s449
          %s451 = sshll.u32 [#allocation3], 4
          %s452 = int_to_ptr.vmem [resolvable:$true] %s451
          %457 = dma.hbm_to_vmem [thread:$0]  %s450, 512, %s452, [#allocation4], 256, 256, 16
        $region16: #{tpu_custom_call.1} parent=11 // pred_fallthru
          _
        // Predicated region
        $region17: #{tpu_custom_call.1} parent=11 // pred_check
          %p458 = pneg %p87
        $region18: #{tpu_custom_call.1} parent=11 // pred_check_branch
          %460 = sbr.rel (%p458) target = $region20
        $region19: #{tpu_custom_call.1} parent=11 // pred_region
          %462 = vsyncadd [#allocation7], 0
          %s463 = smul.addr %s32, 2
          %s464 = scalar_lea.hbm %s1, %s463
          %s466 = sshll.u32 %s464, 4
          %s467 = int_to_ptr.hbm [resolvable:$true] %s466
          %s468 = sshll.u32 [#allocation6], 4
          %s469 = int_to_ptr.vmem [resolvable:$true] %s468
          %471 = dma.hbm_to_vmem [thread:$0]  %s467, 32, %s469, [#allocation7]
        $region20: #{tpu_custom_call.1} parent=11 // pred_fallthru
          _
      $region12: #{tpu_custom_call.1} parent=5 // pred_fallthru
        _
      %p472 = scmp.lt.s32.totalorder %s23, 2
      // Predicated region
      $region21: #{tpu_custom_call.1} parent=5 // pred_check
        %p473 = pneg %p472
      $region22: #{tpu_custom_call.1} parent=5 // pred_check_branch
        %475 = sbr.rel (%p473) target = $region24
      $region23: #{tpu_custom_call.1} parent=5 // pred_region
        // Predicated region
        $region25: #{tpu_custom_call.1} parent=23 // pred_check
          %p476 = pneg %p107
        $region26: #{tpu_custom_call.1} parent=23 // pred_check_branch
          %478 = sbr.rel (%p476) target = $region28
        $region27: #{tpu_custom_call.1} parent=23 // pred_region
          %s479 = sand.u32 %s23, 1
          %s480 = scalar_lea.sflag [#allocation4], %s479
          %s481 = sand.u32 %s97, 1
          %s482 = smul.addr %s481, 768
          %s483 = scalar_lea.vmem [#allocation8], %s482
          %485 = vsyncadd %s480, 0
          %s486 = smul.addr %s31, 192
          %s487 = smul.addr %s486, 4
          %s488 = scalar_lea.hbm %s2, %s487
          %s489 = sshll.u32 %s488, 4
          %s490 = int_to_ptr.hbm [resolvable:$true] %s489
          %s491 = sshll.u32 %s483, 4
          %s492 = int_to_ptr.vmem [resolvable:$true] %s491
          %497 = dma.hbm_to_vmem [thread:$0]  %s490, 12288, %s492, %s480, 384, 384, 24
        $region28: #{tpu_custom_call.1} parent=23 // pred_fallthru
          _
        // Predicated region
        $region29: #{tpu_custom_call.1} parent=23 // pred_check
          %p498 = pneg %p133
        $region30: #{tpu_custom_call.1} parent=23 // pred_check_branch
          %500 = sbr.rel (%p498) target = $region32
        $region31: #{tpu_custom_call.1} parent=23 // pred_region
          %s501 = sand.u32 %s23, 1
          %s502 = scalar_lea.sflag [#allocation4], %s501
          %s503 = sand.u32 %s123, 1
          %s504 = smul.addr %s503, 6
          %s505 = scalar_lea.vmem [#allocation9], %s504
          %507 = vsyncadd %s502, 0
          %s508 = smul.addr %s31, 6
          %s509 = scalar_lea.hbm %s3, %s508
          %s511 = sshll.u32 %s509, 4
          %s512 = int_to_ptr.hbm [resolvable:$true] %s511
          %s513 = sshll.u32 %s505, 4
          %s514 = int_to_ptr.vmem [resolvable:$true] %s513
          %516 = dma.hbm_to_vmem [thread:$0]  %s512, 96, %s514, %s502
        $region32: #{tpu_custom_call.1} parent=23 // pred_fallthru
          _
        // Predicated region
        $region33: #{tpu_custom_call.1} parent=23 // pred_check
          %p517 = pneg %p159
        $region34: #{tpu_custom_call.1} parent=23 // pred_check_branch
          %519 = sbr.rel (%p517) target = $region36
        $region35: #{tpu_custom_call.1} parent=23 // pred_region
          %s520 = sand.u32 %s23, 1
          %s521 = scalar_lea.sflag [#allocation4], %s520
          %s522 = sand.u32 %s149, 1
          %s523 = smul.addr %s522, 256
          %s524 = scalar_lea.vmem [#allocation10], %s523
          %526 = vsyncadd %s521, 0
          %s527 = smul.addr %s31, 64
          %s528 = smul.addr %s527, 4
          %s529 = scalar_lea.hbm %s4, %s528
          %s530 = sshll.u32 %s529, 4
          %s531 = int_to_ptr.hbm [resolvable:$true] %s530
          %s532 = sshll.u32 %s524, 4
          %s533 = int_to_ptr.vmem [resolvable:$true] %s532
          %538 = dma.hbm_to_vmem [thread:$0]  %s531, 4096, %s533, %s521, 128, 128, 8
        $region36: #{tpu_custom_call.1} parent=23 // pred_fallthru
          _
        // Predicated region
        $region37: #{tpu_custom_call.1} parent=23 // pred_check
          %p539 = pneg %p185
        $region38: #{tpu_custom_call.1} parent=23 // pred_check_branch
          %541 = sbr.rel (%p539) target = $region40
        $region39: #{tpu_custom_call.1} parent=23 // pred_region
          %s542 = sand.u32 %s23, 1
          %s543 = scalar_lea.sflag [#allocation4], %s542
          %s544 = sand.u32 %s175, 1
          %s545 = smul.addr %s544, 2
          %s546 = scalar_lea.vmem [#allocation11], %s545
          %548 = vsyncadd %s543, 0
          %s549 = smul.addr %s31, 2
          %s550 = scalar_lea.hbm %s5, %s549
          %s552 = sshll.u32 %s550, 4
          %s553 = int_to_ptr.hbm [resolvable:$true] %s552
          %s554 = sshll.u32 %s546, 4
          %s555 = int_to_ptr.vmem [resolvable:$true] %s554
          %557 = dma.hbm_to_vmem [thread:$0]  %s553, 32, %s555, %s543
        $region40: #{tpu_custom_call.1} parent=23 // pred_fallthru
          _
        // Predicated region
        $region41: #{tpu_custom_call.1} parent=23 // pred_check
          %p558 = pneg %p211
        $region42: #{tpu_custom_call.1} parent=23 // pred_check_branch
          %560 = sbr.rel (%p558) target = $region44
        $region43: #{tpu_custom_call.1} parent=23 // pred_region
          %s561 = sand.u32 %s23, 1
          %s562 = scalar_lea.sflag [#allocation4], %s561
          %s563 = sand.u32 %s201, 1
          %s564 = smul.addr %s563, 2
          %s565 = scalar_lea.vmem [#allocation12], %s564
          %567 = vsyncadd %s562, 0
          %s568 = smul.addr %s31, 2
          %s569 = scalar_lea.hbm %s6, %s568
          %s571 = sshll.u32 %s569, 4
          %s572 = int_to_ptr.hbm [resolvable:$true] %s571
          %s573 = sshll.u32 %s565, 4
          %s574 = int_to_ptr.vmem [resolvable:$true] %s573
          %576 = dma.hbm_to_vmem [thread:$0]  %s572, 32, %s574, %s562
        $region44: #{tpu_custom_call.1} parent=23 // pred_fallthru
          _
        // Predicated region
        $region45: #{tpu_custom_call.1} parent=23 // pred_check
          %p577 = pneg %p237
        $region46: #{tpu_custom_call.1} parent=23 // pred_check_branch
          %579 = sbr.rel (%p577) target = $region48
        $region47: #{tpu_custom_call.1} parent=23 // pred_region
          %s580 = sand.u32 %s23, 1
          %s581 = scalar_lea.sflag [#allocation4], %s580
          %s582 = sand.u32 %s227, 1
          %s583 = smul.addr %s582, 2
          %s584 = scalar_lea.vmem [#allocation13], %s583
          %586 = vsyncadd %s581, 0
          %s587 = smul.addr %s31, 2
          %s588 = scalar_lea.hbm %s7, %s587
          %s590 = sshll.u32 %s588, 4
          %s591 = int_to_ptr.hbm [resolvable:$true] %s590
          %s592 = sshll.u32 %s584, 4
          %s593 = int_to_ptr.vmem [resolvable:$true] %s592
          %595 = dma.hbm_to_vmem [thread:$0]  %s591, 32, %s593, %s581
        $region48: #{tpu_custom_call.1} parent=23 // pred_fallthru
          _
        // Predicated region
        $region49: #{tpu_custom_call.1} parent=23 // pred_check
          %p596 = pneg %p263
        $region50: #{tpu_custom_call.1} parent=23 // pred_check_branch
          %598 = sbr.rel (%p596) target = $region52
        $region51: #{tpu_custom_call.1} parent=23 // pred_region
          %s599 = sand.u32 %s23, 1
          %s600 = scalar_lea.sflag [#allocation4], %s599
          %s601 = sand.u32 %s253, 1
          %s602 = smul.addr %s601, 512
          %s603 = scalar_lea.vmem [#allocation14], %s602
          %605 = vsyncadd %s600, 0
          %s606 = smul.addr %s31, 128
          %s607 = smul.addr %s606, 4
          %s608 = scalar_lea.hbm %s8, %s607
          %s609 = sshll.u32 %s608, 4
          %s610 = int_to_ptr.hbm [resolvable:$true] %s609
          %s611 = sshll.u32 %s603, 4
          %s612 = int_to_ptr.vmem [resolvable:$true] %s611
          %617 = dma.hbm_to_vmem [thread:$0]  %s610, 8192, %s612, %s600, 256, 256, 16
        $region52: #{tpu_custom_call.1} parent=23 // pred_fallthru
          _
        // Predicated region
        $region53: #{tpu_custom_call.1} parent=23 // pred_check
          %p618 = pneg %p289
        $region54: #{tpu_custom_call.1} parent=23 // pred_check_branch
          %620 = sbr.rel (%p618) target = $region56
        $region55: #{tpu_custom_call.1} parent=23 // pred_region
          %p621 = scmp.lt.s32.totalorder %s31, 1
          %s622 = scalar_select %p621, %s31, 1
          %s623 = smul.addr %s622, 4
          %s624 = scalar_lea.vmem %s9, %s623
        $region56: #{tpu_custom_call.1} parent=23 // pred_fallthru
          _
        // Predicated region
        $region57: #{tpu_custom_call.1} parent=23 // pred_check
          %p625 = pneg %p315
        $region58: #{tpu_custom_call.1} parent=23 // pred_check_branch
          %627 = sbr.rel (%p625) target = $region60
        $region59: #{tpu_custom_call.1} parent=23 // pred_region
          %s628 = sand.u32 %s23, 1
          %s629 = scalar_lea.sflag [#allocation4], %s628
          %s630 = sand.u32 %s305, 1
          %s631 = smul.addr %s630, 512
          %s632 = scalar_lea.vmem [#allocation15], %s631
          %634 = vsyncadd %s629, 0
          %s635 = smul.addr %s31, 128
          %s636 = smul.addr %s635, 4
          %s637 = scalar_lea.hbm %s10, %s636
          %s638 = sshll.u32 %s637, 4
          %s639 = int_to_ptr.hbm [resolvable:$true] %s638
          %s640 = sshll.u32 %s632, 4
          %s641 = int_to_ptr.vmem [resolvable:$true] %s640
          %646 = dma.hbm_to_vmem [thread:$0]  %s639, 8192, %s641, %s629, 128, 128, 8
        $region60: #{tpu_custom_call.1} parent=23 // pred_fallthru
          _
        // Predicated region
        $region61: #{tpu_custom_call.1} parent=23 // pred_check
          %p647 = pneg %p341
        $region62: #{tpu_custom_call.1} parent=23 // pred_check_branch
          %649 = sbr.rel (%p647) target = $region64
        $region63: #{tpu_custom_call.1} parent=23 // pred_region
          %s650 = sand.u32 %s23, 1
          %s651 = scalar_lea.sflag [#allocation4], %s650
          %s652 = sand.u32 %s331, 1
          %s653 = smul.addr %s652, 2
          %s654 = scalar_lea.vmem [#allocation16], %s653
          %656 = vsyncadd %s651, 0
          %s657 = smul.addr %s31, 2
          %s658 = scalar_lea.hbm %s11, %s657
          %s660 = sshll.u32 %s658, 4
          %s661 = int_to_ptr.hbm [resolvable:$true] %s660
          %s662 = sshll.u32 %s654, 4
          %s663 = int_to_ptr.vmem [resolvable:$true] %s662
          %665 = dma.hbm_to_vmem [thread:$0]  %s661, 32, %s663, %s651
        $region64: #{tpu_custom_call.1} parent=23 // pred_fallthru
          _
        // Predicated region
        $region65: #{tpu_custom_call.1} parent=23 // pred_check
          %p666 = pneg %p367
        $region66: #{tpu_custom_call.1} parent=23 // pred_check_branch
          %668 = sbr.rel (%p666) target = $region68
        $region67: #{tpu_custom_call.1} parent=23 // pred_region
          %s669 = sand.u32 %s23, 1
          %s670 = scalar_lea.sflag [#allocation4], %s669
          %s671 = sand.u32 %s357, 1
          %s672 = smul.addr %s671, 2
          %s673 = scalar_lea.vmem [#allocation17], %s672
          %675 = vsyncadd %s670, 0
          %s676 = smul.addr %s31, 2
          %s677 = scalar_lea.hbm %s12, %s676
          %s679 = sshll.u32 %s677, 4
          %s680 = int_to_ptr.hbm [resolvable:$true] %s679
          %s681 = sshll.u32 %s673, 4
          %s682 = int_to_ptr.vmem [resolvable:$true] %s681
          %684 = dma.hbm_to_vmem [thread:$0]  %s680, 32, %s682, %s670
        $region68: #{tpu_custom_call.1} parent=23 // pred_fallthru
          _
        // Predicated region
        $region69: #{tpu_custom_call.1} parent=23 // pred_check
          %p685 = pneg %p393
        $region70: #{tpu_custom_call.1} parent=23 // pred_check_branch
          %687 = sbr.rel (%p685) target = $region72
        $region71: #{tpu_custom_call.1} parent=23 // pred_region
          %p688 = scmp.lt.s32.totalorder %s31, 1
          %s689 = scalar_select %p688, %s31, 1
          %s690 = smul.addr %s689, 2
          %s691 = scalar_lea.vmem %s13, %s690
        $region72: #{tpu_custom_call.1} parent=23 // pred_fallthru
          _
      $region24: #{tpu_custom_call.1} parent=5 // pred_fallthru
        _
      %p692 = scmp.le.s32.totalorder 1, %s23
      %p693 = scmp.lt.s32.totalorder %s23, 3
      %p694 = pnand %p692, %p693
      %p695 = pneg %p694
      // Predicated region
      $region73: #{tpu_custom_call.1} parent=5 // pred_check
        _
      $region74: #{tpu_custom_call.1} parent=5 // pred_check_branch
        %697 = sbr.rel (%p694) target = $region76
      $region75: #{tpu_custom_call.1} parent=5 // pred_region
        %s698 = ssub.s32 %s23, 1
        // Predicated region
        $region77: #{tpu_custom_call.1} parent=75 // pred_check
          %p699 = pneg %p61
        $region78: #{tpu_custom_call.1} parent=75 // pred_check_branch
          %701 = sbr.rel (%p699) target = $region80
        $region79: #{tpu_custom_call.1} parent=75 // pred_region
          %703 = dma.done [#allocation4], 512
        $region80: #{tpu_custom_call.1} parent=75 // pred_fallthru
          _
        // Predicated region
        $region81: #{tpu_custom_call.1} parent=75 // pred_check
          %p704 = pneg %p87
        $region82: #{tpu_custom_call.1} parent=75 // pred_check_branch
          %706 = sbr.rel (%p704) target = $region84
        $region83: #{tpu_custom_call.1} parent=75 // pred_region
          %708 = dma.done [#allocation7], 32
        $region84: #{tpu_custom_call.1} parent=75 // pred_fallthru
          _
        %s709 = sand.u32 %s28, 1
        %s710 = scalar_lea.sflag [#allocation4], %s709
        %s711 = sand.u32 %s100, 1
        %s712 = smul.addr %s711, 768
        %s713 = scalar_lea.vmem [#allocation8], %s712
        // Predicated region
        $region85: #{tpu_custom_call.1} parent=75 // pred_check
          %p714 = pneg %p113
        $region86: #{tpu_custom_call.1} parent=75 // pred_check_branch
          %716 = sbr.rel (%p714) target = $region88
        $region87: #{tpu_custom_call.1} parent=75 // pred_region
          %718 = dma.done %s710, 12288
        $region88: #{tpu_custom_call.1} parent=75 // pred_fallthru
          _
        %s719 = sand.u32 %s28, 1
        %s720 = scalar_lea.sflag [#allocation4], %s719
        %s721 = sand.u32 %s126, 1
        %s722 = smul.addr %s721, 6
        %s723 = scalar_lea.vmem [#allocation9], %s722
        // Predicated region
        $region89: #{tpu_custom_call.1} parent=75 // pred_check
          %p724 = pneg %p139
        $region90: #{tpu_custom_call.1} parent=75 // pred_check_branch
          %726 = sbr.rel (%p724) target = $region92
        $region91: #{tpu_custom_call.1} parent=75 // pred_region
          %728 = dma.done %s720, 96
        $region92: #{tpu_custom_call.1} parent=75 // pred_fallthru
          _
        %s729 = sand.u32 %s28, 1
        %s730 = scalar_lea.sflag [#allocation4], %s729
        %s731 = sand.u32 %s152, 1
        %s732 = smul.addr %s731, 256
        %s733 = scalar_lea.vmem [#allocation10], %s732
        // Predicated region
        $region93: #{tpu_custom_call.1} parent=75 // pred_check
          %p734 = pneg %p165
        $region94: #{tpu_custom_call.1} parent=75 // pred_check_branch
          %736 = sbr.rel (%p734) target = $region96
        $region95: #{tpu_custom_call.1} parent=75 // pred_region
          %738 = dma.done %s730, 4096
        $region96: #{tpu_custom_call.1} parent=75 // pred_fallthru
          _
        %s739 = sand.u32 %s28, 1
        %s740 = scalar_lea.sflag [#allocation4], %s739
        %s741 = sand.u32 %s178, 1
        %s742 = smul.addr %s741, 2
        %s743 = scalar_lea.vmem [#allocation11], %s742
        // Predicated region
        $region97: #{tpu_custom_call.1} parent=75 // pred_check
          %p744 = pneg %p191
        $region98: #{tpu_custom_call.1} parent=75 // pred_check_branch
          %746 = sbr.rel (%p744) target = $region100
        $region99: #{tpu_custom_call.1} parent=75 // pred_region
          %748 = dma.done %s740, 32
        $region100: #{tpu_custom_call.1} parent=75 // pred_fallthru
          _
        %s749 = sand.u32 %s28, 1
        %s750 = scalar_lea.sflag [#allocation4], %s749
        %s751 = sand.u32 %s204, 1
        %s752 = smul.addr %s751, 2
        %s753 = scalar_lea.vmem [#allocation12], %s752
        // Predicated region
        $region101: #{tpu_custom_call.1} parent=75 // pred_check
          %p754 = pneg %p217
        $region102: #{tpu_custom_call.1} parent=75 // pred_check_branch
          %756 = sbr.rel (%p754) target = $region104
        $region103: #{tpu_custom_call.1} parent=75 // pred_region
          %758 = dma.done %s750, 32
        $region104: #{tpu_custom_call.1} parent=75 // pred_fallthru
          _
        %s759 = sand.u32 %s28, 1
        %s760 = scalar_lea.sflag [#allocation4], %s759
        %s761 = sand.u32 %s230, 1
        %s762 = smul.addr %s761, 2
        %s763 = scalar_lea.vmem [#allocation13], %s762
        // Predicated region
        $region105: #{tpu_custom_call.1} parent=75 // pred_check
          %p764 = pneg %p243
        $region106: #{tpu_custom_call.1} parent=75 // pred_check_branch
          %766 = sbr.rel (%p764) target = $region108
        $region107: #{tpu_custom_call.1} parent=75 // pred_region
          %768 = dma.done %s760, 32
        $region108: #{tpu_custom_call.1} parent=75 // pred_fallthru
          _
        %s769 = sand.u32 %s28, 1
        %s770 = scalar_lea.sflag [#allocation4], %s769
        %s771 = sand.u32 %s256, 1
        %s772 = smul.addr %s771, 512
        %s773 = scalar_lea.vmem [#allocation14], %s772
        // Predicated region
        $region109: #{tpu_custom_call.1} parent=75 // pred_check
          %p774 = pneg %p269
        $region110: #{tpu_custom_call.1} parent=75 // pred_check_branch
          %776 = sbr.rel (%p774) target = $region112
        $region111: #{tpu_custom_call.1} parent=75 // pred_region
          %778 = dma.done %s770, 8192
        $region112: #{tpu_custom_call.1} parent=75 // pred_fallthru
          _
        %s779 = sand.u32 %s28, 1
        %s780 = scalar_lea.sflag [#allocation4], %s779
        %s781 = sand.u32 %s308, 1
        %s782 = smul.addr %s781, 512
        %s783 = scalar_lea.vmem [#allocation15], %s782
        // Predicated region
        $region113: #{tpu_custom_call.1} parent=75 // pred_check
          %p784 = pneg %p321
        $region114: #{tpu_custom_call.1} parent=75 // pred_check_branch
          %786 = sbr.rel (%p784) target = $region116
        $region115: #{tpu_custom_call.1} parent=75 // pred_region
          %788 = dma.done %s780, 8192
        $region116: #{tpu_custom_call.1} parent=75 // pred_fallthru
          _
        %s789 = sand.u32 %s28, 1
        %s790 = scalar_lea.sflag [#allocation4], %s789
        %s791 = sand.u32 %s334, 1
        %s792 = smul.addr %s791, 2
        %s793 = scalar_lea.vmem [#allocation16], %s792
        // Predicated region
        $region117: #{tpu_custom_call.1} parent=75 // pred_check
          %p794 = pneg %p347
        $region118: #{tpu_custom_call.1} parent=75 // pred_check_branch
          %796 = sbr.rel (%p794) target = $region120
        $region119: #{tpu_custom_call.1} parent=75 // pred_region
          %798 = dma.done %s790, 32
        $region120: #{tpu_custom_call.1} parent=75 // pred_fallthru
          _
        %s799 = sand.u32 %s28, 1
        %s800 = scalar_lea.sflag [#allocation4], %s799
        %s801 = sand.u32 %s360, 1
        %s802 = smul.addr %s801, 2
        %s803 = scalar_lea.vmem [#allocation17], %s802
        // Predicated region
        $region121: #{tpu_custom_call.1} parent=75 // pred_check
          %p804 = pneg %p373
        $region122: #{tpu_custom_call.1} parent=75 // pred_check_branch
          %806 = sbr.rel (%p804) target = $region124
        $region123: #{tpu_custom_call.1} parent=75 // pred_region
          %808 = dma.done %s800, 32
        $region124: #{tpu_custom_call.1} parent=75 // pred_fallthru
          _
        %p809 = pneg %p61
        %p810 = pneg %p58
        %p811 = pneg %p87
        %p812 = pneg %p84
        %s813 = sand.u32 %s28, 1
        %s814 = scalar_lea.sflag [#allocation4], %s813
        %s815 = sand.u32 %s100, 1
        %s816 = smul.addr %s815, 768
        %s817 = scalar_lea.vmem [#allocation8], %s816
        %p818 = pneg %p113
        %p819 = pneg %p110
        %s820 = sand.u32 %s28, 1
        %s821 = scalar_lea.sflag [#allocation4], %s820
        %s822 = sand.u32 %s126, 1
        %s823 = smul.addr %s822, 6
        %s824 = scalar_lea.vmem [#allocation9], %s823
        %p825 = pneg %p139
        %p826 = pneg %p136
        %s827 = sand.u32 %s28, 1
        %s828 = scalar_lea.sflag [#allocation4], %s827
        %s829 = sand.u32 %s152, 1
        %s830 = smul.addr %s829, 256
        %s831 = scalar_lea.vmem [#allocation10], %s830
        %p832 = pneg %p165
        %p833 = pneg %p162
        %s834 = sand.u32 %s28, 1
        %s835 = scalar_lea.sflag [#allocation4], %s834
        %s836 = sand.u32 %s178, 1
        %s837 = smul.addr %s836, 2
        %s838 = scalar_lea.vmem [#allocation11], %s837
        %p839 = pneg %p191
        %p840 = pneg %p188
        %s841 = sand.u32 %s28, 1
        %s842 = scalar_lea.sflag [#allocation4], %s841
        %s843 = sand.u32 %s204, 1
        %s844 = smul.addr %s843, 2
        %s845 = scalar_lea.vmem [#allocation12], %s844
        %p846 = pneg %p217
        %p847 = pneg %p214
        %s848 = sand.u32 %s28, 1
        %s849 = scalar_lea.sflag [#allocation4], %s848
        %s850 = sand.u32 %s230, 1
        %s851 = smul.addr %s850, 2
        %s852 = scalar_lea.vmem [#allocation13], %s851
        %p853 = pneg %p243
        %p854 = pneg %p240
        %s855 = sand.u32 %s28, 1
        %s856 = scalar_lea.sflag [#allocation4], %s855
        %s857 = sand.u32 %s256, 1
        %s858 = smul.addr %s857, 512
        %s859 = scalar_lea.vmem [#allocation14], %s858
        %p860 = pneg %p269
        %p861 = pneg %p266
        %p862 = scmp.lt.s32.totalorder %s33, 1
        %s863 = scalar_select %p862, %s33, 1
        %s864 = smul.addr %s863, 4
        %s865 = scalar_lea.vmem %s9, %s864
        %p866 = pneg %p295
        %p867 = pneg %p292
        %s868 = sand.u32 %s28, 1
        %s869 = scalar_lea.sflag [#allocation4], %s868
        %s870 = sand.u32 %s308, 1
        %s871 = smul.addr %s870, 512
        %s872 = scalar_lea.vmem [#allocation15], %s871
        %p873 = pneg %p321
        %p874 = pneg %p318
        %s875 = sand.u32 %s28, 1
        %s876 = scalar_lea.sflag [#allocation4], %s875
        %s877 = sand.u32 %s334, 1
        %s878 = smul.addr %s877, 2
        %s879 = scalar_lea.vmem [#allocation16], %s878
        %p880 = pneg %p347
        %p881 = pneg %p344
        %s882 = sand.u32 %s28, 1
        %s883 = scalar_lea.sflag [#allocation4], %s882
        %s884 = sand.u32 %s360, 1
        %s885 = smul.addr %s884, 2
        %s886 = scalar_lea.vmem [#allocation17], %s885
        %p887 = pneg %p373
        %p888 = pneg %p370
        %p889 = scmp.lt.s32.totalorder %s33, 1
        %s890 = scalar_select %p889, %s33, 1
        %s891 = smul.addr %s890, 2
        %s892 = scalar_lea.vmem %s13, %s891
        %p893 = pneg %p399
        %p894 = pneg %p396
        %p895 = pneg %p425
        %p896 = pneg %p422
        %s897 = smul.u32 2, %s32
        %p898 = scmp.lt.s32.totalorder %s33, 1
        %s899 = scalar_select %p898, %s33, 1
        %s900 = smul.addr %s899, 4
        %s901 = scalar_lea.vmem %s9, %s900
        %p902 = scmp.lt.s32.totalorder %s33, 1
        %s903 = scalar_select %p902, %s33, 1
        %s904 = smul.addr %s903, 2
        %s905 = scalar_lea.vmem %s13, %s904
        %s906 = smul.u32 2, %s32
        %p908 = scmp.eq.s32.totalorder %s33, 0
        // Predicated region
        $region125: #{tpu_custom_call.1} parent=75 // pred_check
          %p909 = pneg %p908
        $region126: #{tpu_custom_call.1} parent=75 // pred_check_branch
          %911 = sbr.rel (%p909) target = $region128
        $region127: #{tpu_custom_call.1} parent=75 // pred_region
          %v912 = vld [vmem:[#allocation3] sm:$0xff]
          %v913 = vld [vmem:[#allocation3 + $0x8] sm:$0xff]
          %v914 = vld [vmem:[#allocation3 + $0x10] sm:$0xff]
          %v915 = vld [vmem:[#allocation3 + $0x18] sm:$0xff]
          %916 = vst [vmem:[#allocation2] sm:$0xff] %v912
          %917 = vst [vmem:[#allocation2 + $0x8] sm:$0xff] %v913
          %918 = vst [vmem:[#allocation2 + $0x10] sm:$0xff] %v914
          %919 = vst [vmem:[#allocation2 + $0x18] sm:$0xff] %v915
        $region128: #{tpu_custom_call.1} parent=75 // pred_fallthru
          _
        %v920 = vld [vmem:[#allocation2] sm:$0xff]
        %v921 = vld [vmem:[#allocation2 + $0x8] sm:$0xff]
        %v922 = vld [vmem:[#allocation2 + $0x10] sm:$0xff]
        %v923 = vld [vmem:[#allocation2 + $0x18] sm:$0xff]
        %v924 = vpack.c.bf16 %v922, %v920
        %v925 = vpack.c.bf16 %v923, %v921
        %v926 = vld [vmem:[%s713] sm:$0xff]
        %v927 = vld [vmem:[%s713 + $0x8] sm:$0xff]
        %v928 = vld [vmem:[%s713 + $0x10] sm:$0xff]
        %v929 = vld [vmem:[%s713 + $0x18] sm:$0xff]
        %v930 = vld [vmem:[%s713 + $0x20] sm:$0xff]
        %v931 = vld [vmem:[%s713 + $0x28] sm:$0xff]
        %v932 = vld [vmem:[%s713 + $0x30] sm:$0xff]
        %v933 = vld [vmem:[%s713 + $0x38] sm:$0xff]
        %v934 = vld [vmem:[%s713 + $0x40] sm:$0xff]
        %v935 = vld [vmem:[%s713 + $0x48] sm:$0xff]
        %v936 = vld [vmem:[%s713 + $0x50] sm:$0xff]
        %v937 = vld [vmem:[%s713 + $0x58] sm:$0xff]
        %v938 = vld [vmem:[%s713 + $0x60] sm:$0xff]
        %v939 = vld [vmem:[%s713 + $0x68] sm:$0xff]
        %v940 = vld [vmem:[%s713 + $0x70] sm:$0xff]
        %v941 = vld [vmem:[%s713 + $0x78] sm:$0xff]
        %v942 = vld [vmem:[%s713 + $0x80] sm:$0xff]
        %v943 = vld [vmem:[%s713 + $0x88] sm:$0xff]
        %v944 = vld [vmem:[%s713 + $0x90] sm:$0xff]
        %v945 = vld [vmem:[%s713 + $0x98] sm:$0xff]
        %v946 = vld [vmem:[%s713 + $0xa0] sm:$0xff]
        %v947 = vld [vmem:[%s713 + $0xa8] sm:$0xff]
        %v948 = vld [vmem:[%s713 + $0xb0] sm:$0xff]
        %v949 = vld [vmem:[%s713 + $0xb8] sm:$0xff]
        %v950 = vld [vmem:[%s713 + $0xc0] sm:$0xff]
        %v951 = vld [vmem:[%s713 + $0xc8] sm:$0xff]
        %v952 = vld [vmem:[%s713 + $0xd0] sm:$0xff]
        %v953 = vld [vmem:[%s713 + $0xd8] sm:$0xff]
        %v954 = vld [vmem:[%s713 + $0xe0] sm:$0xff]
        %v955 = vld [vmem:[%s713 + $0xe8] sm:$0xff]
        %v956 = vld [vmem:[%s713 + $0xf0] sm:$0xff]
        %v957 = vld [vmem:[%s713 + $0xf8] sm:$0xff]
        %v958 = vld [vmem:[%s713 + $0x100] sm:$0xff]
        %v959 = vld [vmem:[%s713 + $0x108] sm:$0xff]
        %v960 = vld [vmem:[%s713 + $0x110] sm:$0xff]
        %v961 = vld [vmem:[%s713 + $0x118] sm:$0xff]
        %v962 = vld [vmem:[%s713 + $0x120] sm:$0xff]
        %v963 = vld [vmem:[%s713 + $0x128] sm:$0xff]
        %v964 = vld [vmem:[%s713 + $0x130] sm:$0xff]
        %v965 = vld [vmem:[%s713 + $0x138] sm:$0xff]
        %v966 = vld [vmem:[%s713 + $0x140] sm:$0xff]
        %v967 = vld [vmem:[%s713 + $0x148] sm:$0xff]
        %v968 = vld [vmem:[%s713 + $0x150] sm:$0xff]
        %v969 = vld [vmem:[%s713 + $0x158] sm:$0xff]
        %v970 = vld [vmem:[%s713 + $0x160] sm:$0xff]
        %v971 = vld [vmem:[%s713 + $0x168] sm:$0xff]
        %v972 = vld [vmem:[%s713 + $0x170] sm:$0xff]
        %v973 = vld [vmem:[%s713 + $0x178] sm:$0xff]
        %v974 = vld [vmem:[%s713 + $0x180] sm:$0xff]
        %v975 = vld [vmem:[%s713 + $0x188] sm:$0xff]
        %v976 = vld [vmem:[%s713 + $0x190] sm:$0xff]
        %v977 = vld [vmem:[%s713 + $0x198] sm:$0xff]
        %v978 = vld [vmem:[%s713 + $0x1a0] sm:$0xff]
        %v979 = vld [vmem:[%s713 + $0x1a8] sm:$0xff]
        %v980 = vld [vmem:[%s713 + $0x1b0] sm:$0xff]
        %v981 = vld [vmem:[%s713 + $0x1b8] sm:$0xff]
        %v982 = vld [vmem:[%s713 + $0x1c0] sm:$0xff]
        %v983 = vld [vmem:[%s713 + $0x1c8] sm:$0xff]
        %v984 = vld [vmem:[%s713 + $0x1d0] sm:$0xff]
        %v985 = vld [vmem:[%s713 + $0x1d8] sm:$0xff]
        %v986 = vld [vmem:[%s713 + $0x1e0] sm:$0xff]
        %v987 = vld [vmem:[%s713 + $0x1e8] sm:$0xff]
        %v988 = vld [vmem:[%s713 + $0x1f0] sm:$0xff]
        %v989 = vld [vmem:[%s713 + $0x1f8] sm:$0xff]
        %v990 = vld [vmem:[%s713 + $0x200] sm:$0xff]
        %v991 = vld [vmem:[%s713 + $0x208] sm:$0xff]
        %v992 = vld [vmem:[%s713 + $0x210] sm:$0xff]
        %v993 = vld [vmem:[%s713 + $0x218] sm:$0xff]
        %v994 = vld [vmem:[%s713 + $0x220] sm:$0xff]
        %v995 = vld [vmem:[%s713 + $0x228] sm:$0xff]
        %v996 = vld [vmem:[%s713 + $0x230] sm:$0xff]
        %v997 = vld [vmem:[%s713 + $0x238] sm:$0xff]
        %v998 = vld [vmem:[%s713 + $0x240] sm:$0xff]
        %v999 = vld [vmem:[%s713 + $0x248] sm:$0xff]
        %v1000 = vld [vmem:[%s713 + $0x250] sm:$0xff]
        %v1001 = vld [vmem:[%s713 + $0x258] sm:$0xff]
        %v1002 = vld [vmem:[%s713 + $0x260] sm:$0xff]
        %v1003 = vld [vmem:[%s713 + $0x268] sm:$0xff]
        %v1004 = vld [vmem:[%s713 + $0x270] sm:$0xff]
        %v1005 = vld [vmem:[%s713 + $0x278] sm:$0xff]
        %v1006 = vld [vmem:[%s713 + $0x280] sm:$0xff]
        %v1007 = vld [vmem:[%s713 + $0x288] sm:$0xff]
        %v1008 = vld [vmem:[%s713 + $0x290] sm:$0xff]
        %v1009 = vld [vmem:[%s713 + $0x298] sm:$0xff]
        %v1010 = vld [vmem:[%s713 + $0x2a0] sm:$0xff]
        %v1011 = vld [vmem:[%s713 + $0x2a8] sm:$0xff]
        %v1012 = vld [vmem:[%s713 + $0x2b0] sm:$0xff]
        %v1013 = vld [vmem:[%s713 + $0x2b8] sm:$0xff]
        %v1014 = vld [vmem:[%s713 + $0x2c0] sm:$0xff]
        %v1015 = vld [vmem:[%s713 + $0x2c8] sm:$0xff]
        %v1016 = vld [vmem:[%s713 + $0x2d0] sm:$0xff]
        %v1017 = vld [vmem:[%s713 + $0x2d8] sm:$0xff]
        %v1018 = vld [vmem:[%s713 + $0x2e0] sm:$0xff]
        %v1019 = vld [vmem:[%s713 + $0x2e8] sm:$0xff]
        %v1020 = vld [vmem:[%s713 + $0x2f0] sm:$0xff]
        %v1021 = vld [vmem:[%s713 + $0x2f8] sm:$0xff]
        %v1022 = vld [vmem:[%s723] sm:$0x3f]
        %v1024 = vperm.slane %v1022, 0
        %v1025 = vperm.slane %v1022, 1
        %v1026 = vperm.slane %v1022, 2
        %v1027 = vperm.slane %v1022, 3
        %v1028 = vperm.slane %v1022, 4
        %v1029 = vperm.slane %v1022, 5
        %v1132 = vunpack.c.l.b16 %v926
        %v1133 = vunpack.c.h.b16 %v926
        %v1134 = vunpack.c.l.b16 %v927
        %v1135 = vunpack.c.h.b16 %v927
        %v1136 = vunpack.c.l.b16 %v928
        %v1137 = vunpack.c.h.b16 %v928
        %v1138 = vunpack.c.l.b16 %v929
        %v1139 = vunpack.c.h.b16 %v929
        %v1140 = vunpack.c.l.b16 %v930
        %v1141 = vunpack.c.h.b16 %v930
        %v1142 = vunpack.c.l.b16 %v931
        %v1143 = vunpack.c.h.b16 %v931
        %v1144 = vunpack.c.l.b16 %v932
        %v1145 = vunpack.c.h.b16 %v932
        %v1146 = vunpack.c.l.b16 %v933
        %v1147 = vunpack.c.h.b16 %v933
        %v1148 = vunpack.c.l.b16 %v934
        %v1149 = vunpack.c.h.b16 %v934
        %v1150 = vunpack.c.l.b16 %v935
        %v1151 = vunpack.c.h.b16 %v935
        %v1152 = vunpack.c.l.b16 %v936
        %v1153 = vunpack.c.h.b16 %v936
        %v1154 = vunpack.c.l.b16 %v937
        %v1155 = vunpack.c.h.b16 %v937
        %v1156 = vunpack.c.l.b16 %v938
        %v1157 = vunpack.c.h.b16 %v938
        %v1158 = vunpack.c.l.b16 %v939
        %v1159 = vunpack.c.h.b16 %v939
        %v1160 = vunpack.c.l.b16 %v940
        %v1161 = vunpack.c.h.b16 %v940
        %v1162 = vunpack.c.l.b16 %v941
        %v1163 = vunpack.c.h.b16 %v941
        %v1164 = vunpack.c.l.b16 %v942
        %v1165 = vunpack.c.h.b16 %v942
        %v1166 = vunpack.c.l.b16 %v943
        %v1167 = vunpack.c.h.b16 %v943
        %v1168 = vunpack.c.l.b16 %v944
        %v1169 = vunpack.c.h.b16 %v944
        %v1170 = vunpack.c.l.b16 %v945
        %v1171 = vunpack.c.h.b16 %v945
        %v1172 = vunpack.c.l.b16 %v946
        %v1173 = vunpack.c.h.b16 %v946
        %v1174 = vunpack.c.l.b16 %v947
        %v1175 = vunpack.c.h.b16 %v947
        %v1176 = vunpack.c.l.b16 %v948
        %v1177 = vunpack.c.h.b16 %v948
        %v1178 = vunpack.c.l.b16 %v949
        %v1179 = vunpack.c.h.b16 %v949
        %v1180 = vunpack.c.l.b16 %v950
        %v1181 = vunpack.c.h.b16 %v950
        %v1182 = vunpack.c.l.b16 %v951
        %v1183 = vunpack.c.h.b16 %v951
        %v1184 = vunpack.c.l.b16 %v952
        %v1185 = vunpack.c.h.b16 %v952
        %v1186 = vunpack.c.l.b16 %v953
        %v1187 = vunpack.c.h.b16 %v953
        %v1188 = vunpack.c.l.b16 %v954
        %v1189 = vunpack.c.h.b16 %v954
        %v1190 = vunpack.c.l.b16 %v955
        %v1191 = vunpack.c.h.b16 %v955
        %v1192 = vunpack.c.l.b16 %v956
        %v1193 = vunpack.c.h.b16 %v956
        %v1194 = vunpack.c.l.b16 %v957
        %v1195 = vunpack.c.h.b16 %v957
        %v1196 = vunpack.c.l.b16 %v958
        %v1197 = vunpack.c.h.b16 %v958
        %v1198 = vunpack.c.l.b16 %v959
        %v1199 = vunpack.c.h.b16 %v959
        %v1200 = vunpack.c.l.b16 %v960
        %v1201 = vunpack.c.h.b16 %v960
        %v1202 = vunpack.c.l.b16 %v961
        %v1203 = vunpack.c.h.b16 %v961
        %v1204 = vunpack.c.l.b16 %v962
        %v1205 = vunpack.c.h.b16 %v962
        %v1206 = vunpack.c.l.b16 %v963
        %v1207 = vunpack.c.h.b16 %v963
        %v1208 = vunpack.c.l.b16 %v964
        %v1209 = vunpack.c.h.b16 %v964
        %v1210 = vunpack.c.l.b16 %v965
        %v1211 = vunpack.c.h.b16 %v965
        %v1212 = vunpack.c.l.b16 %v966
        %v1213 = vunpack.c.h.b16 %v966
        %v1214 = vunpack.c.l.b16 %v967
        %v1215 = vunpack.c.h.b16 %v967
        %v1216 = vunpack.c.l.b16 %v968
        %v1217 = vunpack.c.h.b16 %v968
        %v1218 = vunpack.c.l.b16 %v969
        %v1219 = vunpack.c.h.b16 %v969
        %v1220 = vunpack.c.l.b16 %v970
        %v1221 = vunpack.c.h.b16 %v970
        %v1222 = vunpack.c.l.b16 %v971
        %v1223 = vunpack.c.h.b16 %v971
        %v1224 = vunpack.c.l.b16 %v972
        %v1225 = vunpack.c.h.b16 %v972
        %v1226 = vunpack.c.l.b16 %v973
        %v1227 = vunpack.c.h.b16 %v973
        %v1228 = vunpack.c.l.b16 %v974
        %v1229 = vunpack.c.h.b16 %v974
        %v1230 = vunpack.c.l.b16 %v975
        %v1231 = vunpack.c.h.b16 %v975
        %v1232 = vunpack.c.l.b16 %v976
        %v1233 = vunpack.c.h.b16 %v976
        %v1234 = vunpack.c.l.b16 %v977
        %v1235 = vunpack.c.h.b16 %v977
        %v1236 = vunpack.c.l.b16 %v978
        %v1237 = vunpack.c.h.b16 %v978
        %v1238 = vunpack.c.l.b16 %v979
        %v1239 = vunpack.c.h.b16 %v979
        %v1240 = vunpack.c.l.b16 %v980
        %v1241 = vunpack.c.h.b16 %v980
        %v1242 = vunpack.c.l.b16 %v981
        %v1243 = vunpack.c.h.b16 %v981
        %v1244 = vunpack.c.l.b16 %v982
        %v1245 = vunpack.c.h.b16 %v982
        %v1246 = vunpack.c.l.b16 %v983
        %v1247 = vunpack.c.h.b16 %v983
        %v1248 = vunpack.c.l.b16 %v984
        %v1249 = vunpack.c.h.b16 %v984
        %v1250 = vunpack.c.l.b16 %v985
        %v1251 = vunpack.c.h.b16 %v985
        %v1252 = vunpack.c.l.b16 %v986
        %v1253 = vunpack.c.h.b16 %v986
        %v1254 = vunpack.c.l.b16 %v987
        %v1255 = vunpack.c.h.b16 %v987
        %v1256 = vunpack.c.l.b16 %v988
        %v1257 = vunpack.c.h.b16 %v988
        %v1258 = vunpack.c.l.b16 %v989
        %v1259 = vunpack.c.h.b16 %v989
        %v1260 = vunpack.c.l.b16 %v990
        %v1261 = vunpack.c.h.b16 %v990
        %v1262 = vunpack.c.l.b16 %v991
        %v1263 = vunpack.c.h.b16 %v991
        %v1264 = vunpack.c.l.b16 %v992
        %v1265 = vunpack.c.h.b16 %v992
        %v1266 = vunpack.c.l.b16 %v993
        %v1267 = vunpack.c.h.b16 %v993
        %v1268 = vunpack.c.l.b16 %v994
        %v1269 = vunpack.c.h.b16 %v994
        %v1270 = vunpack.c.l.b16 %v995
        %v1271 = vunpack.c.h.b16 %v995
        %v1272 = vunpack.c.l.b16 %v996
        %v1273 = vunpack.c.h.b16 %v996
        %v1274 = vunpack.c.l.b16 %v997
        %v1275 = vunpack.c.h.b16 %v997
        %v1276 = vunpack.c.l.b16 %v998
        %v1277 = vunpack.c.h.b16 %v998
        %v1278 = vunpack.c.l.b16 %v999
        %v1279 = vunpack.c.h.b16 %v999
        %v1280 = vunpack.c.l.b16 %v1000
        %v1281 = vunpack.c.h.b16 %v1000
        %v1282 = vunpack.c.l.b16 %v1001
        %v1283 = vunpack.c.h.b16 %v1001
        %v1284 = vunpack.c.l.b16 %v1002
        %v1285 = vunpack.c.h.b16 %v1002
        %v1286 = vunpack.c.l.b16 %v1003
        %v1287 = vunpack.c.h.b16 %v1003
        %v1288 = vunpack.c.l.b16 %v1004
        %v1289 = vunpack.c.h.b16 %v1004
        %v1290 = vunpack.c.l.b16 %v1005
        %v1291 = vunpack.c.h.b16 %v1005
        %v1292 = vunpack.c.l.b16 %v1006
        %v1293 = vunpack.c.h.b16 %v1006
        %v1294 = vunpack.c.l.b16 %v1007
        %v1295 = vunpack.c.h.b16 %v1007
        %v1296 = vunpack.c.l.b16 %v1008
        %v1297 = vunpack.c.h.b16 %v1008
        %v1298 = vunpack.c.l.b16 %v1009
        %v1299 = vunpack.c.h.b16 %v1009
        %v1300 = vunpack.c.l.b16 %v1010
        %v1301 = vunpack.c.h.b16 %v1010
        %v1302 = vunpack.c.l.b16 %v1011
        %v1303 = vunpack.c.h.b16 %v1011
        %v1304 = vunpack.c.l.b16 %v1012
        %v1305 = vunpack.c.h.b16 %v1012
        %v1306 = vunpack.c.l.b16 %v1013
        %v1307 = vunpack.c.h.b16 %v1013
        %v1308 = vunpack.c.l.b16 %v1014
        %v1309 = vunpack.c.h.b16 %v1014
        %v1310 = vunpack.c.l.b16 %v1015
        %v1311 = vunpack.c.h.b16 %v1015
        %v1312 = vunpack.c.l.b16 %v1016
        %v1313 = vunpack.c.h.b16 %v1016
        %v1314 = vunpack.c.l.b16 %v1017
        %v1315 = vunpack.c.h.b16 %v1017
        %v1316 = vunpack.c.l.b16 %v1018
        %v1317 = vunpack.c.h.b16 %v1018
        %v1318 = vunpack.c.l.b16 %v1019
        %v1319 = vunpack.c.h.b16 %v1019
        %v1320 = vunpack.c.l.b16 %v1020
        %v1321 = vunpack.c.h.b16 %v1020
        %v1322 = vunpack.c.l.b16 %v1021
        %v1323 = vunpack.c.h.b16 %v1021
        %v1324 = vpack.c.b16 %v1138, %v1132
        %v1325 = vpack.c.b16 %v1139, %v1133
        %v1326 = vpack.c.b16 %v1140, %v1134
        %v1327 = vpack.c.b16 %v1141, %v1135
        %v1328 = vpack.c.b16 %v1142, %v1136
        %v1329 = vpack.c.b16 %v1143, %v1137
        %v1330 = vpack.c.b16 %v1150, %v1144
        %v1331 = vpack.c.b16 %v1151, %v1145
        %v1332 = vpack.c.b16 %v1152, %v1146
        %v1333 = vpack.c.b16 %v1153, %v1147
        %v1334 = vpack.c.b16 %v1154, %v1148
        %v1335 = vpack.c.b16 %v1155, %v1149
        %v1336 = vpack.c.b16 %v1162, %v1156
        %v1337 = vpack.c.b16 %v1163, %v1157
        %v1338 = vpack.c.b16 %v1164, %v1158
        %v1339 = vpack.c.b16 %v1165, %v1159
        %v1340 = vpack.c.b16 %v1166, %v1160
        %v1341 = vpack.c.b16 %v1167, %v1161
        %v1342 = vpack.c.b16 %v1174, %v1168
        %v1343 = vpack.c.b16 %v1175, %v1169
        %v1344 = vpack.c.b16 %v1176, %v1170
        %v1345 = vpack.c.b16 %v1177, %v1171
        %v1346 = vpack.c.b16 %v1178, %v1172
        %v1347 = vpack.c.b16 %v1179, %v1173
        %v1348 = vpack.c.b16 %v1186, %v1180
        %v1349 = vpack.c.b16 %v1187, %v1181
        %v1350 = vpack.c.b16 %v1188, %v1182
        %v1351 = vpack.c.b16 %v1189, %v1183
        %v1352 = vpack.c.b16 %v1190, %v1184
        %v1353 = vpack.c.b16 %v1191, %v1185
        %v1354 = vpack.c.b16 %v1198, %v1192
        %v1355 = vpack.c.b16 %v1199, %v1193
        %v1356 = vpack.c.b16 %v1200, %v1194
        %v1357 = vpack.c.b16 %v1201, %v1195
        %v1358 = vpack.c.b16 %v1202, %v1196
        %v1359 = vpack.c.b16 %v1203, %v1197
        %v1360 = vpack.c.b16 %v1210, %v1204
        %v1361 = vpack.c.b16 %v1211, %v1205
        %v1362 = vpack.c.b16 %v1212, %v1206
        %v1363 = vpack.c.b16 %v1213, %v1207
        %v1364 = vpack.c.b16 %v1214, %v1208
        %v1365 = vpack.c.b16 %v1215, %v1209
        %v1366 = vpack.c.b16 %v1222, %v1216
        %v1367 = vpack.c.b16 %v1223, %v1217
        %v1368 = vpack.c.b16 %v1224, %v1218
        %v1369 = vpack.c.b16 %v1225, %v1219
        %v1370 = vpack.c.b16 %v1226, %v1220
        %v1371 = vpack.c.b16 %v1227, %v1221
        %v1372 = vpack.c.b16 %v1234, %v1228
        %v1373 = vpack.c.b16 %v1235, %v1229
        %v1374 = vpack.c.b16 %v1236, %v1230
        %v1375 = vpack.c.b16 %v1237, %v1231
        %v1376 = vpack.c.b16 %v1238, %v1232
        %v1377 = vpack.c.b16 %v1239, %v1233
        %v1378 = vpack.c.b16 %v1246, %v1240
        %v1379 = vpack.c.b16 %v1247, %v1241
        %v1380 = vpack.c.b16 %v1248, %v1242
        %v1381 = vpack.c.b16 %v1249, %v1243
        %v1382 = vpack.c.b16 %v1250, %v1244
        %v1383 = vpack.c.b16 %v1251, %v1245
        %v1384 = vpack.c.b16 %v1258, %v1252
        %v1385 = vpack.c.b16 %v1259, %v1253
        %v1386 = vpack.c.b16 %v1260, %v1254
        %v1387 = vpack.c.b16 %v1261, %v1255
        %v1388 = vpack.c.b16 %v1262, %v1256
        %v1389 = vpack.c.b16 %v1263, %v1257
        %v1390 = vpack.c.b16 %v1270, %v1264
        %v1391 = vpack.c.b16 %v1271, %v1265
        %v1392 = vpack.c.b16 %v1272, %v1266
        %v1393 = vpack.c.b16 %v1273, %v1267
        %v1394 = vpack.c.b16 %v1274, %v1268
        %v1395 = vpack.c.b16 %v1275, %v1269
        %v1396 = vpack.c.b16 %v1282, %v1276
        %v1397 = vpack.c.b16 %v1283, %v1277
        %v1398 = vpack.c.b16 %v1284, %v1278
        %v1399 = vpack.c.b16 %v1285, %v1279
        %v1400 = vpack.c.b16 %v1286, %v1280
        %v1401 = vpack.c.b16 %v1287, %v1281
        %v1402 = vpack.c.b16 %v1294, %v1288
        %v1403 = vpack.c.b16 %v1295, %v1289
        %v1404 = vpack.c.b16 %v1296, %v1290
        %v1405 = vpack.c.b16 %v1297, %v1291
        %v1406 = vpack.c.b16 %v1298, %v1292
        %v1407 = vpack.c.b16 %v1299, %v1293
        %v1408 = vpack.c.b16 %v1306, %v1300
        %v1409 = vpack.c.b16 %v1307, %v1301
        %v1410 = vpack.c.b16 %v1308, %v1302
        %v1411 = vpack.c.b16 %v1309, %v1303
        %v1412 = vpack.c.b16 %v1310, %v1304
        %v1413 = vpack.c.b16 %v1311, %v1305
        %v1414 = vpack.c.b16 %v1318, %v1312
        %v1415 = vpack.c.b16 %v1319, %v1313
        %v1416 = vpack.c.b16 %v1320, %v1314
        %v1417 = vpack.c.b16 %v1321, %v1315
        %v1418 = vpack.c.b16 %v1322, %v1316
        %v1419 = vpack.c.b16 %v1323, %v1317
        %1516 = vmatpush.bf16.msra.mxu0 %v1366
        %1517 = vmatpush.bf16.msra.mxu0 %v1360
        %1518 = vmatpush.bf16.msra.mxu0 %v1354
        %1519 = vmatpush.bf16.msra.mxu0 %v1348
        %1520 = vmatpush.bf16.msra.mxu0 %v1342
        %1521 = vmatpush.bf16.msra.mxu0 %v1336
        %1522 = vmatpush.bf16.msra.mxu0 %v1330
        %1523 = vmatpush.bf16.msra.mxu0 %v1324
        %1524 = vmatmul.bf16.gmra.mxu0 %v924
        %v1525 = vpop.f32.mrf.mxu0
        %v1526 = vadd.f32 %v1024, %v1525
        %v1527 = vpop.f32.mrf.mxu0
        %v1528 = vadd.f32 %v1024, %v1527
        %1529 = vdwg.mxu0
        %1530 = vmatpush.bf16.msra.mxu0 %v1414
        %1531 = vmatpush.bf16.msra.mxu0 %v1408
        %1532 = vmatpush.bf16.msra.mxu0 %v1402
        %1533 = vmatpush.bf16.msra.mxu0 %v1396
        %1534 = vmatpush.bf16.msra.mxu0 %v1390
        %1535 = vmatpush.bf16.msra.mxu0 %v1384
        %1536 = vmatpush.bf16.msra.mxu0 %v1378
        %1537 = vmatpush.bf16.msra.mxu0 %v1372
        %1538 = vmatmul.bf16.gmra.mxu0 %v925
        %v1539 = vpop.f32.mrf.mxu0
        %v1540 = vadd.f32 %v1526, %v1539
        %v1541 = vpop.f32.mrf.mxu0
        %v1542 = vadd.f32 %v1528, %v1541
        %1543 = vdwg.mxu0
        %1544 = vmatpush.bf16.msra.mxu0 %v1367
        %1545 = vmatpush.bf16.msra.mxu0 %v1361
        %1546 = vmatpush.bf16.msra.mxu0 %v1355
        %1547 = vmatpush.bf16.msra.mxu0 %v1349
        %1548 = vmatpush.bf16.msra.mxu0 %v1343
        %1549 = vmatpush.bf16.msra.mxu0 %v1337
        %1550 = vmatpush.bf16.msra.mxu0 %v1331
        %1551 = vmatpush.bf16.msra.mxu0 %v1325
        %1552 = vmatmul.bf16.gmra.mxu0 %v924
        %v1553 = vpop.f32.mrf.mxu0
        %v1554 = vadd.f32 %v1025, %v1553
        %v1555 = vpop.f32.mrf.mxu0
        %v1556 = vadd.f32 %v1025, %v1555
        %1557 = vdwg.mxu0
        %1558 = vmatpush.bf16.msra.mxu0 %v1415
        %1559 = vmatpush.bf16.msra.mxu0 %v1409
        %1560 = vmatpush.bf16.msra.mxu0 %v1403
        %1561 = vmatpush.bf16.msra.mxu0 %v1397
        %1562 = vmatpush.bf16.msra.mxu0 %v1391
        %1563 = vmatpush.bf16.msra.mxu0 %v1385
        %1564 = vmatpush.bf16.msra.mxu0 %v1379
        %1565 = vmatpush.bf16.msra.mxu0 %v1373
        %1566 = vmatmul.bf16.gmra.mxu0 %v925
        %v1567 = vpop.f32.mrf.mxu0
        %v1568 = vadd.f32 %v1554, %v1567
        %v1569 = vpop.f32.mrf.mxu0
        %v1570 = vadd.f32 %v1556, %v1569
        %1571 = vdwg.mxu0
        %1572 = vmatpush.bf16.msra.mxu0 %v1368
        %1573 = vmatpush.bf16.msra.mxu0 %v1362
        %1574 = vmatpush.bf16.msra.mxu0 %v1356
        %1575 = vmatpush.bf16.msra.mxu0 %v1350
        %1576 = vmatpush.bf16.msra.mxu0 %v1344
        %1577 = vmatpush.bf16.msra.mxu0 %v1338
        %1578 = vmatpush.bf16.msra.mxu0 %v1332
        %1579 = vmatpush.bf16.msra.mxu0 %v1326
        %1580 = vmatmul.bf16.gmra.mxu0 %v924
        %v1581 = vpop.f32.mrf.mxu0
        %v1582 = vadd.f32 %v1026, %v1581
        %v1583 = vpop.f32.mrf.mxu0
        %v1584 = vadd.f32 %v1026, %v1583
        %1585 = vdwg.mxu0
        %1586 = vmatpush.bf16.msra.mxu0 %v1416
        %1587 = vmatpush.bf16.msra.mxu0 %v1410
        %1588 = vmatpush.bf16.msra.mxu0 %v1404
        %1589 = vmatpush.bf16.msra.mxu0 %v1398
        %1590 = vmatpush.bf16.msra.mxu0 %v1392
        %1591 = vmatpush.bf16.msra.mxu0 %v1386
        %1592 = vmatpush.bf16.msra.mxu0 %v1380
        %1593 = vmatpush.bf16.msra.mxu0 %v1374
        %1594 = vmatmul.bf16.gmra.mxu0 %v925
        %v1595 = vpop.f32.mrf.mxu0
        %v1596 = vadd.f32 %v1582, %v1595
        %v1597 = vpop.f32.mrf.mxu0
        %v1598 = vadd.f32 %v1584, %v1597
        %1599 = vdwg.mxu0
        %1600 = vmatpush.bf16.msra.mxu0 %v1369
        %1601 = vmatpush.bf16.msra.mxu0 %v1363
        %1602 = vmatpush.bf16.msra.mxu0 %v1357
        %1603 = vmatpush.bf16.msra.mxu0 %v1351
        %1604 = vmatpush.bf16.msra.mxu0 %v1345
        %1605 = vmatpush.bf16.msra.mxu0 %v1339
        %1606 = vmatpush.bf16.msra.mxu0 %v1333
        %1607 = vmatpush.bf16.msra.mxu0 %v1327
        %1608 = vmatmul.bf16.gmra.mxu0 %v924
        %v1609 = vpop.f32.mrf.mxu0
        %v1610 = vadd.f32 %v1027, %v1609
        %v1611 = vpop.f32.mrf.mxu0
        %v1612 = vadd.f32 %v1027, %v1611
        %1613 = vdwg.mxu0
        %1614 = vmatpush.bf16.msra.mxu0 %v1417
        %1615 = vmatpush.bf16.msra.mxu0 %v1411
        %1616 = vmatpush.bf16.msra.mxu0 %v1405
        %1617 = vmatpush.bf16.msra.mxu0 %v1399
        %1618 = vmatpush.bf16.msra.mxu0 %v1393
        %1619 = vmatpush.bf16.msra.mxu0 %v1387
        %1620 = vmatpush.bf16.msra.mxu0 %v1381
        %1621 = vmatpush.bf16.msra.mxu0 %v1375
        %1622 = vmatmul.bf16.gmra.mxu0 %v925
        %v1623 = vpop.f32.mrf.mxu0
        %v1624 = vadd.f32 %v1610, %v1623
        %v1625 = vpop.f32.mrf.mxu0
        %v1626 = vadd.f32 %v1612, %v1625
        %1627 = vdwg.mxu0
        %1628 = vmatpush.bf16.msra.mxu0 %v1370
        %1629 = vmatpush.bf16.msra.mxu0 %v1364
        %1630 = vmatpush.bf16.msra.mxu0 %v1358
        %1631 = vmatpush.bf16.msra.mxu0 %v1352
        %1632 = vmatpush.bf16.msra.mxu0 %v1346
        %1633 = vmatpush.bf16.msra.mxu0 %v1340
        %1634 = vmatpush.bf16.msra.mxu0 %v1334
        %1635 = vmatpush.bf16.msra.mxu0 %v1328
        %1636 = vmatmul.bf16.gmra.mxu0 %v924
        %v1637 = vpop.f32.mrf.mxu0
        %v1638 = vadd.f32 %v1028, %v1637
        %v1639 = vpop.f32.mrf.mxu0
        %v1640 = vadd.f32 %v1028, %v1639
        %1641 = vdwg.mxu0
        %1642 = vmatpush.bf16.msra.mxu0 %v1418
        %1643 = vmatpush.bf16.msra.mxu0 %v1412
        %1644 = vmatpush.bf16.msra.mxu0 %v1406
        %1645 = vmatpush.bf16.msra.mxu0 %v1400
        %1646 = vmatpush.bf16.msra.mxu0 %v1394
        %1647 = vmatpush.bf16.msra.mxu0 %v1388
        %1648 = vmatpush.bf16.msra.mxu0 %v1382
        %1649 = vmatpush.bf16.msra.mxu0 %v1376
        %1650 = vmatmul.bf16.gmra.mxu0 %v925
        %v1651 = vpop.f32.mrf.mxu0
        %v1652 = vadd.f32 %v1638, %v1651
        %v1653 = vpop.f32.mrf.mxu0
        %v1654 = vadd.f32 %v1640, %v1653
        %1655 = vdwg.mxu0
        %1656 = vmatpush.bf16.msra.mxu0 %v1371
        %1657 = vmatpush.bf16.msra.mxu0 %v1365
        %1658 = vmatpush.bf16.msra.mxu0 %v1359
        %1659 = vmatpush.bf16.msra.mxu0 %v1353
        %1660 = vmatpush.bf16.msra.mxu0 %v1347
        %1661 = vmatpush.bf16.msra.mxu0 %v1341
        %1662 = vmatpush.bf16.msra.mxu0 %v1335
        %1663 = vmatpush.bf16.msra.mxu0 %v1329
        %1664 = vmatmul.bf16.gmra.mxu0 %v924
        %v1665 = vpop.f32.mrf.mxu0
        %v1666 = vadd.f32 %v1029, %v1665
        %v1667 = vpop.f32.mrf.mxu0
        %v1668 = vadd.f32 %v1029, %v1667
        %1669 = vdwg.mxu0
        %1670 = vmatpush.bf16.msra.mxu0 %v1419
        %1671 = vmatpush.bf16.msra.mxu0 %v1413
        %1672 = vmatpush.bf16.msra.mxu0 %v1407
        %1673 = vmatpush.bf16.msra.mxu0 %v1401
        %1674 = vmatpush.bf16.msra.mxu0 %v1395
        %1675 = vmatpush.bf16.msra.mxu0 %v1389
        %1676 = vmatpush.bf16.msra.mxu0 %v1383
        %1677 = vmatpush.bf16.msra.mxu0 %v1377
        %1678 = vmatmul.bf16.gmra.mxu0 %v925
        %v1679 = vpop.f32.mrf.mxu0
        %v1680 = vadd.f32 %v1666, %v1679
        %v1681 = vpop.f32.mrf.mxu0
        %v1682 = vadd.f32 %v1668, %v1681
        %1683 = vdwg.mxu0
        %v1684 = vmul.f32 %v1540, 0.088388346
        %v1685 = vmul.f32 %v1568, 0.088388346
        %v1686 = vmul.f32 %v1542, 0.088388346
        %v1687 = vmul.f32 %v1570, 0.088388346
        %v1688 = vpack.c.bf16 %v1685, %v1684
        %v1689 = vpack.c.bf16 %v1687, %v1686
        %v1690 = vpack.c.bf16 %v1624, %v1596
        %v1691 = vpack.c.bf16 %v1626, %v1598
        %v1692 = vpack.c.bf16 %v1680, %v1652
        %v1693 = vpack.c.bf16 %v1682, %v1654
        %v1694 = vld [vmem:[#allocation6] sm:$0x3]
        %v1696 = vrot.slane %v1694, 1
        %v1697 = vperm.slane %v1694, 0
        %v1698 = vperm.slane %v1696, 0
        %1701 = vmatpush.bf16.xpose.msra.mxu0 0
        %1702 = vmatpush.bf16.xpose.msra.mxu0 0
        %1703 = vmatpush.bf16.xpose.msra.mxu0 0
        %1704 = vmatpush.bf16.xpose.msra.mxu0 0
        %1705 = vmatpush.bf16.xpose.msra.mxu0 0
        %1706 = vmatpush.bf16.xpose.msra.mxu0 0
        %1707 = vmatpush.bf16.xpose.msra.mxu0 0
        %1708 = vmatpush.bf16.xpose.msra.mxu0 %v1690
        %1709 = vmatmul.bf16.gmra.mxu0 %v1688
        %v1710 = vpop.f32.mrf.mxu0
        %v1711 = vadd.f32 %v1697, %v1710
        %v1712 = vpop.f32.mrf.mxu0
        %1713 = vdwg.mxu0
        %1714 = vmatpush.bf16.xpose.msra.mxu0 0
        %1715 = vmatpush.bf16.xpose.msra.mxu0 0
        %1716 = vmatpush.bf16.xpose.msra.mxu0 0
        %1717 = vmatpush.bf16.xpose.msra.mxu0 0
        %1718 = vmatpush.bf16.xpose.msra.mxu0 0
        %1719 = vmatpush.bf16.xpose.msra.mxu0 0
        %1720 = vmatpush.bf16.xpose.msra.mxu0 0
        %1721 = vmatpush.bf16.xpose.msra.mxu0 %v1691
        %1722 = vmatmul.bf16.gmra.mxu0 %v1689
        %v1723 = vpop.f32.mrf.mxu0
        %v1724 = vadd.f32 %v1698, %v1723
        %v1725 = vpop.f32.mrf.mxu0
        %1726 = vdwg.mxu0
        %vm1727 = vcmask 64512
        %v1728 = vsel %vm1727, %v1711, -inf
        %1729 = vmax.xlane.f32.xlu0 %v1728
        %v1730 = vpop.xlane.xlu0 %1729
        %v1731 = vsel %vm1727, %v1724, -inf
        %1732 = vmax.xlane.f32.xlu0 %v1731
        %v1733 = vpop.xlane.xlu0 %1732
        %v1734 = vsub.f32 %v1711, %v1730
        %v1735 = vsub.f32 %v1724, %v1733
        %v1736 = vmul.f32 %v1734, 1.442695
        %v1737 = vpow.pop %v1736
        %v1738 = vmul.f32 %v1735, 1.442695
        %v1739 = vpow.pop %v1738
        %v1740 = vsel %vm1727, %v1737, 0.0
        %1741 = vadd.xlane.f32.xlu0 %v1740
        %v1742 = vpop.xlane.xlu0 %1741
        %v1743 = vsel %vm1727, %v1739, 0.0
        %1744 = vadd.xlane.f32.xlu0 %v1743
        %v1745 = vpop.xlane.xlu0 %1744
        %v1746 = vrcp.pop %v1742
        %v1747 = vmul.f32 %v1742, %v1746
        %v1748 = vsub.f32 1.0, %v1747
        %v1749 = vmul.f32 %v1746, %v1748
        %v1750 = vadd.f32 %v1746, %v1749
        %vm1751 = vweird.f32 %v1742
        %vm1752 = vweird.f32 %v1746
        %vm1753 = vmor %vm1751, %vm1752
        %v1754 = vsel %vm1753, %v1746, %v1750
        %v1755 = vand.u32 2147483647, %v1742
        %vm1756 = vcmp.eq.f32.partialorder %v1755, 8.507059e+37
        %v1757 = vand.u32 %v1742, 2147483648
        %v1758 = vor.u32 1.1754944e-38, %v1757
        %v1759 = vsel %vm1756, %v1758, %v1754
        %v1760 = vmul.f32 %v1737, %v1759
        %v1761 = vrcp.pop %v1745
        %v1762 = vmul.f32 %v1745, %v1761
        %v1763 = vsub.f32 1.0, %v1762
        %v1764 = vmul.f32 %v1761, %v1763
        %v1765 = vadd.f32 %v1761, %v1764
        %vm1766 = vweird.f32 %v1745
        %vm1767 = vweird.f32 %v1761
        %vm1768 = vmor %vm1766, %vm1767
        %v1769 = vsel %vm1768, %v1761, %v1765
        %v1770 = vand.u32 2147483647, %v1745
        %vm1771 = vcmp.eq.f32.partialorder %v1770, 8.507059e+37
        %v1772 = vand.u32 %v1745, 2147483648
        %v1773 = vor.u32 1.1754944e-38, %v1772
        %v1774 = vsel %vm1771, %v1773, %v1769
        %v1775 = vmul.f32 %v1739, %v1774
        %v1776 = vpack.c.bf16 %v1760, %v1760
        %v1777 = vpack.c.bf16 %v1775, %v1775
        %v1779 = vsel %vm1727, %v1776, 0
        %vm1781 = vcmask 1043456
        %v1783 = vsel %vm1781, %v1692, 0
        %1785 = vmatpush.bf16.msra.mxu0 0
        %1786 = vmatpush.bf16.msra.mxu0 0
        %1787 = vmatpush.bf16.msra.mxu0 0
        %1788 = vmatpush.bf16.msra.mxu0 0
        %1789 = vmatpush.bf16.msra.mxu0 0
        %1790 = vmatpush.bf16.msra.mxu0 0
        %1791 = vmatpush.bf16.msra.mxu0 0
        %1792 = vmatpush.bf16.msra.mxu0 %v1783
        %1793 = vmatmul.bf16.gmra.mxu0 %v1779
        %v1794 = vpop.f32.mrf.mxu0
        %v1795 = vadd.f32 0.0, %v1794
        %v1796 = vpop.f32.mrf.mxu0
        %1797 = vdwg.mxu0
        %v1799 = vsel %vm1727, %v1777, 0
        %v1802 = vsel %vm1781, %v1693, 0
        %1804 = vmatpush.bf16.msra.mxu0 0
        %1805 = vmatpush.bf16.msra.mxu0 0
        %1806 = vmatpush.bf16.msra.mxu0 0
        %1807 = vmatpush.bf16.msra.mxu0 0
        %1808 = vmatpush.bf16.msra.mxu0 0
        %1809 = vmatpush.bf16.msra.mxu0 0
        %1810 = vmatpush.bf16.msra.mxu0 0
        %1811 = vmatpush.bf16.msra.mxu0 %v1802
        %1812 = vmatmul.bf16.gmra.mxu0 %v1799
        %v1813 = vpop.f32.mrf.mxu0
        %v1814 = vadd.f32 0.0, %v1813
        %v1815 = vpop.f32.mrf.mxu0
        %1816 = vdwg.mxu0
        %v1819 = vrot.slane %v1688, 4
        %v1820 = vrot.slane %v1689, 4
        %v1825 = vrot.slane %v1690, 4
        %v1826 = vrot.slane %v1691, 4
        %v1831 = vrot.slane %v1692, 4
        %v1832 = vrot.slane %v1693, 4
        %1833 = vmatpush.bf16.xpose.msra.mxu0 0
        %1834 = vmatpush.bf16.xpose.msra.mxu0 0
        %1835 = vmatpush.bf16.xpose.msra.mxu0 0
        %1836 = vmatpush.bf16.xpose.msra.mxu0 0
        %1837 = vmatpush.bf16.xpose.msra.mxu0 0
        %1838 = vmatpush.bf16.xpose.msra.mxu0 0
        %1839 = vmatpush.bf16.xpose.msra.mxu0 0
        %1840 = vmatpush.bf16.xpose.msra.mxu0 %v1825
        %1841 = vmatmul.bf16.gmra.mxu0 %v1819
        %v1842 = vpop.f32.mrf.mxu0
        %v1843 = vadd.f32 %v1697, %v1842
        %v1844 = vpop.f32.mrf.mxu0
        %1845 = vdwg.mxu0
        %1846 = vmatpush.bf16.xpose.msra.mxu0 0
        %1847 = vmatpush.bf16.xpose.msra.mxu0 0
        %1848 = vmatpush.bf16.xpose.msra.mxu0 0
        %1849 = vmatpush.bf16.xpose.msra.mxu0 0
        %1850 = vmatpush.bf16.xpose.msra.mxu0 0
        %1851 = vmatpush.bf16.xpose.msra.mxu0 0
        %1852 = vmatpush.bf16.xpose.msra.mxu0 0
        %1853 = vmatpush.bf16.xpose.msra.mxu0 %v1826
        %1854 = vmatmul.bf16.gmra.mxu0 %v1820
        %v1855 = vpop.f32.mrf.mxu0
        %v1856 = vadd.f32 %v1698, %v1855
        %v1857 = vpop.f32.mrf.mxu0
        %1858 = vdwg.mxu0
        %v1859 = vsel %vm1727, %v1843, -inf
        %1860 = vmax.xlane.f32.xlu0 %v1859
        %v1861 = vpop.xlane.xlu0 %1860
        %v1862 = vsel %vm1727, %v1856, -inf
        %1863 = vmax.xlane.f32.xlu0 %v1862
        %v1864 = vpop.xlane.xlu0 %1863
        %v1865 = vsub.f32 %v1843, %v1861
        %v1866 = vsub.f32 %v1856, %v1864
        %v1867 = vmul.f32 %v1865, 1.442695
        %v1868 = vpow.pop %v1867
        %v1869 = vmul.f32 %v1866, 1.442695
        %v1870 = vpow.pop %v1869
        %v1871 = vsel %vm1727, %v1868, 0.0
        %1872 = vadd.xlane.f32.xlu0 %v1871
        %v1873 = vpop.xlane.xlu0 %1872
        %v1874 = vsel %vm1727, %v1870, 0.0
        %1875 = vadd.xlane.f32.xlu0 %v1874
        %v1876 = vpop.xlane.xlu0 %1875
        %v1877 = vrcp.pop %v1873
        %v1878 = vmul.f32 %v1873, %v1877
        %v1879 = vsub.f32 1.0, %v1878
        %v1880 = vmul.f32 %v1877, %v1879
        %v1881 = vadd.f32 %v1877, %v1880
        %vm1882 = vweird.f32 %v1873
        %vm1883 = vweird.f32 %v1877
        %vm1884 = vmor %vm1882, %vm1883
        %v1885 = vsel %vm1884, %v1877, %v1881
        %v1886 = vand.u32 2147483647, %v1873
        %vm1887 = vcmp.eq.f32.partialorder %v1886, 8.507059e+37
        %v1888 = vand.u32 %v1873, 2147483648
        %v1889 = vor.u32 1.1754944e-38, %v1888
        %v1890 = vsel %vm1887, %v1889, %v1885
        %v1891 = vmul.f32 %v1868, %v1890
        %v1892 = vrcp.pop %v1876
        %v1893 = vmul.f32 %v1876, %v1892
        %v1894 = vsub.f32 1.0, %v1893
        %v1895 = vmul.f32 %v1892, %v1894
        %v1896 = vadd.f32 %v1892, %v1895
        %vm1897 = vweird.f32 %v1876
        %vm1898 = vweird.f32 %v1892
        %vm1899 = vmor %vm1897, %vm1898
        %v1900 = vsel %vm1899, %v1892, %v1896
        %v1901 = vand.u32 2147483647, %v1876
        %vm1902 = vcmp.eq.f32.partialorder %v1901, 8.507059e+37
        %v1903 = vand.u32 %v1876, 2147483648
        %v1904 = vor.u32 1.1754944e-38, %v1903
        %v1905 = vsel %vm1902, %v1904, %v1900
        %v1906 = vmul.f32 %v1870, %v1905
        %v1907 = vpack.c.bf16 %v1891, %v1891
        %v1908 = vpack.c.bf16 %v1906, %v1906
        %v1910 = vsel %vm1727, %v1907, 0
        %v1913 = vsel %vm1781, %v1831, 0
        %1915 = vmatpush.bf16.msra.mxu0 0
        %1916 = vmatpush.bf16.msra.mxu0 0
        %1917 = vmatpush.bf16.msra.mxu0 0
        %1918 = vmatpush.bf16.msra.mxu0 0
        %1919 = vmatpush.bf16.msra.mxu0 0
        %1920 = vmatpush.bf16.msra.mxu0 0
        %1921 = vmatpush.bf16.msra.mxu0 0
        %1922 = vmatpush.bf16.msra.mxu0 %v1913
        %1923 = vmatmul.bf16.gmra.mxu0 %v1910
        %v1924 = vpop.f32.mrf.mxu0
        %v1925 = vadd.f32 0.0, %v1924
        %v1926 = vpop.f32.mrf.mxu0
        %1927 = vdwg.mxu0
        %v1929 = vsel %vm1727, %v1908, 0
        %v1932 = vsel %vm1781, %v1832, 0
        %1934 = vmatpush.bf16.msra.mxu0 0
        %1935 = vmatpush.bf16.msra.mxu0 0
        %1936 = vmatpush.bf16.msra.mxu0 0
        %1937 = vmatpush.bf16.msra.mxu0 0
        %1938 = vmatpush.bf16.msra.mxu0 0
        %1939 = vmatpush.bf16.msra.mxu0 0
        %1940 = vmatpush.bf16.msra.mxu0 0
        %1941 = vmatpush.bf16.msra.mxu0 %v1932
        %1942 = vmatmul.bf16.gmra.mxu0 %v1929
        %v1943 = vpop.f32.mrf.mxu0
        %v1944 = vadd.f32 0.0, %v1943
        %v1945 = vpop.f32.mrf.mxu0
        %1946 = vdwg.mxu0
        %v1947 = vpack.c.bf16 %v1814, %v1795
        %v1948 = vpack.c.bf16 %v1944, %v1925
        %v1949 = vld [vmem:[%s733] sm:$0xff]
        %v1950 = vld [vmem:[%s733 + $0x8] sm:$0xff]
        %v1951 = vld [vmem:[%s733 + $0x10] sm:$0xff]
        %v1952 = vld [vmem:[%s733 + $0x18] sm:$0xff]
        %v1953 = vld [vmem:[%s733 + $0x20] sm:$0xff]
        %v1954 = vld [vmem:[%s733 + $0x28] sm:$0xff]
        %v1955 = vld [vmem:[%s733 + $0x30] sm:$0xff]
        %v1956 = vld [vmem:[%s733 + $0x38] sm:$0xff]
        %v1957 = vld [vmem:[%s733 + $0x40] sm:$0xff]
        %v1958 = vld [vmem:[%s733 + $0x48] sm:$0xff]
        %v1959 = vld [vmem:[%s733 + $0x50] sm:$0xff]
        %v1960 = vld [vmem:[%s733 + $0x58] sm:$0xff]
        %v1961 = vld [vmem:[%s733 + $0x60] sm:$0xff]
        %v1962 = vld [vmem:[%s733 + $0x68] sm:$0xff]
        %v1963 = vld [vmem:[%s733 + $0x70] sm:$0xff]
        %v1964 = vld [vmem:[%s733 + $0x78] sm:$0xff]
        %v1965 = vld [vmem:[%s733 + $0x80] sm:$0xff]
        %v1966 = vld [vmem:[%s733 + $0x88] sm:$0xff]
        %v1967 = vld [vmem:[%s733 + $0x90] sm:$0xff]
        %v1968 = vld [vmem:[%s733 + $0x98] sm:$0xff]
        %v1969 = vld [vmem:[%s733 + $0xa0] sm:$0xff]
        %v1970 = vld [vmem:[%s733 + $0xa8] sm:$0xff]
        %v1971 = vld [vmem:[%s733 + $0xb0] sm:$0xff]
        %v1972 = vld [vmem:[%s733 + $0xb8] sm:$0xff]
        %v1973 = vld [vmem:[%s733 + $0xc0] sm:$0xff]
        %v1974 = vld [vmem:[%s733 + $0xc8] sm:$0xff]
        %v1975 = vld [vmem:[%s733 + $0xd0] sm:$0xff]
        %v1976 = vld [vmem:[%s733 + $0xd8] sm:$0xff]
        %v1977 = vld [vmem:[%s733 + $0xe0] sm:$0xff]
        %v1978 = vld [vmem:[%s733 + $0xe8] sm:$0xff]
        %v1979 = vld [vmem:[%s733 + $0xf0] sm:$0xff]
        %v1980 = vld [vmem:[%s733 + $0xf8] sm:$0xff]
        %v1981 = vld [vmem:[%s743] sm:$0x3]
        %v1983 = vperm.slane %v1981, 0
        %v1984 = vperm.slane %v1981, 1
        %v2019 = vunpack.c.l.b16 %v1949
        %v2020 = vunpack.c.h.b16 %v1949
        %v2021 = vunpack.c.l.b16 %v1950
        %v2022 = vunpack.c.h.b16 %v1950
        %v2023 = vunpack.c.l.b16 %v1951
        %v2024 = vunpack.c.h.b16 %v1951
        %v2025 = vunpack.c.l.b16 %v1952
        %v2026 = vunpack.c.h.b16 %v1952
        %v2027 = vunpack.c.l.b16 %v1953
        %v2028 = vunpack.c.h.b16 %v1953
        %v2029 = vunpack.c.l.b16 %v1954
        %v2030 = vunpack.c.h.b16 %v1954
        %v2031 = vunpack.c.l.b16 %v1955
        %v2032 = vunpack.c.h.b16 %v1955
        %v2033 = vunpack.c.l.b16 %v1956
        %v2034 = vunpack.c.h.b16 %v1956
        %v2035 = vunpack.c.l.b16 %v1957
        %v2036 = vunpack.c.h.b16 %v1957
        %v2037 = vunpack.c.l.b16 %v1958
        %v2038 = vunpack.c.h.b16 %v1958
        %v2039 = vunpack.c.l.b16 %v1959
        %v2040 = vunpack.c.h.b16 %v1959
        %v2041 = vunpack.c.l.b16 %v1960
        %v2042 = vunpack.c.h.b16 %v1960
        %v2043 = vunpack.c.l.b16 %v1961
        %v2044 = vunpack.c.h.b16 %v1961
        %v2045 = vunpack.c.l.b16 %v1962
        %v2046 = vunpack.c.h.b16 %v1962
        %v2047 = vunpack.c.l.b16 %v1963
        %v2048 = vunpack.c.h.b16 %v1963
        %v2049 = vunpack.c.l.b16 %v1964
        %v2050 = vunpack.c.h.b16 %v1964
        %v2051 = vunpack.c.l.b16 %v1965
        %v2052 = vunpack.c.h.b16 %v1965
        %v2053 = vunpack.c.l.b16 %v1966
        %v2054 = vunpack.c.h.b16 %v1966
        %v2055 = vunpack.c.l.b16 %v1967
        %v2056 = vunpack.c.h.b16 %v1967
        %v2057 = vunpack.c.l.b16 %v1968
        %v2058 = vunpack.c.h.b16 %v1968
        %v2059 = vunpack.c.l.b16 %v1969
        %v2060 = vunpack.c.h.b16 %v1969
        %v2061 = vunpack.c.l.b16 %v1970
        %v2062 = vunpack.c.h.b16 %v1970
        %v2063 = vunpack.c.l.b16 %v1971
        %v2064 = vunpack.c.h.b16 %v1971
        %v2065 = vunpack.c.l.b16 %v1972
        %v2066 = vunpack.c.h.b16 %v1972
        %v2067 = vunpack.c.l.b16 %v1973
        %v2068 = vunpack.c.h.b16 %v1973
        %v2069 = vunpack.c.l.b16 %v1974
        %v2070 = vunpack.c.h.b16 %v1974
        %v2071 = vunpack.c.l.b16 %v1975
        %v2072 = vunpack.c.h.b16 %v1975
        %v2073 = vunpack.c.l.b16 %v1976
        %v2074 = vunpack.c.h.b16 %v1976
        %v2075 = vunpack.c.l.b16 %v1977
        %v2076 = vunpack.c.h.b16 %v1977
        %v2077 = vunpack.c.l.b16 %v1978
        %v2078 = vunpack.c.h.b16 %v1978
        %v2079 = vunpack.c.l.b16 %v1979
        %v2080 = vunpack.c.h.b16 %v1979
        %v2081 = vunpack.c.l.b16 %v1980
        %v2082 = vunpack.c.h.b16 %v1980
        %v2083 = vpack.c.b16 %v2021, %v2019
        %v2084 = vpack.c.b16 %v2022, %v2020
        %v2085 = vpack.c.b16 %v2025, %v2023
        %v2086 = vpack.c.b16 %v2026, %v2024
        %v2087 = vpack.c.b16 %v2029, %v2027
        %v2088 = vpack.c.b16 %v2030, %v2028
        %v2089 = vpack.c.b16 %v2033, %v2031
        %v2090 = vpack.c.b16 %v2034, %v2032
        %v2091 = vpack.c.b16 %v2037, %v2035
        %v2092 = vpack.c.b16 %v2038, %v2036
        %v2093 = vpack.c.b16 %v2041, %v2039
        %v2094 = vpack.c.b16 %v2042, %v2040
        %v2095 = vpack.c.b16 %v2045, %v2043
        %v2096 = vpack.c.b16 %v2046, %v2044
        %v2097 = vpack.c.b16 %v2049, %v2047
        %v2098 = vpack.c.b16 %v2050, %v2048
        %v2099 = vpack.c.b16 %v2053, %v2051
        %v2100 = vpack.c.b16 %v2054, %v2052
        %v2101 = vpack.c.b16 %v2057, %v2055
        %v2102 = vpack.c.b16 %v2058, %v2056
        %v2103 = vpack.c.b16 %v2061, %v2059
        %v2104 = vpack.c.b16 %v2062, %v2060
        %v2105 = vpack.c.b16 %v2065, %v2063
        %v2106 = vpack.c.b16 %v2066, %v2064
        %v2107 = vpack.c.b16 %v2069, %v2067
        %v2108 = vpack.c.b16 %v2070, %v2068
        %v2109 = vpack.c.b16 %v2073, %v2071
        %v2110 = vpack.c.b16 %v2074, %v2072
        %v2111 = vpack.c.b16 %v2077, %v2075
        %v2112 = vpack.c.b16 %v2078, %v2076
        %v2113 = vpack.c.b16 %v2081, %v2079
        %v2114 = vpack.c.b16 %v2082, %v2080
        %2147 = vmatpush.bf16.msra.mxu0 %v2097
        %2148 = vmatpush.bf16.msra.mxu0 %v2095
        %2149 = vmatpush.bf16.msra.mxu0 %v2093
        %2150 = vmatpush.bf16.msra.mxu0 %v2091
        %2151 = vmatpush.bf16.msra.mxu0 %v2089
        %2152 = vmatpush.bf16.msra.mxu0 %v2087
        %2153 = vmatpush.bf16.msra.mxu0 %v2085
        %2154 = vmatpush.bf16.msra.mxu0 %v2083
        %2155 = vmatmul.bf16.gmra.mxu0 %v1947
        %v2156 = vpop.f32.mrf.mxu0
        %v2157 = vadd.f32 %v1983, %v2156
        %v2158 = vpop.f32.mrf.mxu0
        %v2159 = vadd.f32 %v1983, %v2158
        %2160 = vdwg.mxu0
        %2161 = vmatpush.bf16.msra.mxu0 %v2113
        %2162 = vmatpush.bf16.msra.mxu0 %v2111
        %2163 = vmatpush.bf16.msra.mxu0 %v2109
        %2164 = vmatpush.bf16.msra.mxu0 %v2107
        %2165 = vmatpush.bf16.msra.mxu0 %v2105
        %2166 = vmatpush.bf16.msra.mxu0 %v2103
        %2167 = vmatpush.bf16.msra.mxu0 %v2101
        %2168 = vmatpush.bf16.msra.mxu0 %v2099
        %2169 = vmatmul.bf16.gmra.mxu0 %v1948
        %v2170 = vpop.f32.mrf.mxu0
        %v2171 = vadd.f32 %v2157, %v2170
        %v2172 = vpop.f32.mrf.mxu0
        %v2173 = vadd.f32 %v2159, %v2172
        %2174 = vdwg.mxu0
        %2175 = vmatpush.bf16.msra.mxu0 %v2098
        %2176 = vmatpush.bf16.msra.mxu0 %v2096
        %2177 = vmatpush.bf16.msra.mxu0 %v2094
        %2178 = vmatpush.bf16.msra.mxu0 %v2092
        %2179 = vmatpush.bf16.msra.mxu0 %v2090
        %2180 = vmatpush.bf16.msra.mxu0 %v2088
        %2181 = vmatpush.bf16.msra.mxu0 %v2086
        %2182 = vmatpush.bf16.msra.mxu0 %v2084
        %2183 = vmatmul.bf16.gmra.mxu0 %v1947
        %v2184 = vpop.f32.mrf.mxu0
        %v2185 = vadd.f32 %v1984, %v2184
        %v2186 = vpop.f32.mrf.mxu0
        %v2187 = vadd.f32 %v1984, %v2186
        %2188 = vdwg.mxu0
        %2189 = vmatpush.bf16.msra.mxu0 %v2114
        %2190 = vmatpush.bf16.msra.mxu0 %v2112
        %2191 = vmatpush.bf16.msra.mxu0 %v2110
        %2192 = vmatpush.bf16.msra.mxu0 %v2108
        %2193 = vmatpush.bf16.msra.mxu0 %v2106
        %2194 = vmatpush.bf16.msra.mxu0 %v2104
        %2195 = vmatpush.bf16.msra.mxu0 %v2102
        %2196 = vmatpush.bf16.msra.mxu0 %v2100
        %2197 = vmatmul.bf16.gmra.mxu0 %v1948
        %v2198 = vpop.f32.mrf.mxu0
        %v2199 = vadd.f32 %v2185, %v2198
        %v2200 = vpop.f32.mrf.mxu0
        %v2201 = vadd.f32 %v2187, %v2200
        %2202 = vdwg.mxu0
        %v2203 = vadd.f32 %v2171, %v920
        %v2204 = vadd.f32 %v2199, %v921
        %v2205 = vadd.f32 %v2173, %v922
        %v2206 = vadd.f32 %v2201, %v923
        %v2207 = vld [vmem:[%s753] sm:$0x3]
        %v2208 = vld [vmem:[%s763] sm:$0x3]
        %v2209 = vadd.f32 %v2203, %v2204
        %2210 = vadd.xlane.f32.xlu0 %v2209
        %v2211 = vpop.xlane.xlu0 %2210
        %v2212 = vadd.f32 %v2205, %v2206
        %2213 = vadd.xlane.f32.xlu0 %v2212
        %v2214 = vpop.xlane.xlu0 %2213
        %v2215 = vrcp.pop 256.0
        %v2216 = vmul.f32 256.0, %v2215
        %v2217 = vsub.f32 1.0, %v2216
        %v2218 = vmul.f32 %v2215, %v2217
        %v2219 = vadd.f32 %v2215, %v2218
        %vm2220 = vweird.f32 %v2215
        %v2221 = vsel %vm2220, %v2215, %v2219
        %v2222 = vmul.f32 %v2211, %v2221
        %v2223 = vmul.f32 %v2214, %v2221
        %v2224 = vsub.f32 %v2203, %v2222
        %v2225 = vsub.f32 %v2204, %v2222
        %v2226 = vsub.f32 %v2205, %v2223
        %v2227 = vsub.f32 %v2206, %v2223
        %v2228 = vmul.f32 %v2224, %v2224
        %v2229 = vmul.f32 %v2225, %v2225
        %v2230 = vmul.f32 %v2226, %v2226
        %v2231 = vmul.f32 %v2227, %v2227
        %v2232 = vadd.f32 %v2228, %v2229
        %2233 = vadd.xlane.f32.xlu0 %v2232
        %v2234 = vpop.xlane.xlu0 %2233
        %v2235 = vadd.f32 %v2230, %v2231
        %2236 = vadd.xlane.f32.xlu0 %v2235
        %v2237 = vpop.xlane.xlu0 %2236
        %v2238 = vmul.f32 %v2234, %v2221
        %v2239 = vmul.f32 %v2237, %v2221
        %v2240 = vadd.f32 %v2238, 1e-12
        %v2241 = vadd.f32 %v2239, 1e-12
        %v2242 = vrsqrt.pop %v2240
        %v2243 = vmul.f32 %v2242, %v2240
        %v2244 = vmul.f32 %v2243, %v2242
        %v2245 = vmul.f32 0.5, %v2244
        %v2246 = vsub.f32 1.5, %v2245
        %v2247 = vmul.f32 %v2242, %v2246
        %vm2248 = vweird.f32 %v2240
        %vm2249 = vweird.f32 %v2242
        %vm2250 = vmor %vm2248, %vm2249
        %v2251 = vsel %vm2250, %v2242, %v2247
        %v2252 = vrsqrt.pop %v2241
        %v2253 = vmul.f32 %v2252, %v2241
        %v2254 = vmul.f32 %v2253, %v2252
        %v2255 = vmul.f32 0.5, %v2254
        %v2256 = vsub.f32 1.5, %v2255
        %v2257 = vmul.f32 %v2252, %v2256
        %vm2258 = vweird.f32 %v2241
        %vm2259 = vweird.f32 %v2252
        %vm2260 = vmor %vm2258, %vm2259
        %v2261 = vsel %vm2260, %v2252, %v2257
        %v2262 = vmul.f32 %v2224, %v2251
        %v2263 = vmul.f32 %v2225, %v2251
        %v2264 = vmul.f32 %v2226, %v2261
        %v2265 = vmul.f32 %v2227, %v2261
        %v2267 = vperm.slane %v2207, 0
        %v2268 = vperm.slane %v2207, 1
        %v2271 = vmul.f32 %v2262, %v2267
        %v2272 = vmul.f32 %v2263, %v2268
        %v2273 = vmul.f32 %v2264, %v2267
        %v2274 = vmul.f32 %v2265, %v2268
        %v2276 = vperm.slane %v2208, 0
        %v2277 = vperm.slane %v2208, 1
        %v2280 = vadd.f32 %v2271, %v2276
        %v2281 = vadd.f32 %v2272, %v2277
        %v2282 = vadd.f32 %v2273, %v2276
        %v2283 = vadd.f32 %v2274, %v2277
        %v2284 = vpack.c.bf16 %v2282, %v2280
        %v2285 = vpack.c.bf16 %v2283, %v2281
        %v2286 = vld [vmem:[%s773] sm:$0xff]
        %v2287 = vld [vmem:[%s773 + $0x8] sm:$0xff]
        %v2288 = vld [vmem:[%s773 + $0x10] sm:$0xff]
        %v2289 = vld [vmem:[%s773 + $0x18] sm:$0xff]
        %v2290 = vld [vmem:[%s773 + $0x20] sm:$0xff]
        %v2291 = vld [vmem:[%s773 + $0x28] sm:$0xff]
        %v2292 = vld [vmem:[%s773 + $0x30] sm:$0xff]
        %v2293 = vld [vmem:[%s773 + $0x38] sm:$0xff]
        %v2294 = vld [vmem:[%s773 + $0x40] sm:$0xff]
        %v2295 = vld [vmem:[%s773 + $0x48] sm:$0xff]
        %v2296 = vld [vmem:[%s773 + $0x50] sm:$0xff]
        %v2297 = vld [vmem:[%s773 + $0x58] sm:$0xff]
        %v2298 = vld [vmem:[%s773 + $0x60] sm:$0xff]
        %v2299 = vld [vmem:[%s773 + $0x68] sm:$0xff]
        %v2300 = vld [vmem:[%s773 + $0x70] sm:$0xff]
        %v2301 = vld [vmem:[%s773 + $0x78] sm:$0xff]
        %v2302 = vld [vmem:[%s773 + $0x80] sm:$0xff]
        %v2303 = vld [vmem:[%s773 + $0x88] sm:$0xff]
        %v2304 = vld [vmem:[%s773 + $0x90] sm:$0xff]
        %v2305 = vld [vmem:[%s773 + $0x98] sm:$0xff]
        %v2306 = vld [vmem:[%s773 + $0xa0] sm:$0xff]
        %v2307 = vld [vmem:[%s773 + $0xa8] sm:$0xff]
        %v2308 = vld [vmem:[%s773 + $0xb0] sm:$0xff]
        %v2309 = vld [vmem:[%s773 + $0xb8] sm:$0xff]
        %v2310 = vld [vmem:[%s773 + $0xc0] sm:$0xff]
        %v2311 = vld [vmem:[%s773 + $0xc8] sm:$0xff]
        %v2312 = vld [vmem:[%s773 + $0xd0] sm:$0xff]
        %v2313 = vld [vmem:[%s773 + $0xd8] sm:$0xff]
        %v2314 = vld [vmem:[%s773 + $0xe0] sm:$0xff]
        %v2315 = vld [vmem:[%s773 + $0xe8] sm:$0xff]
        %v2316 = vld [vmem:[%s773 + $0xf0] sm:$0xff]
        %v2317 = vld [vmem:[%s773 + $0xf8] sm:$0xff]
        %v2318 = vld [vmem:[%s773 + $0x100] sm:$0xff]
        %v2319 = vld [vmem:[%s773 + $0x108] sm:$0xff]
        %v2320 = vld [vmem:[%s773 + $0x110] sm:$0xff]
        %v2321 = vld [vmem:[%s773 + $0x118] sm:$0xff]
        %v2322 = vld [vmem:[%s773 + $0x120] sm:$0xff]
        %v2323 = vld [vmem:[%s773 + $0x128] sm:$0xff]
        %v2324 = vld [vmem:[%s773 + $0x130] sm:$0xff]
        %v2325 = vld [vmem:[%s773 + $0x138] sm:$0xff]
        %v2326 = vld [vmem:[%s773 + $0x140] sm:$0xff]
        %v2327 = vld [vmem:[%s773 + $0x148] sm:$0xff]
        %v2328 = vld [vmem:[%s773 + $0x150] sm:$0xff]
        %v2329 = vld [vmem:[%s773 + $0x158] sm:$0xff]
        %v2330 = vld [vmem:[%s773 + $0x160] sm:$0xff]
        %v2331 = vld [vmem:[%s773 + $0x168] sm:$0xff]
        %v2332 = vld [vmem:[%s773 + $0x170] sm:$0xff]
        %v2333 = vld [vmem:[%s773 + $0x178] sm:$0xff]
        %v2334 = vld [vmem:[%s773 + $0x180] sm:$0xff]
        %v2335 = vld [vmem:[%s773 + $0x188] sm:$0xff]
        %v2336 = vld [vmem:[%s773 + $0x190] sm:$0xff]
        %v2337 = vld [vmem:[%s773 + $0x198] sm:$0xff]
        %v2338 = vld [vmem:[%s773 + $0x1a0] sm:$0xff]
        %v2339 = vld [vmem:[%s773 + $0x1a8] sm:$0xff]
        %v2340 = vld [vmem:[%s773 + $0x1b0] sm:$0xff]
        %v2341 = vld [vmem:[%s773 + $0x1b8] sm:$0xff]
        %v2342 = vld [vmem:[%s773 + $0x1c0] sm:$0xff]
        %v2343 = vld [vmem:[%s773 + $0x1c8] sm:$0xff]
        %v2344 = vld [vmem:[%s773 + $0x1d0] sm:$0xff]
        %v2345 = vld [vmem:[%s773 + $0x1d8] sm:$0xff]
        %v2346 = vld [vmem:[%s773 + $0x1e0] sm:$0xff]
        %v2347 = vld [vmem:[%s773 + $0x1e8] sm:$0xff]
        %v2348 = vld [vmem:[%s773 + $0x1f0] sm:$0xff]
        %v2349 = vld [vmem:[%s773 + $0x1f8] sm:$0xff]
        %v2350 = vld [vmem:[%s901] sm:$0xf]
        %v2352 = vperm.slane %v2350, 0
        %v2353 = vperm.slane %v2350, 1
        %v2354 = vperm.slane %v2350, 2
        %v2355 = vperm.slane %v2350, 3
        %v2424 = vunpack.c.l.b16 %v2286
        %v2425 = vunpack.c.h.b16 %v2286
        %v2426 = vunpack.c.l.b16 %v2287
        %v2427 = vunpack.c.h.b16 %v2287
        %v2428 = vunpack.c.l.b16 %v2288
        %v2429 = vunpack.c.h.b16 %v2288
        %v2430 = vunpack.c.l.b16 %v2289
        %v2431 = vunpack.c.h.b16 %v2289
        %v2432 = vunpack.c.l.b16 %v2290
        %v2433 = vunpack.c.h.b16 %v2290
        %v2434 = vunpack.c.l.b16 %v2291
        %v2435 = vunpack.c.h.b16 %v2291
        %v2436 = vunpack.c.l.b16 %v2292
        %v2437 = vunpack.c.h.b16 %v2292
        %v2438 = vunpack.c.l.b16 %v2293
        %v2439 = vunpack.c.h.b16 %v2293
        %v2440 = vunpack.c.l.b16 %v2294
        %v2441 = vunpack.c.h.b16 %v2294
        %v2442 = vunpack.c.l.b16 %v2295
        %v2443 = vunpack.c.h.b16 %v2295
        %v2444 = vunpack.c.l.b16 %v2296
        %v2445 = vunpack.c.h.b16 %v2296
        %v2446 = vunpack.c.l.b16 %v2297
        %v2447 = vunpack.c.h.b16 %v2297
        %v2448 = vunpack.c.l.b16 %v2298
        %v2449 = vunpack.c.h.b16 %v2298
        %v2450 = vunpack.c.l.b16 %v2299
        %v2451 = vunpack.c.h.b16 %v2299
        %v2452 = vunpack.c.l.b16 %v2300
        %v2453 = vunpack.c.h.b16 %v2300
        %v2454 = vunpack.c.l.b16 %v2301
        %v2455 = vunpack.c.h.b16 %v2301
        %v2456 = vunpack.c.l.b16 %v2302
        %v2457 = vunpack.c.h.b16 %v2302
        %v2458 = vunpack.c.l.b16 %v2303
        %v2459 = vunpack.c.h.b16 %v2303
        %v2460 = vunpack.c.l.b16 %v2304
        %v2461 = vunpack.c.h.b16 %v2304
        %v2462 = vunpack.c.l.b16 %v2305
        %v2463 = vunpack.c.h.b16 %v2305
        %v2464 = vunpack.c.l.b16 %v2306
        %v2465 = vunpack.c.h.b16 %v2306
        %v2466 = vunpack.c.l.b16 %v2307
        %v2467 = vunpack.c.h.b16 %v2307
        %v2468 = vunpack.c.l.b16 %v2308
        %v2469 = vunpack.c.h.b16 %v2308
        %v2470 = vunpack.c.l.b16 %v2309
        %v2471 = vunpack.c.h.b16 %v2309
        %v2472 = vunpack.c.l.b16 %v2310
        %v2473 = vunpack.c.h.b16 %v2310
        %v2474 = vunpack.c.l.b16 %v2311
        %v2475 = vunpack.c.h.b16 %v2311
        %v2476 = vunpack.c.l.b16 %v2312
        %v2477 = vunpack.c.h.b16 %v2312
        %v2478 = vunpack.c.l.b16 %v2313
        %v2479 = vunpack.c.h.b16 %v2313
        %v2480 = vunpack.c.l.b16 %v2314
        %v2481 = vunpack.c.h.b16 %v2314
        %v2482 = vunpack.c.l.b16 %v2315
        %v2483 = vunpack.c.h.b16 %v2315
        %v2484 = vunpack.c.l.b16 %v2316
        %v2485 = vunpack.c.h.b16 %v2316
        %v2486 = vunpack.c.l.b16 %v2317
        %v2487 = vunpack.c.h.b16 %v2317
        %v2488 = vunpack.c.l.b16 %v2318
        %v2489 = vunpack.c.h.b16 %v2318
        %v2490 = vunpack.c.l.b16 %v2319
        %v2491 = vunpack.c.h.b16 %v2319
        %v2492 = vunpack.c.l.b16 %v2320
        %v2493 = vunpack.c.h.b16 %v2320
        %v2494 = vunpack.c.l.b16 %v2321
        %v2495 = vunpack.c.h.b16 %v2321
        %v2496 = vunpack.c.l.b16 %v2322
        %v2497 = vunpack.c.h.b16 %v2322
        %v2498 = vunpack.c.l.b16 %v2323
        %v2499 = vunpack.c.h.b16 %v2323
        %v2500 = vunpack.c.l.b16 %v2324
        %v2501 = vunpack.c.h.b16 %v2324
        %v2502 = vunpack.c.l.b16 %v2325
        %v2503 = vunpack.c.h.b16 %v2325
        %v2504 = vunpack.c.l.b16 %v2326
        %v2505 = vunpack.c.h.b16 %v2326
        %v2506 = vunpack.c.l.b16 %v2327
        %v2507 = vunpack.c.h.b16 %v2327
        %v2508 = vunpack.c.l.b16 %v2328
        %v2509 = vunpack.c.h.b16 %v2328
        %v2510 = vunpack.c.l.b16 %v2329
        %v2511 = vunpack.c.h.b16 %v2329
        %v2512 = vunpack.c.l.b16 %v2330
        %v2513 = vunpack.c.h.b16 %v2330
        %v2514 = vunpack.c.l.b16 %v2331
        %v2515 = vunpack.c.h.b16 %v2331
        %v2516 = vunpack.c.l.b16 %v2332
        %v2517 = vunpack.c.h.b16 %v2332
        %v2518 = vunpack.c.l.b16 %v2333
        %v2519 = vunpack.c.h.b16 %v2333
        %v2520 = vunpack.c.l.b16 %v2334
        %v2521 = vunpack.c.h.b16 %v2334
        %v2522 = vunpack.c.l.b16 %v2335
        %v2523 = vunpack.c.h.b16 %v2335
        %v2524 = vunpack.c.l.b16 %v2336
        %v2525 = vunpack.c.h.b16 %v2336
        %v2526 = vunpack.c.l.b16 %v2337
        %v2527 = vunpack.c.h.b16 %v2337
        %v2528 = vunpack.c.l.b16 %v2338
        %v2529 = vunpack.c.h.b16 %v2338
        %v2530 = vunpack.c.l.b16 %v2339
        %v2531 = vunpack.c.h.b16 %v2339
        %v2532 = vunpack.c.l.b16 %v2340
        %v2533 = vunpack.c.h.b16 %v2340
        %v2534 = vunpack.c.l.b16 %v2341
        %v2535 = vunpack.c.h.b16 %v2341
        %v2536 = vunpack.c.l.b16 %v2342
        %v2537 = vunpack.c.h.b16 %v2342
        %v2538 = vunpack.c.l.b16 %v2343
        %v2539 = vunpack.c.h.b16 %v2343
        %v2540 = vunpack.c.l.b16 %v2344
        %v2541 = vunpack.c.h.b16 %v2344
        %v2542 = vunpack.c.l.b16 %v2345
        %v2543 = vunpack.c.h.b16 %v2345
        %v2544 = vunpack.c.l.b16 %v2346
        %v2545 = vunpack.c.h.b16 %v2346
        %v2546 = vunpack.c.l.b16 %v2347
        %v2547 = vunpack.c.h.b16 %v2347
        %v2548 = vunpack.c.l.b16 %v2348
        %v2549 = vunpack.c.h.b16 %v2348
        %v2550 = vunpack.c.l.b16 %v2349
        %v2551 = vunpack.c.h.b16 %v2349
        %v2552 = vpack.c.b16 %v2428, %v2424
        %v2553 = vpack.c.b16 %v2429, %v2425
        %v2554 = vpack.c.b16 %v2430, %v2426
        %v2555 = vpack.c.b16 %v2431, %v2427
        %v2556 = vpack.c.b16 %v2436, %v2432
        %v2557 = vpack.c.b16 %v2437, %v2433
        %v2558 = vpack.c.b16 %v2438, %v2434
        %v2559 = vpack.c.b16 %v2439, %v2435
        %v2560 = vpack.c.b16 %v2444, %v2440
        %v2561 = vpack.c.b16 %v2445, %v2441
        %v2562 = vpack.c.b16 %v2446, %v2442
        %v2563 = vpack.c.b16 %v2447, %v2443
        %v2564 = vpack.c.b16 %v2452, %v2448
        %v2565 = vpack.c.b16 %v2453, %v2449
        %v2566 = vpack.c.b16 %v2454, %v2450
        %v2567 = vpack.c.b16 %v2455, %v2451
        %v2568 = vpack.c.b16 %v2460, %v2456
        %v2569 = vpack.c.b16 %v2461, %v2457
        %v2570 = vpack.c.b16 %v2462, %v2458
        %v2571 = vpack.c.b16 %v2463, %v2459
        %v2572 = vpack.c.b16 %v2468, %v2464
        %v2573 = vpack.c.b16 %v2469, %v2465
        %v2574 = vpack.c.b16 %v2470, %v2466
        %v2575 = vpack.c.b16 %v2471, %v2467
        %v2576 = vpack.c.b16 %v2476, %v2472
        %v2577 = vpack.c.b16 %v2477, %v2473
        %v2578 = vpack.c.b16 %v2478, %v2474
        %v2579 = vpack.c.b16 %v2479, %v2475
        %v2580 = vpack.c.b16 %v2484, %v2480
        %v2581 = vpack.c.b16 %v2485, %v2481
        %v2582 = vpack.c.b16 %v2486, %v2482
        %v2583 = vpack.c.b16 %v2487, %v2483
        %v2584 = vpack.c.b16 %v2492, %v2488
        %v2585 = vpack.c.b16 %v2493, %v2489
        %v2586 = vpack.c.b16 %v2494, %v2490
        %v2587 = vpack.c.b16 %v2495, %v2491
        %v2588 = vpack.c.b16 %v2500, %v2496
        %v2589 = vpack.c.b16 %v2501, %v2497
        %v2590 = vpack.c.b16 %v2502, %v2498
        %v2591 = vpack.c.b16 %v2503, %v2499
        %v2592 = vpack.c.b16 %v2508, %v2504
        %v2593 = vpack.c.b16 %v2509, %v2505
        %v2594 = vpack.c.b16 %v2510, %v2506
        %v2595 = vpack.c.b16 %v2511, %v2507
        %v2596 = vpack.c.b16 %v2516, %v2512
        %v2597 = vpack.c.b16 %v2517, %v2513
        %v2598 = vpack.c.b16 %v2518, %v2514
        %v2599 = vpack.c.b16 %v2519, %v2515
        %v2600 = vpack.c.b16 %v2524, %v2520
        %v2601 = vpack.c.b16 %v2525, %v2521
        %v2602 = vpack.c.b16 %v2526, %v2522
        %v2603 = vpack.c.b16 %v2527, %v2523
        %v2604 = vpack.c.b16 %v2532, %v2528
        %v2605 = vpack.c.b16 %v2533, %v2529
        %v2606 = vpack.c.b16 %v2534, %v2530
        %v2607 = vpack.c.b16 %v2535, %v2531
        %v2608 = vpack.c.b16 %v2540, %v2536
        %v2609 = vpack.c.b16 %v2541, %v2537
        %v2610 = vpack.c.b16 %v2542, %v2538
        %v2611 = vpack.c.b16 %v2543, %v2539
        %v2612 = vpack.c.b16 %v2548, %v2544
        %v2613 = vpack.c.b16 %v2549, %v2545
        %v2614 = vpack.c.b16 %v2550, %v2546
        %v2615 = vpack.c.b16 %v2551, %v2547
        %2680 = vmatpush.bf16.msra.mxu0 %v2580
        %2681 = vmatpush.bf16.msra.mxu0 %v2576
        %2682 = vmatpush.bf16.msra.mxu0 %v2572
        %2683 = vmatpush.bf16.msra.mxu0 %v2568
        %2684 = vmatpush.bf16.msra.mxu0 %v2564
        %2685 = vmatpush.bf16.msra.mxu0 %v2560
        %2686 = vmatpush.bf16.msra.mxu0 %v2556
        %2687 = vmatpush.bf16.msra.mxu0 %v2552
        %2688 = vmatmul.bf16.gmra.mxu0 %v2284
        %v2689 = vpop.f32.mrf.mxu0
        %v2690 = vadd.f32 %v2352, %v2689
        %v2691 = vpop.f32.mrf.mxu0
        %v2692 = vadd.f32 %v2352, %v2691
        %2693 = vdwg.mxu0
        %2694 = vmatpush.bf16.msra.mxu0 %v2612
        %2695 = vmatpush.bf16.msra.mxu0 %v2608
        %2696 = vmatpush.bf16.msra.mxu0 %v2604
        %2697 = vmatpush.bf16.msra.mxu0 %v2600
        %2698 = vmatpush.bf16.msra.mxu0 %v2596
        %2699 = vmatpush.bf16.msra.mxu0 %v2592
        %2700 = vmatpush.bf16.msra.mxu0 %v2588
        %2701 = vmatpush.bf16.msra.mxu0 %v2584
        %2702 = vmatmul.bf16.gmra.mxu0 %v2285
        %v2703 = vpop.f32.mrf.mxu0
        %v2704 = vadd.f32 %v2690, %v2703
        %v2705 = vpop.f32.mrf.mxu0
        %v2706 = vadd.f32 %v2692, %v2705
        %2707 = vdwg.mxu0
        %2708 = vmatpush.bf16.msra.mxu0 %v2581
        %2709 = vmatpush.bf16.msra.mxu0 %v2577
        %2710 = vmatpush.bf16.msra.mxu0 %v2573
        %2711 = vmatpush.bf16.msra.mxu0 %v2569
        %2712 = vmatpush.bf16.msra.mxu0 %v2565
        %2713 = vmatpush.bf16.msra.mxu0 %v2561
        %2714 = vmatpush.bf16.msra.mxu0 %v2557
        %2715 = vmatpush.bf16.msra.mxu0 %v2553
        %2716 = vmatmul.bf16.gmra.mxu0 %v2284
        %v2717 = vpop.f32.mrf.mxu0
        %v2718 = vadd.f32 %v2353, %v2717
        %v2719 = vpop.f32.mrf.mxu0
        %v2720 = vadd.f32 %v2353, %v2719
        %2721 = vdwg.mxu0
        %2722 = vmatpush.bf16.msra.mxu0 %v2613
        %2723 = vmatpush.bf16.msra.mxu0 %v2609
        %2724 = vmatpush.bf16.msra.mxu0 %v2605
        %2725 = vmatpush.bf16.msra.mxu0 %v2601
        %2726 = vmatpush.bf16.msra.mxu0 %v2597
        %2727 = vmatpush.bf16.msra.mxu0 %v2593
        %2728 = vmatpush.bf16.msra.mxu0 %v2589
        %2729 = vmatpush.bf16.msra.mxu0 %v2585
        %2730 = vmatmul.bf16.gmra.mxu0 %v2285
        %v2731 = vpop.f32.mrf.mxu0
        %v2732 = vadd.f32 %v2718, %v2731
        %v2733 = vpop.f32.mrf.mxu0
        %v2734 = vadd.f32 %v2720, %v2733
        %2735 = vdwg.mxu0
        %2736 = vmatpush.bf16.msra.mxu0 %v2582
        %2737 = vmatpush.bf16.msra.mxu0 %v2578
        %2738 = vmatpush.bf16.msra.mxu0 %v2574
        %2739 = vmatpush.bf16.msra.mxu0 %v2570
        %2740 = vmatpush.bf16.msra.mxu0 %v2566
        %2741 = vmatpush.bf16.msra.mxu0 %v2562
        %2742 = vmatpush.bf16.msra.mxu0 %v2558
        %2743 = vmatpush.bf16.msra.mxu0 %v2554
        %2744 = vmatmul.bf16.gmra.mxu0 %v2284
        %v2745 = vpop.f32.mrf.mxu0
        %v2746 = vadd.f32 %v2354, %v2745
        %v2747 = vpop.f32.mrf.mxu0
        %v2748 = vadd.f32 %v2354, %v2747
        %2749 = vdwg.mxu0
        %2750 = vmatpush.bf16.msra.mxu0 %v2614
        %2751 = vmatpush.bf16.msra.mxu0 %v2610
        %2752 = vmatpush.bf16.msra.mxu0 %v2606
        %2753 = vmatpush.bf16.msra.mxu0 %v2602
        %2754 = vmatpush.bf16.msra.mxu0 %v2598
        %2755 = vmatpush.bf16.msra.mxu0 %v2594
        %2756 = vmatpush.bf16.msra.mxu0 %v2590
        %2757 = vmatpush.bf16.msra.mxu0 %v2586
        %2758 = vmatmul.bf16.gmra.mxu0 %v2285
        %v2759 = vpop.f32.mrf.mxu0
        %v2760 = vadd.f32 %v2746, %v2759
        %v2761 = vpop.f32.mrf.mxu0
        %v2762 = vadd.f32 %v2748, %v2761
        %2763 = vdwg.mxu0
        %2764 = vmatpush.bf16.msra.mxu0 %v2583
        %2765 = vmatpush.bf16.msra.mxu0 %v2579
        %2766 = vmatpush.bf16.msra.mxu0 %v2575
        %2767 = vmatpush.bf16.msra.mxu0 %v2571
        %2768 = vmatpush.bf16.msra.mxu0 %v2567
        %2769 = vmatpush.bf16.msra.mxu0 %v2563
        %2770 = vmatpush.bf16.msra.mxu0 %v2559
        %2771 = vmatpush.bf16.msra.mxu0 %v2555
        %2772 = vmatmul.bf16.gmra.mxu0 %v2284
        %v2773 = vpop.f32.mrf.mxu0
        %v2774 = vadd.f32 %v2355, %v2773
        %v2775 = vpop.f32.mrf.mxu0
        %v2776 = vadd.f32 %v2355, %v2775
        %2777 = vdwg.mxu0
        %2778 = vmatpush.bf16.msra.mxu0 %v2615
        %2779 = vmatpush.bf16.msra.mxu0 %v2611
        %2780 = vmatpush.bf16.msra.mxu0 %v2607
        %2781 = vmatpush.bf16.msra.mxu0 %v2603
        %2782 = vmatpush.bf16.msra.mxu0 %v2599
        %2783 = vmatpush.bf16.msra.mxu0 %v2595
        %2784 = vmatpush.bf16.msra.mxu0 %v2591
        %2785 = vmatpush.bf16.msra.mxu0 %v2587
        %2786 = vmatmul.bf16.gmra.mxu0 %v2285
        %v2787 = vpop.f32.mrf.mxu0
        %v2788 = vadd.f32 %v2774, %v2787
        %v2789 = vpop.f32.mrf.mxu0
        %v2790 = vadd.f32 %v2776, %v2789
        %2791 = vdwg.mxu0
        %v2792 = vmul.f32 %v2704, %v2704
        %v2793 = vmul.f32 %v2732, %v2732
        %v2794 = vmul.f32 %v2760, %v2760
        %v2795 = vmul.f32 %v2788, %v2788
        %v2796 = vmul.f32 %v2706, %v2706
        %v2797 = vmul.f32 %v2734, %v2734
        %v2798 = vmul.f32 %v2762, %v2762
        %v2799 = vmul.f32 %v2790, %v2790
        %v2800 = vmul.f32 %v2704, %v2792
        %v2801 = vmul.f32 %v2732, %v2793
        %v2802 = vmul.f32 %v2760, %v2794
        %v2803 = vmul.f32 %v2788, %v2795
        %v2804 = vmul.f32 %v2706, %v2796
        %v2805 = vmul.f32 %v2734, %v2797
        %v2806 = vmul.f32 %v2762, %v2798
        %v2807 = vmul.f32 %v2790, %v2799
        %v2808 = vmul.f32 %v2800, 0.044715
        %v2809 = vmul.f32 %v2801, 0.044715
        %v2810 = vmul.f32 %v2802, 0.044715
        %v2811 = vmul.f32 %v2803, 0.044715
        %v2812 = vmul.f32 %v2804, 0.044715
        %v2813 = vmul.f32 %v2805, 0.044715
        %v2814 = vmul.f32 %v2806, 0.044715
        %v2815 = vmul.f32 %v2807, 0.044715
        %v2816 = vadd.f32 %v2704, %v2808
        %v2817 = vadd.f32 %v2732, %v2809
        %v2818 = vadd.f32 %v2760, %v2810
        %v2819 = vadd.f32 %v2788, %v2811
        %v2820 = vadd.f32 %v2706, %v2812
        %v2821 = vadd.f32 %v2734, %v2813
        %v2822 = vadd.f32 %v2762, %v2814
        %v2823 = vadd.f32 %v2790, %v2815
        %v2824 = vmul.f32 %v2816, 0.7978846
        %v2825 = vmul.f32 %v2817, 0.7978846
        %v2826 = vmul.f32 %v2818, 0.7978846
        %v2827 = vmul.f32 %v2819, 0.7978846
        %v2828 = vmul.f32 %v2820, 0.7978846
        %v2829 = vmul.f32 %v2821, 0.7978846
        %v2830 = vmul.f32 %v2822, 0.7978846
        %v2831 = vmul.f32 %v2823, 0.7978846
        %v2832 = vtanh.pop %v2824
        %v2833 = vtanh.pop %v2825
        %v2834 = vtanh.pop %v2826
        %v2835 = vtanh.pop %v2827
        %v2836 = vtanh.pop %v2828
        %v2837 = vtanh.pop %v2829
        %v2838 = vtanh.pop %v2830
        %v2839 = vtanh.pop %v2831
        %v2840 = vadd.f32 %v2832, 1.0
        %v2841 = vadd.f32 %v2833, 1.0
        %v2842 = vadd.f32 %v2834, 1.0
        %v2843 = vadd.f32 %v2835, 1.0
        %v2844 = vadd.f32 %v2836, 1.0
        %v2845 = vadd.f32 %v2837, 1.0
        %v2846 = vadd.f32 %v2838, 1.0
        %v2847 = vadd.f32 %v2839, 1.0
        %v2848 = vmul.f32 %v2840, 0.5
        %v2849 = vmul.f32 %v2841, 0.5
        %v2850 = vmul.f32 %v2842, 0.5
        %v2851 = vmul.f32 %v2843, 0.5
        %v2852 = vmul.f32 %v2844, 0.5
        %v2853 = vmul.f32 %v2845, 0.5
        %v2854 = vmul.f32 %v2846, 0.5
        %v2855 = vmul.f32 %v2847, 0.5
        %v2856 = vmul.f32 %v2704, %v2848
        %v2857 = vmul.f32 %v2732, %v2849
        %v2858 = vmul.f32 %v2760, %v2850
        %v2859 = vmul.f32 %v2788, %v2851
        %v2860 = vmul.f32 %v2706, %v2852
        %v2861 = vmul.f32 %v2734, %v2853
        %v2862 = vmul.f32 %v2762, %v2854
        %v2863 = vmul.f32 %v2790, %v2855
        %v2864 = vpack.c.bf16 %v2860, %v2856
        %v2865 = vpack.c.bf16 %v2861, %v2857
        %v2866 = vpack.c.bf16 %v2862, %v2858
        %v2867 = vpack.c.bf16 %v2863, %v2859
        %v2868 = vld [vmem:[%s783] sm:$0xff]
        %v2869 = vld [vmem:[%s783 + $0x8] sm:$0xff]
        %v2870 = vld [vmem:[%s783 + $0x10] sm:$0xff]
        %v2871 = vld [vmem:[%s783 + $0x18] sm:$0xff]
        %v2872 = vld [vmem:[%s783 + $0x20] sm:$0xff]
        %v2873 = vld [vmem:[%s783 + $0x28] sm:$0xff]
        %v2874 = vld [vmem:[%s783 + $0x30] sm:$0xff]
        %v2875 = vld [vmem:[%s783 + $0x38] sm:$0xff]
        %v2876 = vld [vmem:[%s783 + $0x40] sm:$0xff]
        %v2877 = vld [vmem:[%s783 + $0x48] sm:$0xff]
        %v2878 = vld [vmem:[%s783 + $0x50] sm:$0xff]
        %v2879 = vld [vmem:[%s783 + $0x58] sm:$0xff]
        %v2880 = vld [vmem:[%s783 + $0x60] sm:$0xff]
        %v2881 = vld [vmem:[%s783 + $0x68] sm:$0xff]
        %v2882 = vld [vmem:[%s783 + $0x70] sm:$0xff]
        %v2883 = vld [vmem:[%s783 + $0x78] sm:$0xff]
        %v2884 = vld [vmem:[%s783 + $0x80] sm:$0xff]
        %v2885 = vld [vmem:[%s783 + $0x88] sm:$0xff]
        %v2886 = vld [vmem:[%s783 + $0x90] sm:$0xff]
        %v2887 = vld [vmem:[%s783 + $0x98] sm:$0xff]
        %v2888 = vld [vmem:[%s783 + $0xa0] sm:$0xff]
        %v2889 = vld [vmem:[%s783 + $0xa8] sm:$0xff]
        %v2890 = vld [vmem:[%s783 + $0xb0] sm:$0xff]
        %v2891 = vld [vmem:[%s783 + $0xb8] sm:$0xff]
        %v2892 = vld [vmem:[%s783 + $0xc0] sm:$0xff]
        %v2893 = vld [vmem:[%s783 + $0xc8] sm:$0xff]
        %v2894 = vld [vmem:[%s783 + $0xd0] sm:$0xff]
        %v2895 = vld [vmem:[%s783 + $0xd8] sm:$0xff]
        %v2896 = vld [vmem:[%s783 + $0xe0] sm:$0xff]
        %v2897 = vld [vmem:[%s783 + $0xe8] sm:$0xff]
        %v2898 = vld [vmem:[%s783 + $0xf0] sm:$0xff]
        %v2899 = vld [vmem:[%s783 + $0xf8] sm:$0xff]
        %v2900 = vld [vmem:[%s783 + $0x100] sm:$0xff]
        %v2901 = vld [vmem:[%s783 + $0x108] sm:$0xff]
        %v2902 = vld [vmem:[%s783 + $0x110] sm:$0xff]
        %v2903 = vld [vmem:[%s783 + $0x118] sm:$0xff]
        %v2904 = vld [vmem:[%s783 + $0x120] sm:$0xff]
        %v2905 = vld [vmem:[%s783 + $0x128] sm:$0xff]
        %v2906 = vld [vmem:[%s783 + $0x130] sm:$0xff]
        %v2907 = vld [vmem:[%s783 + $0x138] sm:$0xff]
        %v2908 = vld [vmem:[%s783 + $0x140] sm:$0xff]
        %v2909 = vld [vmem:[%s783 + $0x148] sm:$0xff]
        %v2910 = vld [vmem:[%s783 + $0x150] sm:$0xff]
        %v2911 = vld [vmem:[%s783 + $0x158] sm:$0xff]
        %v2912 = vld [vmem:[%s783 + $0x160] sm:$0xff]
        %v2913 = vld [vmem:[%s783 + $0x168] sm:$0xff]
        %v2914 = vld [vmem:[%s783 + $0x170] sm:$0xff]
        %v2915 = vld [vmem:[%s783 + $0x178] sm:$0xff]
        %v2916 = vld [vmem:[%s783 + $0x180] sm:$0xff]
        %v2917 = vld [vmem:[%s783 + $0x188] sm:$0xff]
        %v2918 = vld [vmem:[%s783 + $0x190] sm:$0xff]
        %v2919 = vld [vmem:[%s783 + $0x198] sm:$0xff]
        %v2920 = vld [vmem:[%s783 + $0x1a0] sm:$0xff]
        %v2921 = vld [vmem:[%s783 + $0x1a8] sm:$0xff]
        %v2922 = vld [vmem:[%s783 + $0x1b0] sm:$0xff]
        %v2923 = vld [vmem:[%s783 + $0x1b8] sm:$0xff]
        %v2924 = vld [vmem:[%s783 + $0x1c0] sm:$0xff]
        %v2925 = vld [vmem:[%s783 + $0x1c8] sm:$0xff]
        %v2926 = vld [vmem:[%s783 + $0x1d0] sm:$0xff]
        %v2927 = vld [vmem:[%s783 + $0x1d8] sm:$0xff]
        %v2928 = vld [vmem:[%s783 + $0x1e0] sm:$0xff]
        %v2929 = vld [vmem:[%s783 + $0x1e8] sm:$0xff]
        %v2930 = vld [vmem:[%s783 + $0x1f0] sm:$0xff]
        %v2931 = vld [vmem:[%s783 + $0x1f8] sm:$0xff]
        %v2932 = vld [vmem:[%s793] sm:$0x3]
        %v2934 = vperm.slane %v2932, 0
        %v2935 = vperm.slane %v2932, 1
        %v3002 = vunpack.c.l.b16 %v2868
        %v3003 = vunpack.c.h.b16 %v2868
        %v3004 = vunpack.c.l.b16 %v2869
        %v3005 = vunpack.c.h.b16 %v2869
        %v3006 = vunpack.c.l.b16 %v2870
        %v3007 = vunpack.c.h.b16 %v2870
        %v3008 = vunpack.c.l.b16 %v2871
        %v3009 = vunpack.c.h.b16 %v2871
        %v3010 = vunpack.c.l.b16 %v2872
        %v3011 = vunpack.c.h.b16 %v2872
        %v3012 = vunpack.c.l.b16 %v2873
        %v3013 = vunpack.c.h.b16 %v2873
        %v3014 = vunpack.c.l.b16 %v2874
        %v3015 = vunpack.c.h.b16 %v2874
        %v3016 = vunpack.c.l.b16 %v2875
        %v3017 = vunpack.c.h.b16 %v2875
        %v3018 = vunpack.c.l.b16 %v2876
        %v3019 = vunpack.c.h.b16 %v2876
        %v3020 = vunpack.c.l.b16 %v2877
        %v3021 = vunpack.c.h.b16 %v2877
        %v3022 = vunpack.c.l.b16 %v2878
        %v3023 = vunpack.c.h.b16 %v2878
        %v3024 = vunpack.c.l.b16 %v2879
        %v3025 = vunpack.c.h.b16 %v2879
        %v3026 = vunpack.c.l.b16 %v2880
        %v3027 = vunpack.c.h.b16 %v2880
        %v3028 = vunpack.c.l.b16 %v2881
        %v3029 = vunpack.c.h.b16 %v2881
        %v3030 = vunpack.c.l.b16 %v2882
        %v3031 = vunpack.c.h.b16 %v2882
        %v3032 = vunpack.c.l.b16 %v2883
        %v3033 = vunpack.c.h.b16 %v2883
        %v3034 = vunpack.c.l.b16 %v2884
        %v3035 = vunpack.c.h.b16 %v2884
        %v3036 = vunpack.c.l.b16 %v2885
        %v3037 = vunpack.c.h.b16 %v2885
        %v3038 = vunpack.c.l.b16 %v2886
        %v3039 = vunpack.c.h.b16 %v2886
        %v3040 = vunpack.c.l.b16 %v2887
        %v3041 = vunpack.c.h.b16 %v2887
        %v3042 = vunpack.c.l.b16 %v2888
        %v3043 = vunpack.c.h.b16 %v2888
        %v3044 = vunpack.c.l.b16 %v2889
        %v3045 = vunpack.c.h.b16 %v2889
        %v3046 = vunpack.c.l.b16 %v2890
        %v3047 = vunpack.c.h.b16 %v2890
        %v3048 = vunpack.c.l.b16 %v2891
        %v3049 = vunpack.c.h.b16 %v2891
        %v3050 = vunpack.c.l.b16 %v2892
        %v3051 = vunpack.c.h.b16 %v2892
        %v3052 = vunpack.c.l.b16 %v2893
        %v3053 = vunpack.c.h.b16 %v2893
        %v3054 = vunpack.c.l.b16 %v2894
        %v3055 = vunpack.c.h.b16 %v2894
        %v3056 = vunpack.c.l.b16 %v2895
        %v3057 = vunpack.c.h.b16 %v2895
        %v3058 = vunpack.c.l.b16 %v2896
        %v3059 = vunpack.c.h.b16 %v2896
        %v3060 = vunpack.c.l.b16 %v2897
        %v3061 = vunpack.c.h.b16 %v2897
        %v3062 = vunpack.c.l.b16 %v2898
        %v3063 = vunpack.c.h.b16 %v2898
        %v3064 = vunpack.c.l.b16 %v2899
        %v3065 = vunpack.c.h.b16 %v2899
        %v3066 = vunpack.c.l.b16 %v2900
        %v3067 = vunpack.c.h.b16 %v2900
        %v3068 = vunpack.c.l.b16 %v2901
        %v3069 = vunpack.c.h.b16 %v2901
        %v3070 = vunpack.c.l.b16 %v2902
        %v3071 = vunpack.c.h.b16 %v2902
        %v3072 = vunpack.c.l.b16 %v2903
        %v3073 = vunpack.c.h.b16 %v2903
        %v3074 = vunpack.c.l.b16 %v2904
        %v3075 = vunpack.c.h.b16 %v2904
        %v3076 = vunpack.c.l.b16 %v2905
        %v3077 = vunpack.c.h.b16 %v2905
        %v3078 = vunpack.c.l.b16 %v2906
        %v3079 = vunpack.c.h.b16 %v2906
        %v3080 = vunpack.c.l.b16 %v2907
        %v3081 = vunpack.c.h.b16 %v2907
        %v3082 = vunpack.c.l.b16 %v2908
        %v3083 = vunpack.c.h.b16 %v2908
        %v3084 = vunpack.c.l.b16 %v2909
        %v3085 = vunpack.c.h.b16 %v2909
        %v3086 = vunpack.c.l.b16 %v2910
        %v3087 = vunpack.c.h.b16 %v2910
        %v3088 = vunpack.c.l.b16 %v2911
        %v3089 = vunpack.c.h.b16 %v2911
        %v3090 = vunpack.c.l.b16 %v2912
        %v3091 = vunpack.c.h.b16 %v2912
        %v3092 = vunpack.c.l.b16 %v2913
        %v3093 = vunpack.c.h.b16 %v2913
        %v3094 = vunpack.c.l.b16 %v2914
        %v3095 = vunpack.c.h.b16 %v2914
        %v3096 = vunpack.c.l.b16 %v2915
        %v3097 = vunpack.c.h.b16 %v2915
        %v3098 = vunpack.c.l.b16 %v2916
        %v3099 = vunpack.c.h.b16 %v2916
        %v3100 = vunpack.c.l.b16 %v2917
        %v3101 = vunpack.c.h.b16 %v2917
        %v3102 = vunpack.c.l.b16 %v2918
        %v3103 = vunpack.c.h.b16 %v2918
        %v3104 = vunpack.c.l.b16 %v2919
        %v3105 = vunpack.c.h.b16 %v2919
        %v3106 = vunpack.c.l.b16 %v2920
        %v3107 = vunpack.c.h.b16 %v2920
        %v3108 = vunpack.c.l.b16 %v2921
        %v3109 = vunpack.c.h.b16 %v2921
        %v3110 = vunpack.c.l.b16 %v2922
        %v3111 = vunpack.c.h.b16 %v2922
        %v3112 = vunpack.c.l.b16 %v2923
        %v3113 = vunpack.c.h.b16 %v2923
        %v3114 = vunpack.c.l.b16 %v2924
        %v3115 = vunpack.c.h.b16 %v2924
        %v3116 = vunpack.c.l.b16 %v2925
        %v3117 = vunpack.c.h.b16 %v2925
        %v3118 = vunpack.c.l.b16 %v2926
        %v3119 = vunpack.c.h.b16 %v2926
        %v3120 = vunpack.c.l.b16 %v2927
        %v3121 = vunpack.c.h.b16 %v2927
        %v3122 = vunpack.c.l.b16 %v2928
        %v3123 = vunpack.c.h.b16 %v2928
        %v3124 = vunpack.c.l.b16 %v2929
        %v3125 = vunpack.c.h.b16 %v2929
        %v3126 = vunpack.c.l.b16 %v2930
        %v3127 = vunpack.c.h.b16 %v2930
        %v3128 = vunpack.c.l.b16 %v2931
        %v3129 = vunpack.c.h.b16 %v2931
        %v3130 = vpack.c.b16 %v3004, %v3002
        %v3131 = vpack.c.b16 %v3005, %v3003
        %v3132 = vpack.c.b16 %v3008, %v3006
        %v3133 = vpack.c.b16 %v3009, %v3007
        %v3134 = vpack.c.b16 %v3012, %v3010
        %v3135 = vpack.c.b16 %v3013, %v3011
        %v3136 = vpack.c.b16 %v3016, %v3014
        %v3137 = vpack.c.b16 %v3017, %v3015
        %v3138 = vpack.c.b16 %v3020, %v3018
        %v3139 = vpack.c.b16 %v3021, %v3019
        %v3140 = vpack.c.b16 %v3024, %v3022
        %v3141 = vpack.c.b16 %v3025, %v3023
        %v3142 = vpack.c.b16 %v3028, %v3026
        %v3143 = vpack.c.b16 %v3029, %v3027
        %v3144 = vpack.c.b16 %v3032, %v3030
        %v3145 = vpack.c.b16 %v3033, %v3031
        %v3146 = vpack.c.b16 %v3036, %v3034
        %v3147 = vpack.c.b16 %v3037, %v3035
        %v3148 = vpack.c.b16 %v3040, %v3038
        %v3149 = vpack.c.b16 %v3041, %v3039
        %v3150 = vpack.c.b16 %v3044, %v3042
        %v3151 = vpack.c.b16 %v3045, %v3043
        %v3152 = vpack.c.b16 %v3048, %v3046
        %v3153 = vpack.c.b16 %v3049, %v3047
        %v3154 = vpack.c.b16 %v3052, %v3050
        %v3155 = vpack.c.b16 %v3053, %v3051
        %v3156 = vpack.c.b16 %v3056, %v3054
        %v3157 = vpack.c.b16 %v3057, %v3055
        %v3158 = vpack.c.b16 %v3060, %v3058
        %v3159 = vpack.c.b16 %v3061, %v3059
        %v3160 = vpack.c.b16 %v3064, %v3062
        %v3161 = vpack.c.b16 %v3065, %v3063
        %v3162 = vpack.c.b16 %v3068, %v3066
        %v3163 = vpack.c.b16 %v3069, %v3067
        %v3164 = vpack.c.b16 %v3072, %v3070
        %v3165 = vpack.c.b16 %v3073, %v3071
        %v3166 = vpack.c.b16 %v3076, %v3074
        %v3167 = vpack.c.b16 %v3077, %v3075
        %v3168 = vpack.c.b16 %v3080, %v3078
        %v3169 = vpack.c.b16 %v3081, %v3079
        %v3170 = vpack.c.b16 %v3084, %v3082
        %v3171 = vpack.c.b16 %v3085, %v3083
        %v3172 = vpack.c.b16 %v3088, %v3086
        %v3173 = vpack.c.b16 %v3089, %v3087
        %v3174 = vpack.c.b16 %v3092, %v3090
        %v3175 = vpack.c.b16 %v3093, %v3091
        %v3176 = vpack.c.b16 %v3096, %v3094
        %v3177 = vpack.c.b16 %v3097, %v3095
        %v3178 = vpack.c.b16 %v3100, %v3098
        %v3179 = vpack.c.b16 %v3101, %v3099
        %v3180 = vpack.c.b16 %v3104, %v3102
        %v3181 = vpack.c.b16 %v3105, %v3103
        %v3182 = vpack.c.b16 %v3108, %v3106
        %v3183 = vpack.c.b16 %v3109, %v3107
        %v3184 = vpack.c.b16 %v3112, %v3110
        %v3185 = vpack.c.b16 %v3113, %v3111
        %v3186 = vpack.c.b16 %v3116, %v3114
        %v3187 = vpack.c.b16 %v3117, %v3115
        %v3188 = vpack.c.b16 %v3120, %v3118
        %v3189 = vpack.c.b16 %v3121, %v3119
        %v3190 = vpack.c.b16 %v3124, %v3122
        %v3191 = vpack.c.b16 %v3125, %v3123
        %v3192 = vpack.c.b16 %v3128, %v3126
        %v3193 = vpack.c.b16 %v3129, %v3127
        %3258 = vmatpush.bf16.msra.mxu0 %v3144
        %3259 = vmatpush.bf16.msra.mxu0 %v3142
        %3260 = vmatpush.bf16.msra.mxu0 %v3140
        %3261 = vmatpush.bf16.msra.mxu0 %v3138
        %3262 = vmatpush.bf16.msra.mxu0 %v3136
        %3263 = vmatpush.bf16.msra.mxu0 %v3134
        %3264 = vmatpush.bf16.msra.mxu0 %v3132
        %3265 = vmatpush.bf16.msra.mxu0 %v3130
        %3266 = vmatmul.bf16.gmra.mxu0 %v2864
        %v3267 = vpop.f32.mrf.mxu0
        %v3268 = vadd.f32 %v2934, %v3267
        %v3269 = vpop.f32.mrf.mxu0
        %v3270 = vadd.f32 %v2934, %v3269
        %3271 = vdwg.mxu0
        %3272 = vmatpush.bf16.msra.mxu0 %v3160
        %3273 = vmatpush.bf16.msra.mxu0 %v3158
        %3274 = vmatpush.bf16.msra.mxu0 %v3156
        %3275 = vmatpush.bf16.msra.mxu0 %v3154
        %3276 = vmatpush.bf16.msra.mxu0 %v3152
        %3277 = vmatpush.bf16.msra.mxu0 %v3150
        %3278 = vmatpush.bf16.msra.mxu0 %v3148
        %3279 = vmatpush.bf16.msra.mxu0 %v3146
        %3280 = vmatmul.bf16.gmra.mxu0 %v2865
        %v3281 = vpop.f32.mrf.mxu0
        %v3282 = vadd.f32 %v3268, %v3281
        %v3283 = vpop.f32.mrf.mxu0
        %v3284 = vadd.f32 %v3270, %v3283
        %3285 = vdwg.mxu0
        %3286 = vmatpush.bf16.msra.mxu0 %v3176
        %3287 = vmatpush.bf16.msra.mxu0 %v3174
        %3288 = vmatpush.bf16.msra.mxu0 %v3172
        %3289 = vmatpush.bf16.msra.mxu0 %v3170
        %3290 = vmatpush.bf16.msra.mxu0 %v3168
        %3291 = vmatpush.bf16.msra.mxu0 %v3166
        %3292 = vmatpush.bf16.msra.mxu0 %v3164
        %3293 = vmatpush.bf16.msra.mxu0 %v3162
        %3294 = vmatmul.bf16.gmra.mxu0 %v2866
        %v3295 = vpop.f32.mrf.mxu0
        %v3296 = vadd.f32 %v3282, %v3295
        %v3297 = vpop.f32.mrf.mxu0
        %v3298 = vadd.f32 %v3284, %v3297
        %3299 = vdwg.mxu0
        %3300 = vmatpush.bf16.msra.mxu0 %v3192
        %3301 = vmatpush.bf16.msra.mxu0 %v3190
        %3302 = vmatpush.bf16.msra.mxu0 %v3188
        %3303 = vmatpush.bf16.msra.mxu0 %v3186
        %3304 = vmatpush.bf16.msra.mxu0 %v3184
        %3305 = vmatpush.bf16.msra.mxu0 %v3182
        %3306 = vmatpush.bf16.msra.mxu0 %v3180
        %3307 = vmatpush.bf16.msra.mxu0 %v3178
        %3308 = vmatmul.bf16.gmra.mxu0 %v2867
        %v3309 = vpop.f32.mrf.mxu0
        %v3310 = vadd.f32 %v3296, %v3309
        %v3311 = vpop.f32.mrf.mxu0
        %v3312 = vadd.f32 %v3298, %v3311
        %3313 = vdwg.mxu0
        %3314 = vmatpush.bf16.msra.mxu0 %v3145
        %3315 = vmatpush.bf16.msra.mxu0 %v3143
        %3316 = vmatpush.bf16.msra.mxu0 %v3141
        %3317 = vmatpush.bf16.msra.mxu0 %v3139
        %3318 = vmatpush.bf16.msra.mxu0 %v3137
        %3319 = vmatpush.bf16.msra.mxu0 %v3135
        %3320 = vmatpush.bf16.msra.mxu0 %v3133
        %3321 = vmatpush.bf16.msra.mxu0 %v3131
        %3322 = vmatmul.bf16.gmra.mxu0 %v2864
        %v3323 = vpop.f32.mrf.mxu0
        %v3324 = vadd.f32 %v2935, %v3323
        %v3325 = vpop.f32.mrf.mxu0
        %v3326 = vadd.f32 %v2935, %v3325
        %3327 = vdwg.mxu0
        %3328 = vmatpush.bf16.msra.mxu0 %v3161
        %3329 = vmatpush.bf16.msra.mxu0 %v3159
        %3330 = vmatpush.bf16.msra.mxu0 %v3157
        %3331 = vmatpush.bf16.msra.mxu0 %v3155
        %3332 = vmatpush.bf16.msra.mxu0 %v3153
        %3333 = vmatpush.bf16.msra.mxu0 %v3151
        %3334 = vmatpush.bf16.msra.mxu0 %v3149
        %3335 = vmatpush.bf16.msra.mxu0 %v3147
        %3336 = vmatmul.bf16.gmra.mxu0 %v2865
        %v3337 = vpop.f32.mrf.mxu0
        %v3338 = vadd.f32 %v3324, %v3337
        %v3339 = vpop.f32.mrf.mxu0
        %v3340 = vadd.f32 %v3326, %v3339
        %3341 = vdwg.mxu0
        %3342 = vmatpush.bf16.msra.mxu0 %v3177
        %3343 = vmatpush.bf16.msra.mxu0 %v3175
        %3344 = vmatpush.bf16.msra.mxu0 %v3173
        %3345 = vmatpush.bf16.msra.mxu0 %v3171
        %3346 = vmatpush.bf16.msra.mxu0 %v3169
        %3347 = vmatpush.bf16.msra.mxu0 %v3167
        %3348 = vmatpush.bf16.msra.mxu0 %v3165
        %3349 = vmatpush.bf16.msra.mxu0 %v3163
        %3350 = vmatmul.bf16.gmra.mxu0 %v2866
        %v3351 = vpop.f32.mrf.mxu0
        %v3352 = vadd.f32 %v3338, %v3351
        %v3353 = vpop.f32.mrf.mxu0
        %v3354 = vadd.f32 %v3340, %v3353
        %3355 = vdwg.mxu0
        %3356 = vmatpush.bf16.msra.mxu0 %v3193
        %3357 = vmatpush.bf16.msra.mxu0 %v3191
        %3358 = vmatpush.bf16.msra.mxu0 %v3189
        %3359 = vmatpush.bf16.msra.mxu0 %v3187
        %3360 = vmatpush.bf16.msra.mxu0 %v3185
        %3361 = vmatpush.bf16.msra.mxu0 %v3183
        %3362 = vmatpush.bf16.msra.mxu0 %v3181
        %3363 = vmatpush.bf16.msra.mxu0 %v3179
        %3364 = vmatmul.bf16.gmra.mxu0 %v2867
        %v3365 = vpop.f32.mrf.mxu0
        %v3366 = vadd.f32 %v3352, %v3365
        %v3367 = vpop.f32.mrf.mxu0
        %v3368 = vadd.f32 %v3354, %v3367
        %3369 = vdwg.mxu0
        %v3370 = vadd.f32 %v3310, %v2280
        %v3371 = vadd.f32 %v3366, %v2281
        %v3372 = vadd.f32 %v3312, %v2282
        %v3373 = vadd.f32 %v3368, %v2283
        %v3374 = vld [vmem:[%s803] sm:$0x3]
        %v3375 = vld [vmem:[%s905] sm:$0x3]
        %v3376 = vadd.f32 %v3370, %v3371
        %3377 = vadd.xlane.f32.xlu0 %v3376
        %v3378 = vpop.xlane.xlu0 %3377
        %v3379 = vadd.f32 %v3372, %v3373
        %3380 = vadd.xlane.f32.xlu0 %v3379
        %v3381 = vpop.xlane.xlu0 %3380
        %v3382 = vmul.f32 %v3378, %v2221
        %v3383 = vmul.f32 %v3381, %v2221
        %v3384 = vsub.f32 %v3370, %v3382
        %v3385 = vsub.f32 %v3371, %v3382
        %v3386 = vsub.f32 %v3372, %v3383
        %v3387 = vsub.f32 %v3373, %v3383
        %v3388 = vmul.f32 %v3384, %v3384
        %v3389 = vmul.f32 %v3385, %v3385
        %v3390 = vmul.f32 %v3386, %v3386
        %v3391 = vmul.f32 %v3387, %v3387
        %v3392 = vadd.f32 %v3388, %v3389
        %3393 = vadd.xlane.f32.xlu0 %v3392
        %v3394 = vpop.xlane.xlu0 %3393
        %v3395 = vadd.f32 %v3390, %v3391
        %3396 = vadd.xlane.f32.xlu0 %v3395
        %v3397 = vpop.xlane.xlu0 %3396
        %v3398 = vmul.f32 %v3394, %v2221
        %v3399 = vmul.f32 %v3397, %v2221
        %v3400 = vadd.f32 %v3398, 1e-12
        %v3401 = vadd.f32 %v3399, 1e-12
        %v3402 = vrsqrt.pop %v3400
        %v3403 = vmul.f32 %v3402, %v3400
        %v3404 = vmul.f32 %v3403, %v3402
        %v3405 = vmul.f32 0.5, %v3404
        %v3406 = vsub.f32 1.5, %v3405
        %v3407 = vmul.f32 %v3402, %v3406
        %vm3408 = vweird.f32 %v3400
        %vm3409 = vweird.f32 %v3402
        %vm3410 = vmor %vm3408, %vm3409
        %v3411 = vsel %vm3410, %v3402, %v3407
        %v3412 = vrsqrt.pop %v3401
        %v3413 = vmul.f32 %v3412, %v3401
        %v3414 = vmul.f32 %v3413, %v3412
        %v3415 = vmul.f32 0.5, %v3414
        %v3416 = vsub.f32 1.5, %v3415
        %v3417 = vmul.f32 %v3412, %v3416
        %vm3418 = vweird.f32 %v3401
        %vm3419 = vweird.f32 %v3412
        %vm3420 = vmor %vm3418, %vm3419
        %v3421 = vsel %vm3420, %v3412, %v3417
        %v3422 = vmul.f32 %v3384, %v3411
        %v3423 = vmul.f32 %v3385, %v3411
        %v3424 = vmul.f32 %v3386, %v3421
        %v3425 = vmul.f32 %v3387, %v3421
        %v3427 = vperm.slane %v3374, 0
        %v3428 = vperm.slane %v3374, 1
        %v3431 = vmul.f32 %v3422, %v3427
        %v3432 = vmul.f32 %v3423, %v3428
        %v3433 = vmul.f32 %v3424, %v3427
        %v3434 = vmul.f32 %v3425, %v3428
        %v3436 = vperm.slane %v3375, 0
        %v3437 = vperm.slane %v3375, 1
        %v3440 = vadd.f32 %v3431, %v3436
        %v3441 = vadd.f32 %v3432, %v3437
        %v3442 = vadd.f32 %v3433, %v3436
        %v3443 = vadd.f32 %v3434, %v3437
        %3444 = vst [vmem:[#allocation2] sm:$0xff] %v3440
        %3445 = vst [vmem:[#allocation2 + $0x8] sm:$0xff] %v3441
        %3446 = vst [vmem:[#allocation2 + $0x10] sm:$0xff] %v3442
        %3447 = vst [vmem:[#allocation2 + $0x18] sm:$0xff] %v3443
        %p3448 = scmp.eq.s32.totalorder %s33, 1
        // Predicated region
        $region129: #{tpu_custom_call.1} parent=75 // pred_check
          %p3449 = pneg %p3448
        $region130: #{tpu_custom_call.1} parent=75 // pred_check_branch
          %3451 = sbr.rel (%p3449) target = $region132
        $region131: #{tpu_custom_call.1} parent=75 // pred_region
          %v3452 = vld [vmem:[#allocation2] sm:$0xff]
          %v3453 = vld [vmem:[#allocation2 + $0x8] sm:$0xff]
          %v3454 = vld [vmem:[#allocation2 + $0x10] sm:$0xff]
          %v3455 = vld [vmem:[#allocation2 + $0x18] sm:$0xff]
          %3456 = vst [vmem:[#allocation18] sm:$0xff] %v3452
          %3457 = vst [vmem:[#allocation18 + $0x8] sm:$0xff] %v3453
          %3458 = vst [vmem:[#allocation18 + $0x10] sm:$0xff] %v3454
          %3459 = vst [vmem:[#allocation18 + $0x18] sm:$0xff] %v3455
        $region132: #{tpu_custom_call.1} parent=75 // pred_fallthru
          _
        // Predicated region
        $region133: #{tpu_custom_call.1} parent=75 // pred_check
          %p3460 = pneg %p422
        $region134: #{tpu_custom_call.1} parent=75 // pred_check_branch
          %3462 = sbr.rel (%p3460) target = $region136
        $region135: #{tpu_custom_call.1} parent=75 // pred_region
          %s3463 = smul.u32 2, %s32
          %3465 = vsyncadd [#allocation5], 0
          %s3466 = smul.addr %s3463, 2
          %s3467 = smul.addr %s3466, 8
          %s3468 = scalar_lea.hbm %s14, %s3467
          %s3469 = sshll.u32 [#allocation18], 4
          %s3470 = int_to_ptr.vmem [resolvable:$true] %s3469
          %s3471 = sshll.u32 %s3468, 4
          %s3472 = int_to_ptr.hbm [resolvable:$true] %s3471
          %3477 = dma.vmem_to_hbm [thread:$0]  %s3470, 512, %s3472, [#allocation5], 256, 256, 16
        $region136: #{tpu_custom_call.1} parent=75 // pred_fallthru
          _
        // Predicated region
        $region137: #{tpu_custom_call.1} parent=75 // pred_check
          %p3478 = pneg %p422
        $region138: #{tpu_custom_call.1} parent=75 // pred_check_branch
          %3480 = sbr.rel (%p3478) target = $region140
        $region139: #{tpu_custom_call.1} parent=75 // pred_region
          %3482 = dma.done [#allocation5], 512
        $region140: #{tpu_custom_call.1} parent=75 // pred_fallthru
          _
      $region76: #{tpu_custom_call.1} parent=5 // pred_fallthru
        _
      %p3483 = scmp.le.s32.totalorder 2, %s23
      // Predicated region
      $region141: #{tpu_custom_call.1} parent=5 // pred_check
        %p3484 = pneg %p3483
      $region142: #{tpu_custom_call.1} parent=5 // pred_check_branch
        %3486 = sbr.rel (%p3484) target = $region144
      $region143: #{tpu_custom_call.1} parent=5 // pred_region
        %s3487 = ssub.s32 %s23, 2
      $region144: #{tpu_custom_call.1} parent=5 // pred_fallthru
        _
    $region6: #{tpu_custom_call.1} parent=1 // loop_footer
      %s27 = sadd.s32 1, %s23
    $region7: #{tpu_custom_call.1} parent=1 // loop_footer_branch
      %22 = sbr.rel target = $region3
    $region8: #{tpu_custom_call.1} parent=1 // loop_exit
      _
    %3488 = vsyncpa [#allocation4], 1
    %s3489 = scalar_lea.sflag [#allocation4], 1
    %3490 = vsyncpa %s3489, 1
    %3491 = vsyncpa [#allocation7], 1
    %3492 = vsyncpa [#allocation5], 1
    %s3493 = scalar_lea.sflag [#allocation5], 1
    %3494 = vsyncpa %s3493, 1

</llo_original>
